<compile_context>
chip_gen: v7x
topology: tpu7x:2x2x1
jax: 0.10.0
libtpu: 0.0.40
codegen_flags: <defaults>
</compile_context>

<pallas_src>
import functools

import jax
import jax.numpy as jnp
import numpy as np
from jax.experimental import pallas as pl
from jax.experimental.pallas import tpu as pltpu


def _round_up(x, m):
    return ((x + m - 1) // m) * m


def _pick_tile_h(Ho, Wo_pad, pool):
    """Conv-output rows per grid step: target ~512 matmul M-rows, even if pooling."""
    t = max(8, 512 // max(Wo_pad, 1))
    t = min(t, _round_up(Ho, 2 if pool else 1))
    if pool:
        t = max(2, t - (t % 2))
    return max(t, 1)


def _downblock_kernel(x_ref, w_ref, b_ref, o_ref, *scratch,
                      th, wo_pad, kh, kw, cin, cout, pool, neg_slope):
    # x_ref : (1, H_pad, W_pad, Cin)   bf16  (full frame, resident across row tiles)
    # w_ref : (KH, KW*Cin, Cout)       bf16  (0.25-scaled if pool)
    # b_ref : (1, Cout)                f32   (0.25-scaled if pool)
    # o_ref : (1, TH, Wo_pad, Cout) or (1, TH//2, Wo_pad//2, Cout) when pool
    t = pl.program_id(1)
    row0 = pl.multiple_of(t * th, th)   # first conv-output row of this tile
    kwcin = kw * cin

    # ---- VALID conv: im2col along KW -> one 2D MXU matmul per kernel row ----
    acc = jnp.zeros((th * wo_pad, cout), jnp.float32)
    for ki in range(kh):
        pieces = [
            x_ref[0, pl.ds(row0 + ki, th), pl.ds(kj, wo_pad), :]   # (TH, Wo_pad, Cin)
            for kj in range(kw)
        ]
        patch = jnp.concatenate(pieces, axis=-1)                    # (TH, Wo_pad, KW*Cin)
        # Wo_pad % 8 == 0 -> this reshape is a pure re-interpretation (no repack).
        patch2d = patch.reshape(th * wo_pad, kwcin)
        acc = acc + jnp.dot(patch2d, w_ref[ki],
                            preferred_element_type=jnp.float32)

    z = acc + b_ref[...]                                            # + bias (f32)
    y = jnp.where(z >= 0, z, neg_slope * z)                         # leaky_relu(0.2)

    if pool:
        # 2x2 avg-pool, floor mode. 0.25 already folded into w/b, so just sum.
        thp, wp_pad = th // 2, wo_pad // 2
        s_full, s_half = scratch                                    # (TH,Wo_pad,C), (TH,Wp_pad,C)
        s_full[...] = y.reshape(th, wo_pad, cout)
        # width pooling: even + odd columns (sublane-strided reads)
        s_half[...] = (s_full[:, pl.ds(0, wp_pad, 2), :] +
                       s_full[:, pl.ds(1, wp_pad, 2), :])
        # height pooling: even + odd rows (leading-dim strided reads)
        pooled = (s_half[pl.ds(0, thp, 2), :, :] +
                  s_half[pl.ds(1, thp, 2), :, :])
        o_ref[0] = pooled.astype(o_ref.dtype)
    else:
        o_ref[0] = y.reshape(th, wo_pad, cout).astype(o_ref.dtype)


def down_block_2d_nhwc(x_nhwc, weight_oihw, bias, *, pool=False,
                       neg_slope=0.2, tile_h=None):
    """NHWC core (chain this form between blocks to avoid layout round-trips).

    weight_oihw is the already spectral-normalized Conv2d weight (OIHW).
    """
    N, H, W, Cin = x_nhwc.shape
    Cout, Cin_w, KH, KW = weight_oihw.shape
    assert Cin == Cin_w
    Ho, Wo = H - KH + 1, W - KW + 1

    # Pad Wo up to a multiple of 8 so in-kernel reshapes are layout-trivial and
    # the matmul M-dim (tile_h * Wo_pad) stays MXU friendly.
    Wo_pad = _round_up(Wo, 8)
    W_pad = Wo_pad + KW - 1

    if tile_h is None:
        tile_h = _pick_tile_h(Ho, Wo_pad, pool)

    if pool:
        assert tile_h % 2 == 0
        Hp, Wp = Ho // 2, Wo // 2
        THp = tile_h // 2
        Wp_pad = Wo_pad // 2
        n_tiles = pl.cdiv(Hp, THp)
    else:
        n_tiles = pl.cdiv(Ho, tile_h)
    H_pad = max(H, n_tiles * tile_h + KH - 1)

    # bf16 activations/weights, f32 bias/accumulator.  When pooling, fold the
    # 1/4 average into w and b: 0.25*leaky(z) == leaky(0.25*z).
    scale = 0.25 if pool else 1.0
    x = jnp.pad(x_nhwc, ((0, 0), (0, H_pad - H), (0, W_pad - W), (0, 0)))
    x = x.astype(jnp.bfloat16)
    w = jnp.transpose(weight_oihw, (2, 3, 1, 0)).reshape(KH, KW * Cin, Cout)
    w = (w * scale).astype(jnp.bfloat16)
    b = (bias * scale).astype(jnp.float32).reshape(1, Cout)

    if pool:
        out_shape = jax.ShapeDtypeStruct((N, Hp, Wp_pad, Cout), jnp.float32)
        out_spec = pl.BlockSpec((1, THp, Wp_pad, Cout), lambda n, t: (n, t, 0, 0))
        scratch_shapes = [pltpu.VMEM((tile_h, Wo_pad, Cout), jnp.float32),
                          pltpu.VMEM((tile_h, Wp_pad, Cout), jnp.float32)]
    else:
        out_shape = jax.ShapeDtypeStruct((N, Ho, Wo_pad, Cout), jnp.float32)
        out_spec = pl.BlockSpec((1, tile_h, Wo_pad, Cout), lambda n, t: (n, t, 0, 0))
        scratch_shapes = []

    kernel = functools.partial(_downblock_kernel, th=tile_h, wo_pad=Wo_pad,
                               kh=KH, kw=KW, cin=Cin, cout=Cout,
                               pool=pool, neg_slope=neg_slope)

    flops = 2 * N * n_tiles * tile_h * Wo_pad * KH * KW * Cin * Cout
    bytes_accessed = (x.size * 2 + w.size * 2 + b.size * 4
                      + int(np.prod(out_shape.shape)) * 4)
    cost = pl.CostEstimate(flops=flops, transcendentals=0,
                           bytes_accessed=bytes_accessed)

    # The input frame stays resident across the row-tile axis (constant block
    # index), so it is DMA'd once per batch element.
    # TODO(synk): for very large H, switch to true overlapping row-tile input
    # DMAs (manual make_async_copy) to bound VMEM independent of H.
    y = pl.pallas_call(
        kernel,
        out_shape=out_shape,
        grid=(N, n_tiles),
        in_specs=[
            pl.BlockSpec((1, H_pad, W_pad, Cin), lambda n, t: (n, 0, 0, 0)),
            pl.BlockSpec((KH, KW * Cin, Cout), lambda n, t: (0, 0, 0)),
            pl.BlockSpec((1, Cout), lambda n, t: (0, 0)),
        ],
        out_specs=out_spec,
        scratch_shapes=scratch_shapes,
        compiler_params=pltpu.CompilerParams(
            dimension_semantics=("parallel", "parallel"),
            vmem_limit_bytes=64 * 1024 * 1024),
        cost_estimate=cost,
    )(x, w, b)

    if pool:
        return y[:, :, :Wp, :]
    return y[:, :, :Wo, :]


def down_block_2d(x_nchw, weight_oihw, bias, *, pool=False, neg_slope=0.2):
    """NCHW wrapper for PyTorch parity (a full network should stay NHWC)."""
    x = jnp.transpose(x_nchw, (0, 2, 3, 1))
    y = down_block_2d_nhwc(x, weight_oihw, bias, pool=pool, neg_slope=neg_slope)
    return jnp.transpose(y, (0, 3, 1, 2))


def _reference_forward(x, w_sn, bias, pool):
    out = jax.lax.conv_general_dilated(
        x, w_sn, window_strides=(1, 1), padding='VALID',
        dimension_numbers=('NCHW', 'OIHW', 'NCHW'),
        precision=jax.lax.Precision.HIGHEST)
    out = out + bias.reshape(1, -1, 1, 1)
    out = jnp.where(out >= 0, out, 0.2 * out)
    if pool:
        out = jax.lax.reduce_window(out, 0.0, jax.lax.add,
                                    (1, 1, 2, 2), (1, 1, 2, 2), 'VALID') * 0.25
    return out


if __name__ == "__main__":
    key = jax.random.PRNGKey(0)
    kx, kw, kb = jax.random.split(key, 3)

    # small shapes consistent with the module
    N, Cin, H, W = 2, 4, 16, 16
    Cout, K = 8, 4

    x = jax.random.normal(kx, (N, Cin, H, W), jnp.float32)
    weight = jax.random.normal(kw, (Cout, Cin, K, K), jnp.float32) * 0.1
    bias = jax.random.normal(kb, (Cout,), jnp.float32) * 0.1

    # spectral norm: W / sigma_max (exact sigma == converged power iteration)
    sigma = np.linalg.svd(np.asarray(weight).reshape(Cout, -1),
                          compute_uv=False)[0]
    w_sn = weight / jnp.float32(sigma)

    # reference uses the same bf16-rounded inputs as the kernel
    xq = x.astype(jnp.bfloat16).astype(jnp.float32)
    wq = w_sn.astype(jnp.bfloat16).astype(jnp.float32)

    for pool in (False, True):
        out = jax.block_until_ready(down_block_2d(x, w_sn, bias, pool=pool))
        ref = _reference_forward(xq, wq, bias, pool)
        np.testing.assert_allclose(np.asarray(out), np.asarray(ref),
                                   rtol=2e-3, atol=2e-3)

    print("KERNEL_OK")
</pallas_src>

<mosaic_0001>
module attributes {stable_mosaic.version = 11 : i64} {
  func.func @_downblock_kernel(%arg0: i32, %arg1: i32, %arg2: memref<1x16x19x4xbf16, #tpu.memory_space<vmem>>, %arg3: memref<4x16x8xbf16, #tpu.memory_space<vmem>>, %arg4: memref<1x8xf32, #tpu.memory_space<vmem>>, %arg5: memref<1x13x16x8xf32, #tpu.memory_space<vmem>>) attributes {dimension_semantics = [#tpu.dimension_semantics<parallel>, #tpu.dimension_semantics<parallel>], iteration_bounds = array<i64: 2, 1>, scalar_prefetch = 0 : i64, scratch_operands = 0 : i64, tpu.core_type = #tpu.core_type<tc>, window_params = [{transform_indices = @transform_0, window_bounds = array<i64: 1, 16, 19, 4>}, {pipeline_mode = #tpu.pipeline_mode<synchronous>, transform_indices = @transform_1, window_bounds = array<i64: 4, 16, 8>}, {pipeline_mode = #tpu.pipeline_mode<synchronous>, transform_indices = @transform_2, window_bounds = array<i64: 1, 8>}, {transform_indices = @transform_3, window_bounds = array<i64: 1, 13, 16, 8>}]} {
    %c13_i32 = arith.constant 13 : i32
    %0 = arith.muli %arg1, %c13_i32 : i32
    %1 = tpu.assume_multiple %0, 13 : i32
    %cst = arith.constant 0.000000e+00 : f32
    %2 = vector.broadcast %cst : f32 to vector<208x8xf32>
    %c0_i32 = arith.constant 0 : i32
    %3 = arith.addi %1, %c0_i32 : i32
    %c0 = arith.constant 0 : index
    %4 = arith.index_cast %3 : i32 to index
    %c0_0 = arith.constant 0 : index
    %c0_1 = arith.constant 0 : index
    %5 = vector.load %arg2[%c0, %4, %c0_0, %c0_1] : memref<1x16x19x4xbf16, #tpu.memory_space<vmem>>, vector<1x13x16x4xbf16>
    %6 = vector.shape_cast %5 : vector<1x13x16x4xbf16> to vector<13x16x4xbf16>
    %c0_i32_2 = arith.constant 0 : i32
    %7 = arith.addi %1, %c0_i32_2 : i32
    %c0_3 = arith.constant 0 : index
    %8 = arith.index_cast %7 : i32 to index
    %c1 = arith.constant 1 : index
    %c0_4 = arith.constant 0 : index
    %9 = vector.load %arg2[%c0_3, %8, %c1, %c0_4] : memref<1x16x19x4xbf16, #tpu.memory_space<vmem>>, vector<1x13x16x4xbf16>
    %10 = vector.shape_cast %9 : vector<1x13x16x4xbf16> to vector<13x16x4xbf16>
    %c0_i32_5 = arith.constant 0 : i32
    %11 = arith.addi %1, %c0_i32_5 : i32
    %c0_6 = arith.constant 0 : index
    %12 = arith.index_cast %11 : i32 to index
    %c2 = arith.constant 2 : index
    %c0_7 = arith.constant 0 : index
    %13 = vector.load %arg2[%c0_6, %12, %c2, %c0_7] : memref<1x16x19x4xbf16, #tpu.memory_space<vmem>>, vector<1x13x16x4xbf16>
    %14 = vector.shape_cast %13 : vector<1x13x16x4xbf16> to vector<13x16x4xbf16>
    %c0_i32_8 = arith.constant 0 : i32
    %15 = arith.addi %1, %c0_i32_8 : i32
    %c0_9 = arith.constant 0 : index
    %16 = arith.index_cast %15 : i32 to index
    %c3 = arith.constant 3 : index
    %c0_10 = arith.constant 0 : index
    %17 = vector.load %arg2[%c0_9, %16, %c3, %c0_10] : memref<1x16x19x4xbf16, #tpu.memory_space<vmem>>, vector<1x13x16x4xbf16>
    %18 = vector.shape_cast %17 : vector<1x13x16x4xbf16> to vector<13x16x4xbf16>
    %19 = tpu.concatenate %6, %10, %14, %18 in 2 : vector<13x16x4xbf16>, vector<13x16x4xbf16>, vector<13x16x4xbf16>, vector<13x16x4xbf16> -> vector<13x16x16xbf16>
    %20 = vector.shape_cast %19 : vector<13x16x16xbf16> to vector<208x16xbf16>
    %c0_11 = arith.constant 0 : index
    %c0_12 = arith.constant 0 : index
    %c0_13 = arith.constant 0 : index
    %21 = vector.load %arg3[%c0_11, %c0_12, %c0_13] : memref<4x16x8xbf16, #tpu.memory_space<vmem>>, vector<1x16x8xbf16>
    %22 = vector.shape_cast %21 : vector<1x16x8xbf16> to vector<16x8xbf16>
    %cst_14 = arith.constant dense<0.000000e+00> : vector<208x8xf32>
    %23 = tpu.matmul %20, %22, %cst_14 {dimension_numbers = #tpu.dot_dimension_numbers<[1], [0], [0], [1], [0, 0, 1, 1], [], []>} : vector<208x16xbf16>, vector<16x8xbf16>, vector<208x8xf32> -> vector<208x8xf32>
    %24 = arith.addf %2, %23 : vector<208x8xf32>
    %c1_i32 = arith.constant 1 : i32
    %25 = arith.addi %1, %c1_i32 : i32
    %c0_15 = arith.constant 0 : index
    %26 = arith.index_cast %25 : i32 to index
    %c0_16 = arith.constant 0 : index
    %c0_17 = arith.constant 0 : index
    %27 = vector.load %arg2[%c0_15, %26, %c0_16, %c0_17] : memref<1x16x19x4xbf16, #tpu.memory_space<vmem>>, vector<1x13x16x4xbf16>
    %28 = vector.shape_cast %27 : vector<1x13x16x4xbf16> to vector<13x16x4xbf16>
    %c1_i32_18 = arith.constant 1 : i32
    %29 = arith.addi %1, %c1_i32_18 : i32
    %c0_19 = arith.constant 0 : index
    %30 = arith.index_cast %29 : i32 to index
    %c1_20 = arith.constant 1 : index
    %c0_21 = arith.constant 0 : index
    %31 = vector.load %arg2[%c0_19, %30, %c1_20, %c0_21] : memref<1x16x19x4xbf16, #tpu.memory_space<vmem>>, vector<1x13x16x4xbf16>
    %32 = vector.shape_cast %31 : vector<1x13x16x4xbf16> to vector<13x16x4xbf16>
    %c1_i32_22 = arith.constant 1 : i32
    %33 = arith.addi %1, %c1_i32_22 : i32
    %c0_23 = arith.constant 0 : index
    %34 = arith.index_cast %33 : i32 to index
    %c2_24 = arith.constant 2 : index
    %c0_25 = arith.constant 0 : index
    %35 = vector.load %arg2[%c0_23, %34, %c2_24, %c0_25] : memref<1x16x19x4xbf16, #tpu.memory_space<vmem>>, vector<1x13x16x4xbf16>
    %36 = vector.shape_cast %35 : vector<1x13x16x4xbf16> to vector<13x16x4xbf16>
    %c1_i32_26 = arith.constant 1 : i32
    %37 = arith.addi %1, %c1_i32_26 : i32
    %c0_27 = arith.constant 0 : index
    %38 = arith.index_cast %37 : i32 to index
    %c3_28 = arith.constant 3 : index
    %c0_29 = arith.constant 0 : index
    %39 = vector.load %arg2[%c0_27, %38, %c3_28, %c0_29] : memref<1x16x19x4xbf16, #tpu.memory_space<vmem>>, vector<1x13x16x4xbf16>
    %40 = vector.shape_cast %39 : vector<1x13x16x4xbf16> to vector<13x16x4xbf16>
    %41 = tpu.concatenate %28, %32, %36, %40 in 2 : vector<13x16x4xbf16>, vector<13x16x4xbf16>, vector<13x16x4xbf16>, vector<13x16x4xbf16> -> vector<13x16x16xbf16>
    %42 = vector.shape_cast %41 : vector<13x16x16xbf16> to vector<208x16xbf16>
    %c1_30 = arith.constant 1 : index
    %c0_31 = arith.constant 0 : index
    %c0_32 = arith.constant 0 : index
    %43 = vector.load %arg3[%c1_30, %c0_31, %c0_32] : memref<4x16x8xbf16, #tpu.memory_space<vmem>>, vector<1x16x8xbf16>
    %44 = vector.shape_cast %43 : vector<1x16x8xbf16> to vector<16x8xbf16>
    %cst_33 = arith.constant dense<0.000000e+00> : vector<208x8xf32>
    %45 = tpu.matmul %42, %44, %cst_33 {dimension_numbers = #tpu.dot_dimension_numbers<[1], [0], [0], [1], [0, 0, 1, 1], [], []>} : vector<208x16xbf16>, vector<16x8xbf16>, vector<208x8xf32> -> vector<208x8xf32>
    %46 = arith.addf %24, %45 : vector<208x8xf32>
    %c2_i32 = arith.constant 2 : i32
    %47 = arith.addi %1, %c2_i32 : i32
    %c0_34 = arith.constant 0 : index
    %48 = arith.index_cast %47 : i32 to index
    %c0_35 = arith.constant 0 : index
    %c0_36 = arith.constant 0 : index
    %49 = vector.load %arg2[%c0_34, %48, %c0_35, %c0_36] : memref<1x16x19x4xbf16, #tpu.memory_space<vmem>>, vector<1x13x16x4xbf16>
    %50 = vector.shape_cast %49 : vector<1x13x16x4xbf16> to vector<13x16x4xbf16>
    %c2_i32_37 = arith.constant 2 : i32
    %51 = arith.addi %1, %c2_i32_37 : i32
    %c0_38 = arith.constant 0 : index
    %52 = arith.index_cast %51 : i32 to index
    %c1_39 = arith.constant 1 : index
    %c0_40 = arith.constant 0 : index
    %53 = vector.load %arg2[%c0_38, %52, %c1_39, %c0_40] : memref<1x16x19x4xbf16, #tpu.memory_space<vmem>>, vector<1x13x16x4xbf16>
    %54 = vector.shape_cast %53 : vector<1x13x16x4xbf16> to vector<13x16x4xbf16>
    %c2_i32_41 = arith.constant 2 : i32
    %55 = arith.addi %1, %c2_i32_41 : i32
    %c0_42 = arith.constant 0 : index
    %56 = arith.index_cast %55 : i32 to index
    %c2_43 = arith.constant 2 : index
    %c0_44 = arith.constant 0 : index
    %57 = vector.load %arg2[%c0_42, %56, %c2_43, %c0_44] : memref<1x16x19x4xbf16, #tpu.memory_space<vmem>>, vector<1x13x16x4xbf16>
    %58 = vector.shape_cast %57 : vector<1x13x16x4xbf16> to vector<13x16x4xbf16>
    %c2_i32_45 = arith.constant 2 : i32
    %59 = arith.addi %1, %c2_i32_45 : i32
    %c0_46 = arith.constant 0 : index
    %60 = arith.index_cast %59 : i32 to index
    %c3_47 = arith.constant 3 : index
    %c0_48 = arith.constant 0 : index
    %61 = vector.load %arg2[%c0_46, %60, %c3_47, %c0_48] : memref<1x16x19x4xbf16, #tpu.memory_space<vmem>>, vector<1x13x16x4xbf16>
    %62 = vector.shape_cast %61 : vector<1x13x16x4xbf16> to vector<13x16x4xbf16>
    %63 = tpu.concatenate %50, %54, %58, %62 in 2 : vector<13x16x4xbf16>, vector<13x16x4xbf16>, vector<13x16x4xbf16>, vector<13x16x4xbf16> -> vector<13x16x16xbf16>
    %64 = vector.shape_cast %63 : vector<13x16x16xbf16> to vector<208x16xbf16>
    %c2_49 = arith.constant 2 : index
    %c0_50 = arith.constant 0 : index
    %c0_51 = arith.constant 0 : index
    %65 = vector.load %arg3[%c2_49, %c0_50, %c0_51] : memref<4x16x8xbf16, #tpu.memory_space<vmem>>, vector<1x16x8xbf16>
    %66 = vector.shape_cast %65 : vector<1x16x8xbf16> to vector<16x8xbf16>
    %cst_52 = arith.constant dense<0.000000e+00> : vector<208x8xf32>
    %67 = tpu.matmul %64, %66, %cst_52 {dimension_numbers = #tpu.dot_dimension_numbers<[1], [0], [0], [1], [0, 0, 1, 1], [], []>} : vector<208x16xbf16>, vector<16x8xbf16>, vector<208x8xf32> -> vector<208x8xf32>
    %68 = arith.addf %46, %67 : vector<208x8xf32>
    %c3_i32 = arith.constant 3 : i32
    %69 = arith.addi %1, %c3_i32 : i32
    %c0_53 = arith.constant 0 : index
    %70 = arith.index_cast %69 : i32 to index
    %c0_54 = arith.constant 0 : index
    %c0_55 = arith.constant 0 : index
    %71 = vector.load %arg2[%c0_53, %70, %c0_54, %c0_55] : memref<1x16x19x4xbf16, #tpu.memory_space<vmem>>, vector<1x13x16x4xbf16>
    %72 = vector.shape_cast %71 : vector<1x13x16x4xbf16> to vector<13x16x4xbf16>
    %c3_i32_56 = arith.constant 3 : i32
    %73 = arith.addi %1, %c3_i32_56 : i32
    %c0_57 = arith.constant 0 : index
    %74 = arith.index_cast %73 : i32 to index
    %c1_58 = arith.constant 1 : index
    %c0_59 = arith.constant 0 : index
    %75 = vector.load %arg2[%c0_57, %74, %c1_58, %c0_59] : memref<1x16x19x4xbf16, #tpu.memory_space<vmem>>, vector<1x13x16x4xbf16>
    %76 = vector.shape_cast %75 : vector<1x13x16x4xbf16> to vector<13x16x4xbf16>
    %c3_i32_60 = arith.constant 3 : i32
    %77 = arith.addi %1, %c3_i32_60 : i32
    %c0_61 = arith.constant 0 : index
    %78 = arith.index_cast %77 : i32 to index
    %c2_62 = arith.constant 2 : index
    %c0_63 = arith.constant 0 : index
    %79 = vector.load %arg2[%c0_61, %78, %c2_62, %c0_63] : memref<1x16x19x4xbf16, #tpu.memory_space<vmem>>, vector<1x13x16x4xbf16>
    %80 = vector.shape_cast %79 : vector<1x13x16x4xbf16> to vector<13x16x4xbf16>
    %c3_i32_64 = arith.constant 3 : i32
    %81 = arith.addi %1, %c3_i32_64 : i32
    %c0_65 = arith.constant 0 : index
    %82 = arith.index_cast %81 : i32 to index
    %c3_66 = arith.constant 3 : index
    %c0_67 = arith.constant 0 : index
    %83 = vector.load %arg2[%c0_65, %82, %c3_66, %c0_67] : memref<1x16x19x4xbf16, #tpu.memory_space<vmem>>, vector<1x13x16x4xbf16>
    %84 = vector.shape_cast %83 : vector<1x13x16x4xbf16> to vector<13x16x4xbf16>
    %85 = tpu.concatenate %72, %76, %80, %84 in 2 : vector<13x16x4xbf16>, vector<13x16x4xbf16>, vector<13x16x4xbf16>, vector<13x16x4xbf16> -> vector<13x16x16xbf16>
    %86 = vector.shape_cast %85 : vector<13x16x16xbf16> to vector<208x16xbf16>
    %c3_68 = arith.constant 3 : index
    %c0_69 = arith.constant 0 : index
    %c0_70 = arith.constant 0 : index
    %87 = vector.load %arg3[%c3_68, %c0_69, %c0_70] : memref<4x16x8xbf16, #tpu.memory_space<vmem>>, vector<1x16x8xbf16>
    %88 = vector.shape_cast %87 : vector<1x16x8xbf16> to vector<16x8xbf16>
    %cst_71 = arith.constant dense<0.000000e+00> : vector<208x8xf32>
    %89 = tpu.matmul %86, %88, %cst_71 {dimension_numbers = #tpu.dot_dimension_numbers<[1], [0], [0], [1], [0, 0, 1, 1], [], []>} : vector<208x16xbf16>, vector<16x8xbf16>, vector<208x8xf32> -> vector<208x8xf32>
    %90 = arith.addf %68, %89 : vector<208x8xf32>
    %c0_72 = arith.constant 0 : index
    %c0_73 = arith.constant 0 : index
    %91 = vector.load %arg4[%c0_72, %c0_73] : memref<1x8xf32, #tpu.memory_space<vmem>>, vector<1x8xf32>
    %92 = vector.broadcast %91 : vector<1x8xf32> to vector<208x8xf32>
    %93 = arith.addf %90, %92 : vector<208x8xf32>
    %cst_74 = arith.constant 0.000000e+00 : f32
    %94 = vector.broadcast %cst_74 : f32 to vector<208x8xf32>
    %95 = arith.cmpf oge, %93, %94 : vector<208x8xf32>
    %cst_75 = arith.constant 2.000000e-01 : f32
    %96 = vector.broadcast %cst_75 : f32 to vector<208x8xf32>
    %97 = arith.mulf %96, %93 : vector<208x8xf32>
    %98 = arith.select %95, %93, %97 : vector<208x8xi1>, vector<208x8xf32>
    %99 = vector.shape_cast %98 : vector<208x8xf32> to vector<13x16x8xf32>
    %c0_76 = arith.constant 0 : index
    %c0_77 = arith.constant 0 : index
    %c0_78 = arith.constant 0 : index
    %c0_79 = arith.constant 0 : index
    %100 = vector.load %arg5[%c0_76, %c0_77, %c0_78, %c0_79] : memref<1x13x16x8xf32, #tpu.memory_space<vmem>>, vector<1x13x16x8xf32>
    %101 = vector.shape_cast %100 : vector<1x13x16x8xf32> to vector<13x16x8xf32>
    %102 = vector.shape_cast %99 : vector<13x16x8xf32> to vector<1x13x16x8xf32>
    tpu.vector_store %arg5[%c0_76, %c0_77, %c0_78, %c0_79], %102 {strides = array<i32>} : memref<1x13x16x8xf32, #tpu.memory_space<vmem>>, vector<1x13x16x8xf32>,
    return
  }
  func.func @transform_0(%arg0: i32, %arg1: i32) -> (i32, i32, i32, i32) {
    %c0_i32 = arith.constant 0 : i32
    %c0_i32_0 = arith.constant 0 : i32
    %c0_i32_1 = arith.constant 0 : i32
    %c0_i32_2 = arith.constant 0 : i32
    return %arg0, %c0_i32, %c0_i32_0, %c0_i32_1 : i32, i32, i32, i32
  }
  func.func @transform_1(%arg0: i32, %arg1: i32) -> (i32, i32, i32) {
    %c0_i32 = arith.constant 0 : i32
    %c0_i32_0 = arith.constant 0 : i32
    %c0_i32_1 = arith.constant 0 : i32
    %c0_i32_2 = arith.constant 0 : i32
    return %c0_i32, %c0_i32_0, %c0_i32_1 : i32, i32, i32
  }
  func.func @transform_2(%arg0: i32, %arg1: i32) -> (i32, i32) {
    %c0_i32 = arith.constant 0 : i32
    %c0_i32_0 = arith.constant 0 : i32
    %c0_i32_1 = arith.constant 0 : i32
    return %c0_i32, %c0_i32_0 : i32, i32
  }
  func.func @transform_3(%arg0: i32, %arg1: i32) -> (i32, i32, i32, i32) {
    %c0_i32 = arith.constant 0 : i32
    %c0_i32_0 = arith.constant 0 : i32
    %c0_i32_1 = arith.constant 0 : i32
    return %arg0, %arg1, %c0_i32, %c0_i32_0 : i32, i32, i32, i32
  }
}

</mosaic_0001>

<llo_original>
// kernel: tpu_custom_call.1
$region0: #{tpu_custom_call.1}
  #allocation0 [shape = 'u32[]', space=smem, size = 0x4, offset = 0x4, fixed_abs, tag = 'smem constant byte address 0x4 - core index']
  #allocation1 [shape = 'u32[144,128]{1,0:T(1,128)}', space=vmem, size = 0x12000, scoped, tag = 'internal scratch']
  %s0 = inlined_call_operand.hbm [shape: bf16[2,16,19,4], index: 0, kind: input, shape index: {}]
  %s1 = inlined_call_operand.hbm [shape: bf16[4,16,8], index: 1, kind: input, shape index: {}]
  %s2 = inlined_call_operand.hbm [shape: f32[1,8], index: 2, kind: input, shape index: {}]
  %s3 = inlined_call_operand.hbm [shape: f32[2,13,16,8], index: 3, kind: output, shape index: {}]
  %s4 = sld [smem:[#allocation0]]
  $region57: #{tpu_custom_call.1} parent=0
    _
  %s6 = ssub.s32 1, %s4
  %s7 = scalar_select 0, %s6, %s4
  $region1: #{tpu_custom_call.1} parent=0
    #allocation2 [shape = 'u8[196608]{0}', space=vmem, size = 0x30000, scoped, tag = 'input window, operand 0']
    #allocation3 [shape = 's32[2]{0}', space=sflag, size = 0x8, scoped, tag = 'scoped memory for tpu_custom_call.1']
    #allocation4 [shape = 's32[2]{0}', space=sflag, size = 0x8, scoped, tag = 'scoped memory for tpu_custom_call.1']
    #allocation5 [shape = 'u8[16384]{0}', space=vmem, size = 0x4000, scoped, tag = 'input window, operand 1, single buffered']
    #allocation6 [shape = 's32[1]{0}', space=sflag, size = 0x4, scoped, tag = 'scoped memory for tpu_custom_call.1']
    #allocation7 [shape = 'u8[512]{0}', space=vmem, size = 0x400, scoped, tag = 'input window, operand 2, single buffered']
    #allocation8 [shape = 'u8[212992]{0}', space=vmem, size = 0x34000, scoped, tag = 'output window, operand 0']
    %8 = vsyncpa [#allocation3], 0
    %s9 = scalar_lea.sflag [#allocation3], 1
    %10 = vsyncpa %s9, 0
    %11 = vsyncpa [#allocation6], 0
    %12 = vsyncpa [#allocation4], 0
    %s13 = scalar_lea.sflag [#allocation4], 1
    %14 = vsyncpa %s13, 0
    loop: start=0, step=1, limit=4
    $region2: #{tpu_custom_call.1} parent=1 // loop_pre_header
      _
    $region3: #{tpu_custom_call.1} parent=1 // loop_header
      %s16 = sphi 0, %s20
      %p17 = scmp.ge.s32.totalorder %s16, 4
      %s23 = sphi 0, %s35
      %s24 = sphi 0, %s31
      %s25 = sphi 0, %s23
      %s26 = sphi 0, %s24
      %s27 = sphi 0, %s25
      %s28 = sphi 0, %s26
      %s38 = sphi 0, %s40
      %s41 = sphi 0, %s38
      %s42 = sphi 0, %s41
      %s58 = sphi 0, %s42
      %s62 = sphi 0, %s62
      %s64 = sphi 0, %s62
      %s65 = sphi 0, %s64
      %s79 = sphi 0, %s65
      %s83 = sphi 0, %s83
      %s85 = sphi 0, %s83
      %s86 = sphi 0, %s85
      %s100 = sphi 0, %s86
      %s108 = sphi 0, %s110
      %s111 = sphi 0, %s108
      %s112 = sphi 0, %s111
      %s128 = sphi 0, %s112
    $region4: #{tpu_custom_call.1} parent=1 // loop_header_branch
      %19 = sbr.rel (%p17) target = $region8
    $region5: #{tpu_custom_call.1} parent=1 // loop_body
      %s21 = ssub.s32 %s16, 1
      %s22 = ssub.s32 %s16, 2
      %s29 = sadd.s32 1, %s24
      %p30 = scmp.ge.s32.totalorder %s29, 1
      %s31 = scalar_select %p30, 0, %s29
      %s32 = sadd.s32 1, %s23
      %s33 = scalar_select %p30, %s32, %s23
      %p34 = scmp.ge.s32.totalorder %s33, 2
      %s35 = scalar_select %p34, 0, %s33
      %s36 = ssub.s32 %s23, %s35
      %p37 = scmp.eq.s32.totalorder %s36, 0
      %s39 = sadd.s32 %s38, 1
      %s40 = scalar_select %p37, %s38, %s39
      %p43 = pneg %p37
      %p44 = scmp.eq.s32.totalorder %s16, 1
      %p45 = por %p43, %p44
      %p46 = scmp.ne.s32.totalorder %s38, %s41
      %p47 = scmp.eq.s32.totalorder %s16, 0
      %p48 = por %p46, %p47
      %p49 = scmp.ne.s32.totalorder %s38, %s41
      %p50 = scmp.eq.s32.totalorder %s21, 1
      %p51 = por %p49, %p50
      %p52 = scmp.ne.s32.totalorder %s41, %s42
      %p53 = scmp.eq.s32.totalorder %s21, 0
      %p54 = por %p52, %p53
      %p55 = scmp.ne.s32.totalorder %s41, %s42
      %p56 = scmp.eq.s32.totalorder %s22, 1
      %p57 = por %p55, %p56
      %p59 = scmp.ne.s32.totalorder %s42, %s58
      %p60 = scmp.eq.s32.totalorder %s22, 0
      %p61 = por %p59, %p60
      %s63 = sadd.s32 %s62, 1
      %p66 = scmp.eq.s32.totalorder %s16, 1
      %p67 = scmp.ne.s32.totalorder %s62, %s64
      %p68 = scmp.eq.s32.totalorder %s16, 0
      %p69 = por %p67, %p68
      %p70 = scmp.ne.s32.totalorder %s62, %s64
      %p71 = scmp.eq.s32.totalorder %s21, 1
      %p72 = por %p70, %p71
      %p73 = scmp.ne.s32.totalorder %s64, %s65
      %p74 = scmp.eq.s32.totalorder %s21, 0
      %p75 = por %p73, %p74
      %p76 = scmp.ne.s32.totalorder %s64, %s65
      %p77 = scmp.eq.s32.totalorder %s22, 1
      %p78 = por %p76, %p77
      %p80 = scmp.ne.s32.totalorder %s65, %s79
      %p81 = scmp.eq.s32.totalorder %s22, 0
      %p82 = por %p80, %p81
      %s84 = sadd.s32 %s83, 1
      %p87 = scmp.eq.s32.totalorder %s16, 1
      %p88 = scmp.ne.s32.totalorder %s83, %s85
      %p89 = scmp.eq.s32.totalorder %s16, 0
      %p90 = por %p88, %p89
      %p91 = scmp.ne.s32.totalorder %s83, %s85
      %p92 = scmp.eq.s32.totalorder %s21, 1
      %p93 = por %p91, %p92
      %p94 = scmp.ne.s32.totalorder %s85, %s86
      %p95 = scmp.eq.s32.totalorder %s21, 0
      %p96 = por %p94, %p95
      %p97 = scmp.ne.s32.totalorder %s85, %s86
      %p98 = scmp.eq.s32.totalorder %s22, 1
      %p99 = por %p97, %p98
      %p101 = scmp.ne.s32.totalorder %s86, %s100
      %p102 = scmp.eq.s32.totalorder %s22, 0
      %p103 = por %p101, %p102
      %s104 = ssub.s32 %s23, %s35
      %s105 = ssub.s32 %s24, %s31
      %s106 = sor.u32 %s104, %s105
      %p107 = scmp.eq.s32.totalorder %s106, 0
      %s109 = sadd.s32 %s108, 1
      %s110 = scalar_select %p107, %s108, %s109
      %p113 = pneg %p107
      %p114 = scmp.eq.s32.totalorder %s16, 1
      %p115 = por %p113, %p114
      %p116 = scmp.ne.s32.totalorder %s108, %s111
      %p117 = scmp.eq.s32.totalorder %s16, 0
      %p118 = por %p116, %p117
      %p119 = scmp.ne.s32.totalorder %s108, %s111
      %p120 = scmp.eq.s32.totalorder %s21, 1
      %p121 = por %p119, %p120
      %p122 = scmp.ne.s32.totalorder %s111, %s112
      %p123 = scmp.eq.s32.totalorder %s21, 0
      %p124 = por %p122, %p123
      %p125 = scmp.ne.s32.totalorder %s111, %s112
      %p126 = scmp.eq.s32.totalorder %s22, 1
      %p127 = por %p125, %p126
      %p129 = scmp.ne.s32.totalorder %s112, %s128
      %p130 = scmp.eq.s32.totalorder %s22, 0
      %p131 = por %p129, %p130
      %p132 = scmp.le.s32.totalorder 1, %s16
      %p133 = scmp.lt.s32.totalorder %s16, 3
      %p134 = pnand %p132, %p133
      %p135 = pneg %p134
      // Predicated region
      $region9: #{tpu_custom_call.1} parent=5 // pred_check
        _
      $region10: #{tpu_custom_call.1} parent=5 // pred_check_branch
        %137 = sbr.rel (%p134) target = $region12
      $region11: #{tpu_custom_call.1} parent=5 // pred_region
        %s138 = ssub.s32 %s16, 1
        // Predicated region
        $region13: #{tpu_custom_call.1} parent=11 // pred_check
          %p139 = pneg %p75
        $region14: #{tpu_custom_call.1} parent=11 // pred_check_branch
          %141 = sbr.rel (%p139) target = $region16
        $region15: #{tpu_custom_call.1} parent=11 // pred_region
          %s143 = ssub.s32 512, 512
          %144 = vsyncadd [#allocation6], %s143
          %s145 = sshll.u32 [#allocation5], 4
          %s146 = int_to_ptr.vmem [resolvable:$true] %s145
          %151 = dma.hbm_to_vmem [thread:$0]  %s1, 512, %s146, [#allocation6], 64, 64, 4
        $region16: #{tpu_custom_call.1} parent=11 // pred_fallthru
          _
        // Predicated region
        $region17: #{tpu_custom_call.1} parent=11 // pred_check
          %p152 = pneg %p96
        $region18: #{tpu_custom_call.1} parent=11 // pred_check_branch
          %154 = sbr.rel (%p152) target = $region20
        $region19: #{tpu_custom_call.1} parent=11 // pred_region
          %s156 = ssub.s32 16, 16
          %157 = vsyncadd [#allocation6], %s156
          %s159 = sshll.u32 [#allocation7], 4
          %s160 = int_to_ptr.vmem [resolvable:$true] %s159
          %162 = dma.hbm_to_vmem [thread:$0]  %s2, 16, %s160, [#allocation6]
        $region20: #{tpu_custom_call.1} parent=11 // pred_fallthru
          _
      $region12: #{tpu_custom_call.1} parent=5 // pred_fallthru
        _
      %p163 = scmp.lt.s32.totalorder %s16, 2
      // Predicated region
      $region21: #{tpu_custom_call.1} parent=5 // pred_check
        %p164 = pneg %p163
      $region22: #{tpu_custom_call.1} parent=5 // pred_check_branch
        %166 = sbr.rel (%p164) target = $region24
      $region23: #{tpu_custom_call.1} parent=5 // pred_region
        // Predicated region
        $region25: #{tpu_custom_call.1} parent=23 // pred_check
          %p167 = pneg %p48
        $region26: #{tpu_custom_call.1} parent=23 // pred_check_branch
          %169 = sbr.rel (%p167) target = $region28
        $region27: #{tpu_custom_call.1} parent=23 // pred_region
          %s170 = sand.u32 %s38, 1
          %s171 = scalar_lea.sflag [#allocation3], %s170
          %s172 = sand.u32 %s38, 1
          %s173 = smul.addr %s172, 192
          %s174 = scalar_lea.vmem [#allocation2], %s173
          %s176 = ssub.s32 3072, 3072
          %177 = vsyncadd %s171, %s176
          %s178 = smul.addr %s23, 48
          %s179 = smul.addr %s178, 64
          %s180 = scalar_lea.hbm %s0, %s179
          %s181 = sshll.u32 %s174, 4
          %s182 = int_to_ptr.vmem [resolvable:$true] %s181
          %187 = dma.hbm_to_vmem [thread:$0]  %s180, 3072, %s182, %s171, 64, 64, 4
        $region28: #{tpu_custom_call.1} parent=23 // pred_fallthru
          _
      $region24: #{tpu_custom_call.1} parent=5 // pred_fallthru
        _
      %p188 = scmp.le.s32.totalorder 1, %s16
      %p189 = scmp.lt.s32.totalorder %s16, 3
      %p190 = pnand %p188, %p189
      %p191 = pneg %p190
      // Predicated region
      $region29: #{tpu_custom_call.1} parent=5 // pred_check
        _
      $region30: #{tpu_custom_call.1} parent=5 // pred_check_branch
        %193 = sbr.rel (%p190) target = $region32
      $region31: #{tpu_custom_call.1} parent=5 // pred_region
        %s194 = ssub.s32 %s16, 1
        %s195 = sand.u32 %s41, 1
        %s196 = scalar_lea.sflag [#allocation3], %s195
        %s197 = sand.u32 %s41, 1
        %s198 = smul.addr %s197, 192
        %s199 = scalar_lea.vmem [#allocation2], %s198
        // Predicated region
        $region33: #{tpu_custom_call.1} parent=31 // pred_check
          %p200 = pneg %p54
        $region34: #{tpu_custom_call.1} parent=31 // pred_check_branch
          %202 = sbr.rel (%p200) target = $region36
        $region35: #{tpu_custom_call.1} parent=31 // pred_region
          %203 = dma.done %s196, 3072
        $region36: #{tpu_custom_call.1} parent=31 // pred_fallthru
          _
        // Predicated region
        $region37: #{tpu_custom_call.1} parent=31 // pred_check
          %p204 = pneg %p75
        $region38: #{tpu_custom_call.1} parent=31 // pred_check_branch
          %206 = sbr.rel (%p204) target = $region40
        $region39: #{tpu_custom_call.1} parent=31 // pred_region
          %207 = dma.done [#allocation6], 512
        $region40: #{tpu_custom_call.1} parent=31 // pred_fallthru
          _
        // Predicated region
        $region41: #{tpu_custom_call.1} parent=31 // pred_check
          %p208 = pneg %p96
        $region42: #{tpu_custom_call.1} parent=31 // pred_check_branch
          %210 = sbr.rel (%p208) target = $region44
        $region43: #{tpu_custom_call.1} parent=31 // pred_region
          %211 = dma.done [#allocation6], 16
        $region44: #{tpu_custom_call.1} parent=31 // pred_fallthru
          _
        %s212 = sand.u32 %s41, 1
        %s213 = scalar_lea.sflag [#allocation3], %s212
        %s214 = sand.u32 %s41, 1
        %s215 = smul.addr %s214, 192
        %s216 = scalar_lea.vmem [#allocation2], %s215
        %p217 = pneg %p54
        %p218 = pneg %p51
        %p219 = pneg %p75
        %p220 = pneg %p72
        %p221 = pneg %p96
        %p222 = pneg %p93
        %p223 = pneg %p124
        %p224 = pneg %p121
        %s225 = sand.u32 %s111, 1
        %s226 = scalar_lea.sflag [#allocation4], %s225
        %s227 = sand.u32 %s111, 1
        %s228 = smul.addr %s227, 208
        %s229 = scalar_lea.vmem [#allocation8], %s228
        %s230 = smul.u32 13, %s26
        %s232 = smul.u32 %s26, 13
        %s233 = smul.u32 %s232, 3
        %s234 = smul.addr %s233, 4
        %s235 = scalar_lea.vmem %s199, %s234 [#allocation2]
        %v236 = vld [vmem:[%s235] sm:$0xf]
        %v237 = vld [vmem:[%s235 + $0x4] sm:$0xf]
        %v238 = vld [vmem:[%s235 + $0xc] sm:$0xf]
        %v239 = vld [vmem:[%s235 + $0x10] sm:$0xf]
        %v240 = vld [vmem:[%s235 + $0x18] sm:$0xf]
        %v241 = vld [vmem:[%s235 + $0x1c] sm:$0xf]
        %v242 = vld [vmem:[%s235 + $0x24] sm:$0xf]
        %v243 = vld [vmem:[%s235 + $0x28] sm:$0xf]
        %v244 = vld [vmem:[%s235 + $0x30] sm:$0xf]
        %v245 = vld [vmem:[%s235 + $0x34] sm:$0xf]
        %v246 = vld [vmem:[%s235 + $0x3c] sm:$0xf]
        %v247 = vld [vmem:[%s235 + $0x40] sm:$0xf]
        %v248 = vld [vmem:[%s235 + $0x48] sm:$0xf]
        %v249 = vld [vmem:[%s235 + $0x4c] sm:$0xf]
        %v250 = vld [vmem:[%s235 + $0x54] sm:$0xf]
        %v251 = vld [vmem:[%s235 + $0x58] sm:$0xf]
        %v252 = vld [vmem:[%s235 + $0x60] sm:$0xf]
        %v253 = vld [vmem:[%s235 + $0x64] sm:$0xf]
        %v254 = vld [vmem:[%s235 + $0x6c] sm:$0xf]
        %v255 = vld [vmem:[%s235 + $0x70] sm:$0xf]
        %v256 = vld [vmem:[%s235 + $0x78] sm:$0xf]
        %v257 = vld [vmem:[%s235 + $0x7c] sm:$0xf]
        %v258 = vld [vmem:[%s235 + $0x84] sm:$0xf]
        %v259 = vld [vmem:[%s235 + $0x88] sm:$0xf]
        %v260 = vld [vmem:[%s235 + $0x90] sm:$0xf]
        %v261 = vld [vmem:[%s235 + $0x94] sm:$0xf]
        %v262 = vld [vmem:[%s235 + $0x8] sm:$0x1]
        %v263 = vld [vmem:[%s235 + $0x14] sm:$0x1]
        %v264 = vld [vmem:[%s235 + $0x20] sm:$0x1]
        %v265 = vld [vmem:[%s235 + $0x2c] sm:$0x1]
        %v266 = vld [vmem:[%s235 + $0x38] sm:$0x1]
        %v267 = vld [vmem:[%s235 + $0x44] sm:$0x1]
        %v268 = vld [vmem:[%s235 + $0x50] sm:$0x1]
        %v269 = vld [vmem:[%s235 + $0x5c] sm:$0x1]
        %v270 = vld [vmem:[%s235 + $0x68] sm:$0x1]
        %v271 = vld [vmem:[%s235 + $0x74] sm:$0x1]
        %v272 = vld [vmem:[%s235 + $0x80] sm:$0x1]
        %v273 = vld [vmem:[%s235 + $0x8c] sm:$0x1]
        %v274 = vld [vmem:[%s235 + $0x98] sm:$0x1]
        %v275 = vld [vmem:[%s235] sm:$0xe]
        %v276 = vld [vmem:[%s235 + $0xc] sm:$0xe]
        %v277 = vld [vmem:[%s235 + $0x18] sm:$0xe]
        %v278 = vld [vmem:[%s235 + $0x24] sm:$0xe]
        %v279 = vld [vmem:[%s235 + $0x30] sm:$0xe]
        %v280 = vld [vmem:[%s235 + $0x3c] sm:$0xe]
        %v281 = vld [vmem:[%s235 + $0x48] sm:$0xe]
        %v282 = vld [vmem:[%s235 + $0x54] sm:$0xe]
        %v283 = vld [vmem:[%s235 + $0x60] sm:$0xe]
        %v284 = vld [vmem:[%s235 + $0x6c] sm:$0xe]
        %v285 = vld [vmem:[%s235 + $0x78] sm:$0xe]
        %v286 = vld [vmem:[%s235 + $0x84] sm:$0xe]
        %v287 = vld [vmem:[%s235 + $0x90] sm:$0xe]
        %v288 = vld [vmem:[%s235 + $0x8] sm:$0x3]
        %v289 = vld [vmem:[%s235 + $0x14] sm:$0x3]
        %v290 = vld [vmem:[%s235 + $0x20] sm:$0x3]
        %v291 = vld [vmem:[%s235 + $0x2c] sm:$0x3]
        %v292 = vld [vmem:[%s235 + $0x38] sm:$0x3]
        %v293 = vld [vmem:[%s235 + $0x44] sm:$0x3]
        %v294 = vld [vmem:[%s235 + $0x50] sm:$0x3]
        %v295 = vld [vmem:[%s235 + $0x5c] sm:$0x3]
        %v296 = vld [vmem:[%s235 + $0x68] sm:$0x3]
        %v297 = vld [vmem:[%s235 + $0x74] sm:$0x3]
        %v298 = vld [vmem:[%s235 + $0x80] sm:$0x3]
        %v299 = vld [vmem:[%s235 + $0x8c] sm:$0x3]
        %v300 = vld [vmem:[%s235 + $0x98] sm:$0x3]
        %v327 = vunpack.c.l.b16 %v236
        %v328 = vunpack.c.l.b16 %v237
        %v329 = vunpack.c.l.b16 %v238
        %v330 = vunpack.c.l.b16 %v239
        %v331 = vunpack.c.l.b16 %v240
        %v332 = vunpack.c.l.b16 %v241
        %v333 = vunpack.c.l.b16 %v242
        %v334 = vunpack.c.l.b16 %v243
        %v335 = vunpack.c.l.b16 %v244
        %v336 = vunpack.c.l.b16 %v245
        %v337 = vunpack.c.l.b16 %v246
        %v338 = vunpack.c.l.b16 %v247
        %v339 = vunpack.c.l.b16 %v248
        %v340 = vunpack.c.l.b16 %v249
        %v341 = vunpack.c.l.b16 %v250
        %v342 = vunpack.c.l.b16 %v251
        %v343 = vunpack.c.l.b16 %v252
        %v344 = vunpack.c.l.b16 %v253
        %v345 = vunpack.c.l.b16 %v254
        %v346 = vunpack.c.l.b16 %v255
        %v347 = vunpack.c.l.b16 %v256
        %v348 = vunpack.c.l.b16 %v257
        %v349 = vunpack.c.l.b16 %v258
        %v350 = vunpack.c.l.b16 %v259
        %v351 = vunpack.c.l.b16 %v260
        %v352 = vunpack.c.l.b16 %v261
        %v353 = vpack.c.b16 %v328, %v327
        %v354 = vpack.c.b16 %v330, %v329
        %v355 = vpack.c.b16 %v332, %v331
        %v356 = vpack.c.b16 %v334, %v333
        %v357 = vpack.c.b16 %v336, %v335
        %v358 = vpack.c.b16 %v338, %v337
        %v359 = vpack.c.b16 %v340, %v339
        %v360 = vpack.c.b16 %v342, %v341
        %v361 = vpack.c.b16 %v344, %v343
        %v362 = vpack.c.b16 %v346, %v345
        %v363 = vpack.c.b16 %v348, %v347
        %v364 = vpack.c.b16 %v350, %v349
        %v365 = vpack.c.b16 %v352, %v351
        %v379 = vunpack.c.l.b16 %v262
        %v380 = vunpack.c.l.b16 %v263
        %v381 = vunpack.c.l.b16 %v264
        %v382 = vunpack.c.l.b16 %v265
        %v383 = vunpack.c.l.b16 %v266
        %v384 = vunpack.c.l.b16 %v267
        %v385 = vunpack.c.l.b16 %v268
        %v386 = vunpack.c.l.b16 %v269
        %v387 = vunpack.c.l.b16 %v270
        %v388 = vunpack.c.l.b16 %v271
        %v389 = vunpack.c.l.b16 %v272
        %v390 = vunpack.c.l.b16 %v273
        %v391 = vunpack.c.l.b16 %v274
        %v392 = vpack.c.b16 %v379, %v379
        %v393 = vpack.c.b16 %v380, %v380
        %v394 = vpack.c.b16 %v381, %v381
        %v395 = vpack.c.b16 %v382, %v382
        %v396 = vpack.c.b16 %v383, %v383
        %v397 = vpack.c.b16 %v384, %v384
        %v398 = vpack.c.b16 %v385, %v385
        %v399 = vpack.c.b16 %v386, %v386
        %v400 = vpack.c.b16 %v387, %v387
        %v401 = vpack.c.b16 %v388, %v388
        %v402 = vpack.c.b16 %v389, %v389
        %v403 = vpack.c.b16 %v390, %v390
        %v404 = vpack.c.b16 %v391, %v391
        %vm405 = vsmask.f32 7424
        %v407 = vshrl.u32 %v353, 16
        %v409 = vshll.u32 %v353, 16
        %v411 = vrot.slane %v409, 1
        %v412 = vor.u32 %v407, %v411
        %v414 = vshll.u32 %v392, 16
        %v416 = vrot.slane %v414, 1
        %v417 = vsel %vm405, %v412, %v416
        %v419 = vshrl.u32 %v354, 16
        %v421 = vshll.u32 %v354, 16
        %v423 = vrot.slane %v421, 1
        %v424 = vor.u32 %v419, %v423
        %v426 = vshll.u32 %v393, 16
        %v428 = vrot.slane %v426, 1
        %v429 = vsel %vm405, %v424, %v428
        %v431 = vshrl.u32 %v355, 16
        %v433 = vshll.u32 %v355, 16
        %v435 = vrot.slane %v433, 1
        %v436 = vor.u32 %v431, %v435
        %v438 = vshll.u32 %v394, 16
        %v440 = vrot.slane %v438, 1
        %v441 = vsel %vm405, %v436, %v440
        %v443 = vshrl.u32 %v356, 16
        %v445 = vshll.u32 %v356, 16
        %v447 = vrot.slane %v445, 1
        %v448 = vor.u32 %v443, %v447
        %v450 = vshll.u32 %v395, 16
        %v452 = vrot.slane %v450, 1
        %v453 = vsel %vm405, %v448, %v452
        %v455 = vshrl.u32 %v357, 16
        %v457 = vshll.u32 %v357, 16
        %v459 = vrot.slane %v457, 1
        %v460 = vor.u32 %v455, %v459
        %v462 = vshll.u32 %v396, 16
        %v464 = vrot.slane %v462, 1
        %v465 = vsel %vm405, %v460, %v464
        %v467 = vshrl.u32 %v358, 16
        %v469 = vshll.u32 %v358, 16
        %v471 = vrot.slane %v469, 1
        %v472 = vor.u32 %v467, %v471
        %v474 = vshll.u32 %v397, 16
        %v476 = vrot.slane %v474, 1
        %v477 = vsel %vm405, %v472, %v476
        %v479 = vshrl.u32 %v359, 16
        %v481 = vshll.u32 %v359, 16
        %v483 = vrot.slane %v481, 1
        %v484 = vor.u32 %v479, %v483
        %v486 = vshll.u32 %v398, 16
        %v488 = vrot.slane %v486, 1
        %v489 = vsel %vm405, %v484, %v488
        %v491 = vshrl.u32 %v360, 16
        %v493 = vshll.u32 %v360, 16
        %v495 = vrot.slane %v493, 1
        %v496 = vor.u32 %v491, %v495
        %v498 = vshll.u32 %v399, 16
        %v500 = vrot.slane %v498, 1
        %v501 = vsel %vm405, %v496, %v500
        %v503 = vshrl.u32 %v361, 16
        %v505 = vshll.u32 %v361, 16
        %v507 = vrot.slane %v505, 1
        %v508 = vor.u32 %v503, %v507
        %v510 = vshll.u32 %v400, 16
        %v512 = vrot.slane %v510, 1
        %v513 = vsel %vm405, %v508, %v512
        %v515 = vshrl.u32 %v362, 16
        %v517 = vshll.u32 %v362, 16
        %v519 = vrot.slane %v517, 1
        %v520 = vor.u32 %v515, %v519
        %v522 = vshll.u32 %v401, 16
        %v524 = vrot.slane %v522, 1
        %v525 = vsel %vm405, %v520, %v524
        %v527 = vshrl.u32 %v363, 16
        %v529 = vshll.u32 %v363, 16
        %v531 = vrot.slane %v529, 1
        %v532 = vor.u32 %v527, %v531
        %v534 = vshll.u32 %v402, 16
        %v536 = vrot.slane %v534, 1
        %v537 = vsel %vm405, %v532, %v536
        %v539 = vshrl.u32 %v364, 16
        %v541 = vshll.u32 %v364, 16
        %v543 = vrot.slane %v541, 1
        %v544 = vor.u32 %v539, %v543
        %v546 = vshll.u32 %v403, 16
        %v548 = vrot.slane %v546, 1
        %v549 = vsel %vm405, %v544, %v548
        %v551 = vshrl.u32 %v365, 16
        %v553 = vshll.u32 %v365, 16
        %v555 = vrot.slane %v553, 1
        %v556 = vor.u32 %v551, %v555
        %v558 = vshll.u32 %v404, 16
        %v560 = vrot.slane %v558, 1
        %v561 = vsel %vm405, %v556, %v560
        %562 = vrot.lane.b32.xlu0 %v417, 4
        %v563 = vpop.permute.xlu0 %562
        %564 = vrot.lane.b32.xlu0 %v429, 4
        %v565 = vpop.permute.xlu0 %564
        %566 = vrot.lane.b32.xlu0 %v441, 4
        %v567 = vpop.permute.xlu0 %566
        %568 = vrot.lane.b32.xlu0 %v453, 4
        %v569 = vpop.permute.xlu0 %568
        %570 = vrot.lane.b32.xlu0 %v465, 4
        %v571 = vpop.permute.xlu0 %570
        %572 = vrot.lane.b32.xlu0 %v477, 4
        %v573 = vpop.permute.xlu0 %572
        %574 = vrot.lane.b32.xlu0 %v489, 4
        %v575 = vpop.permute.xlu0 %574
        %576 = vrot.lane.b32.xlu0 %v501, 4
        %v577 = vpop.permute.xlu0 %576
        %578 = vrot.lane.b32.xlu0 %v513, 4
        %v579 = vpop.permute.xlu0 %578
        %580 = vrot.lane.b32.xlu0 %v525, 4
        %v581 = vpop.permute.xlu0 %580
        %582 = vrot.lane.b32.xlu0 %v537, 4
        %v583 = vpop.permute.xlu0 %582
        %584 = vrot.lane.b32.xlu0 %v549, 4
        %v585 = vpop.permute.xlu0 %584
        %586 = vrot.lane.b32.xlu0 %v561, 4
        %v587 = vpop.permute.xlu0 %586
        %v601 = vunpack.c.l.b16 %v275
        %v602 = vunpack.c.l.b16 %v276
        %v603 = vunpack.c.l.b16 %v277
        %v604 = vunpack.c.l.b16 %v278
        %v605 = vunpack.c.l.b16 %v279
        %v606 = vunpack.c.l.b16 %v280
        %v607 = vunpack.c.l.b16 %v281
        %v608 = vunpack.c.l.b16 %v282
        %v609 = vunpack.c.l.b16 %v283
        %v610 = vunpack.c.l.b16 %v284
        %v611 = vunpack.c.l.b16 %v285
        %v612 = vunpack.c.l.b16 %v286
        %v613 = vunpack.c.l.b16 %v287
        %v614 = vpack.c.b16 %v328, %v601
        %v615 = vpack.c.b16 %v330, %v602
        %v616 = vpack.c.b16 %v332, %v603
        %v617 = vpack.c.b16 %v334, %v604
        %v618 = vpack.c.b16 %v336, %v605
        %v619 = vpack.c.b16 %v338, %v606
        %v620 = vpack.c.b16 %v340, %v607
        %v621 = vpack.c.b16 %v342, %v608
        %v622 = vpack.c.b16 %v344, %v609
        %v623 = vpack.c.b16 %v346, %v610
        %v624 = vpack.c.b16 %v348, %v611
        %v625 = vpack.c.b16 %v350, %v612
        %v626 = vpack.c.b16 %v352, %v613
        %vm627 = vcmask 1046528
        %v628 = vrot.slane %v614, 1
        %v629 = vrot.slane %v392, 1
        %v630 = vsel %vm627, %v628, %v629
        %v631 = vrot.slane %v615, 1
        %v632 = vrot.slane %v393, 1
        %v633 = vsel %vm627, %v631, %v632
        %v634 = vrot.slane %v616, 1
        %v635 = vrot.slane %v394, 1
        %v636 = vsel %vm627, %v634, %v635
        %v637 = vrot.slane %v617, 1
        %v638 = vrot.slane %v395, 1
        %v639 = vsel %vm627, %v637, %v638
        %v640 = vrot.slane %v618, 1
        %v641 = vrot.slane %v396, 1
        %v642 = vsel %vm627, %v640, %v641
        %v643 = vrot.slane %v619, 1
        %v644 = vrot.slane %v397, 1
        %v645 = vsel %vm627, %v643, %v644
        %v646 = vrot.slane %v620, 1
        %v647 = vrot.slane %v398, 1
        %v648 = vsel %vm627, %v646, %v647
        %v649 = vrot.slane %v621, 1
        %v650 = vrot.slane %v399, 1
        %v651 = vsel %vm627, %v649, %v650
        %v652 = vrot.slane %v622, 1
        %v653 = vrot.slane %v400, 1
        %v654 = vsel %vm627, %v652, %v653
        %v655 = vrot.slane %v623, 1
        %v656 = vrot.slane %v401, 1
        %v657 = vsel %vm627, %v655, %v656
        %v658 = vrot.slane %v624, 1
        %v659 = vrot.slane %v402, 1
        %v660 = vsel %vm627, %v658, %v659
        %v661 = vrot.slane %v625, 1
        %v662 = vrot.slane %v403, 1
        %v663 = vsel %vm627, %v661, %v662
        %v664 = vrot.slane %v626, 1
        %v665 = vrot.slane %v404, 1
        %v666 = vsel %vm627, %v664, %v665
        %667 = vrot.lane.b32.xlu0 %v630, 8
        %v668 = vpop.permute.xlu0 %667
        %669 = vrot.lane.b32.xlu0 %v633, 8
        %v670 = vpop.permute.xlu0 %669
        %671 = vrot.lane.b32.xlu0 %v636, 8
        %v672 = vpop.permute.xlu0 %671
        %673 = vrot.lane.b32.xlu0 %v639, 8
        %v674 = vpop.permute.xlu0 %673
        %675 = vrot.lane.b32.xlu0 %v642, 8
        %v676 = vpop.permute.xlu0 %675
        %677 = vrot.lane.b32.xlu0 %v645, 8
        %v678 = vpop.permute.xlu0 %677
        %679 = vrot.lane.b32.xlu0 %v648, 8
        %v680 = vpop.permute.xlu0 %679
        %681 = vrot.lane.b32.xlu0 %v651, 8
        %v682 = vpop.permute.xlu0 %681
        %683 = vrot.lane.b32.xlu0 %v654, 8
        %v684 = vpop.permute.xlu0 %683
        %685 = vrot.lane.b32.xlu0 %v657, 8
        %v686 = vpop.permute.xlu0 %685
        %687 = vrot.lane.b32.xlu0 %v660, 8
        %v688 = vpop.permute.xlu0 %687
        %689 = vrot.lane.b32.xlu0 %v663, 8
        %v690 = vpop.permute.xlu0 %689
        %691 = vrot.lane.b32.xlu0 %v666, 8
        %v692 = vpop.permute.xlu0 %691
        %v706 = vunpack.c.l.b16 %v288
        %v707 = vunpack.c.l.b16 %v289
        %v708 = vunpack.c.l.b16 %v290
        %v709 = vunpack.c.l.b16 %v291
        %v710 = vunpack.c.l.b16 %v292
        %v711 = vunpack.c.l.b16 %v293
        %v712 = vunpack.c.l.b16 %v294
        %v713 = vunpack.c.l.b16 %v295
        %v714 = vunpack.c.l.b16 %v296
        %v715 = vunpack.c.l.b16 %v297
        %v716 = vunpack.c.l.b16 %v298
        %v717 = vunpack.c.l.b16 %v299
        %v718 = vunpack.c.l.b16 %v300
        %v719 = vpack.c.b16 %v706, %v706
        %v720 = vpack.c.b16 %v707, %v707
        %v721 = vpack.c.b16 %v708, %v708
        %v722 = vpack.c.b16 %v709, %v709
        %v723 = vpack.c.b16 %v710, %v710
        %v724 = vpack.c.b16 %v711, %v711
        %v725 = vpack.c.b16 %v712, %v712
        %v726 = vpack.c.b16 %v713, %v713
        %v727 = vpack.c.b16 %v714, %v714
        %v728 = vpack.c.b16 %v715, %v715
        %v729 = vpack.c.b16 %v716, %v716
        %v730 = vpack.c.b16 %v717, %v717
        %v731 = vpack.c.b16 %v718, %v718
        %vm732 = vsmask.f32 6400
        %v734 = vshrl.u32 %v614, 16
        %v736 = vrot.slane %v734, 1
        %v737 = vshll.u32 %v614, 16
        %v739 = vrot.slane %v737, 2
        %v740 = vor.u32 %v736, %v739
        %v742 = vshrl.u32 %v719, 16
        %v744 = vrot.slane %v742, 1
        %v745 = vshll.u32 %v719, 16
        %v747 = vrot.slane %v745, 2
        %v748 = vor.u32 %v744, %v747
        %v749 = vsel %vm732, %v740, %v748
        %v751 = vshrl.u32 %v615, 16
        %v753 = vrot.slane %v751, 1
        %v754 = vshll.u32 %v615, 16
        %v756 = vrot.slane %v754, 2
        %v757 = vor.u32 %v753, %v756
        %v759 = vshrl.u32 %v720, 16
        %v761 = vrot.slane %v759, 1
        %v762 = vshll.u32 %v720, 16
        %v764 = vrot.slane %v762, 2
        %v765 = vor.u32 %v761, %v764
        %v766 = vsel %vm732, %v757, %v765
        %v768 = vshrl.u32 %v616, 16
        %v770 = vrot.slane %v768, 1
        %v771 = vshll.u32 %v616, 16
        %v773 = vrot.slane %v771, 2
        %v774 = vor.u32 %v770, %v773
        %v776 = vshrl.u32 %v721, 16
        %v778 = vrot.slane %v776, 1
        %v779 = vshll.u32 %v721, 16
        %v781 = vrot.slane %v779, 2
        %v782 = vor.u32 %v778, %v781
        %v783 = vsel %vm732, %v774, %v782
        %v785 = vshrl.u32 %v617, 16
        %v787 = vrot.slane %v785, 1
        %v788 = vshll.u32 %v617, 16
        %v790 = vrot.slane %v788, 2
        %v791 = vor.u32 %v787, %v790
        %v793 = vshrl.u32 %v722, 16
        %v795 = vrot.slane %v793, 1
        %v796 = vshll.u32 %v722, 16
        %v798 = vrot.slane %v796, 2
        %v799 = vor.u32 %v795, %v798
        %v800 = vsel %vm732, %v791, %v799
        %v802 = vshrl.u32 %v618, 16
        %v804 = vrot.slane %v802, 1
        %v805 = vshll.u32 %v618, 16
        %v807 = vrot.slane %v805, 2
        %v808 = vor.u32 %v804, %v807
        %v810 = vshrl.u32 %v723, 16
        %v812 = vrot.slane %v810, 1
        %v813 = vshll.u32 %v723, 16
        %v815 = vrot.slane %v813, 2
        %v816 = vor.u32 %v812, %v815
        %v817 = vsel %vm732, %v808, %v816
        %v819 = vshrl.u32 %v619, 16
        %v821 = vrot.slane %v819, 1
        %v822 = vshll.u32 %v619, 16
        %v824 = vrot.slane %v822, 2
        %v825 = vor.u32 %v821, %v824
        %v827 = vshrl.u32 %v724, 16
        %v829 = vrot.slane %v827, 1
        %v830 = vshll.u32 %v724, 16
        %v832 = vrot.slane %v830, 2
        %v833 = vor.u32 %v829, %v832
        %v834 = vsel %vm732, %v825, %v833
        %v836 = vshrl.u32 %v620, 16
        %v838 = vrot.slane %v836, 1
        %v839 = vshll.u32 %v620, 16
        %v841 = vrot.slane %v839, 2
        %v842 = vor.u32 %v838, %v841
        %v844 = vshrl.u32 %v725, 16
        %v846 = vrot.slane %v844, 1
        %v847 = vshll.u32 %v725, 16
        %v849 = vrot.slane %v847, 2
        %v850 = vor.u32 %v846, %v849
        %v851 = vsel %vm732, %v842, %v850
        %v853 = vshrl.u32 %v621, 16
        %v855 = vrot.slane %v853, 1
        %v856 = vshll.u32 %v621, 16
        %v858 = vrot.slane %v856, 2
        %v859 = vor.u32 %v855, %v858
        %v861 = vshrl.u32 %v726, 16
        %v863 = vrot.slane %v861, 1
        %v864 = vshll.u32 %v726, 16
        %v866 = vrot.slane %v864, 2
        %v867 = vor.u32 %v863, %v866
        %v868 = vsel %vm732, %v859, %v867
        %v870 = vshrl.u32 %v622, 16
        %v872 = vrot.slane %v870, 1
        %v873 = vshll.u32 %v622, 16
        %v875 = vrot.slane %v873, 2
        %v876 = vor.u32 %v872, %v875
        %v878 = vshrl.u32 %v727, 16
        %v880 = vrot.slane %v878, 1
        %v881 = vshll.u32 %v727, 16
        %v883 = vrot.slane %v881, 2
        %v884 = vor.u32 %v880, %v883
        %v885 = vsel %vm732, %v876, %v884
        %v887 = vshrl.u32 %v623, 16
        %v889 = vrot.slane %v887, 1
        %v890 = vshll.u32 %v623, 16
        %v892 = vrot.slane %v890, 2
        %v893 = vor.u32 %v889, %v892
        %v895 = vshrl.u32 %v728, 16
        %v897 = vrot.slane %v895, 1
        %v898 = vshll.u32 %v728, 16
        %v900 = vrot.slane %v898, 2
        %v901 = vor.u32 %v897, %v900
        %v902 = vsel %vm732, %v893, %v901
        %v904 = vshrl.u32 %v624, 16
        %v906 = vrot.slane %v904, 1
        %v907 = vshll.u32 %v624, 16
        %v909 = vrot.slane %v907, 2
        %v910 = vor.u32 %v906, %v909
        %v912 = vshrl.u32 %v729, 16
        %v914 = vrot.slane %v912, 1
        %v915 = vshll.u32 %v729, 16
        %v917 = vrot.slane %v915, 2
        %v918 = vor.u32 %v914, %v917
        %v919 = vsel %vm732, %v910, %v918
        %v921 = vshrl.u32 %v625, 16
        %v923 = vrot.slane %v921, 1
        %v924 = vshll.u32 %v625, 16
        %v926 = vrot.slane %v924, 2
        %v927 = vor.u32 %v923, %v926
        %v929 = vshrl.u32 %v730, 16
        %v931 = vrot.slane %v929, 1
        %v932 = vshll.u32 %v730, 16
        %v934 = vrot.slane %v932, 2
        %v935 = vor.u32 %v931, %v934
        %v936 = vsel %vm732, %v927, %v935
        %v938 = vshrl.u32 %v626, 16
        %v940 = vrot.slane %v938, 1
        %v941 = vshll.u32 %v626, 16
        %v943 = vrot.slane %v941, 2
        %v944 = vor.u32 %v940, %v943
        %v946 = vshrl.u32 %v731, 16
        %v948 = vrot.slane %v946, 1
        %v949 = vshll.u32 %v731, 16
        %v951 = vrot.slane %v949, 2
        %v952 = vor.u32 %v948, %v951
        %v953 = vsel %vm732, %v944, %v952
        %954 = vrot.lane.b32.xlu0 %v749, 12
        %v955 = vpop.permute.xlu0 %954
        %956 = vrot.lane.b32.xlu0 %v766, 12
        %v957 = vpop.permute.xlu0 %956
        %958 = vrot.lane.b32.xlu0 %v783, 12
        %v959 = vpop.permute.xlu0 %958
        %960 = vrot.lane.b32.xlu0 %v800, 12
        %v961 = vpop.permute.xlu0 %960
        %962 = vrot.lane.b32.xlu0 %v817, 12
        %v963 = vpop.permute.xlu0 %962
        %964 = vrot.lane.b32.xlu0 %v834, 12
        %v965 = vpop.permute.xlu0 %964
        %966 = vrot.lane.b32.xlu0 %v851, 12
        %v967 = vpop.permute.xlu0 %966
        %968 = vrot.lane.b32.xlu0 %v868, 12
        %v969 = vpop.permute.xlu0 %968
        %970 = vrot.lane.b32.xlu0 %v885, 12
        %v971 = vpop.permute.xlu0 %970
        %972 = vrot.lane.b32.xlu0 %v902, 12
        %v973 = vpop.permute.xlu0 %972
        %974 = vrot.lane.b32.xlu0 %v919, 12
        %v975 = vpop.permute.xlu0 %974
        %976 = vrot.lane.b32.xlu0 %v936, 12
        %v977 = vpop.permute.xlu0 %976
        %978 = vrot.lane.b32.xlu0 %v953, 12
        %v979 = vpop.permute.xlu0 %978
        %vm980 = vcmask 31744
        %v982 = vsel %vm980, %v353, %v563
        %v984 = vsel %vm980, %v354, %v565
        %v986 = vsel %vm980, %v355, %v567
        %v988 = vsel %vm980, %v356, %v569
        %v990 = vsel %vm980, %v357, %v571
        %v992 = vsel %vm980, %v358, %v573
        %v994 = vsel %vm980, %v359, %v575
        %v996 = vsel %vm980, %v360, %v577
        %v998 = vsel %vm980, %v361, %v579
        %v1000 = vsel %vm980, %v362, %v581
        %v1002 = vsel %vm980, %v363, %v583
        %v1004 = vsel %vm980, %v364, %v585
        %v1006 = vsel %vm980, %v365, %v587
        %vm1007 = vcmask 64512
        %v1009 = vsel %vm1007, %v982, %v668
        %v1011 = vsel %vm1007, %v984, %v670
        %v1013 = vsel %vm1007, %v986, %v672
        %v1015 = vsel %vm1007, %v988, %v674
        %v1017 = vsel %vm1007, %v990, %v676
        %v1019 = vsel %vm1007, %v992, %v678
        %v1021 = vsel %vm1007, %v994, %v680
        %v1023 = vsel %vm1007, %v996, %v682
        %v1025 = vsel %vm1007, %v998, %v684
        %v1027 = vsel %vm1007, %v1000, %v686
        %v1029 = vsel %vm1007, %v1002, %v688
        %v1031 = vsel %vm1007, %v1004, %v690
        %v1033 = vsel %vm1007, %v1006, %v692
        %vm1034 = vcmask 97280
        %v1036 = vsel %vm1034, %v1009, %v955
        %v1038 = vsel %vm1034, %v1011, %v957
        %v1040 = vsel %vm1034, %v1013, %v959
        %v1042 = vsel %vm1034, %v1015, %v961
        %v1044 = vsel %vm1034, %v1017, %v963
        %v1046 = vsel %vm1034, %v1019, %v965
        %v1048 = vsel %vm1034, %v1021, %v967
        %v1050 = vsel %vm1034, %v1023, %v969
        %v1052 = vsel %vm1034, %v1025, %v971
        %v1054 = vsel %vm1034, %v1027, %v973
        %v1056 = vsel %vm1034, %v1029, %v975
        %v1058 = vsel %vm1034, %v1031, %v977
        %v1060 = vsel %vm1034, %v1033, %v979
        %v1061 = vld [vmem:[#allocation5] sm:$0xf]
        %v1062 = vld [vmem:[#allocation5 + $0x4] sm:$0xf]
        %s1063 = sadd.s32 %s232, 1
        %s1064 = smul.u32 %s1063, 3
        %s1065 = smul.addr %s1064, 4
        %s1066 = scalar_lea.vmem %s199, %s1065 [#allocation2]
        %v1067 = vld [vmem:[%s1066] sm:$0xf]
        %v1068 = vld [vmem:[%s1066 + $0x4] sm:$0xf]
        %v1069 = vld [vmem:[%s1066 + $0xc] sm:$0xf]
        %v1070 = vld [vmem:[%s1066 + $0x10] sm:$0xf]
        %v1071 = vld [vmem:[%s1066 + $0x18] sm:$0xf]
        %v1072 = vld [vmem:[%s1066 + $0x1c] sm:$0xf]
        %v1073 = vld [vmem:[%s1066 + $0x24] sm:$0xf]
        %v1074 = vld [vmem:[%s1066 + $0x28] sm:$0xf]
        %v1075 = vld [vmem:[%s1066 + $0x30] sm:$0xf]
        %v1076 = vld [vmem:[%s1066 + $0x34] sm:$0xf]
        %v1077 = vld [vmem:[%s1066 + $0x3c] sm:$0xf]
        %v1078 = vld [vmem:[%s1066 + $0x40] sm:$0xf]
        %v1079 = vld [vmem:[%s1066 + $0x48] sm:$0xf]
        %v1080 = vld [vmem:[%s1066 + $0x4c] sm:$0xf]
        %v1081 = vld [vmem:[%s1066 + $0x54] sm:$0xf]
        %v1082 = vld [vmem:[%s1066 + $0x58] sm:$0xf]
        %v1083 = vld [vmem:[%s1066 + $0x60] sm:$0xf]
        %v1084 = vld [vmem:[%s1066 + $0x64] sm:$0xf]
        %v1085 = vld [vmem:[%s1066 + $0x6c] sm:$0xf]
        %v1086 = vld [vmem:[%s1066 + $0x70] sm:$0xf]
        %v1087 = vld [vmem:[%s1066 + $0x78] sm:$0xf]
        %v1088 = vld [vmem:[%s1066 + $0x7c] sm:$0xf]
        %v1089 = vld [vmem:[%s1066 + $0x84] sm:$0xf]
        %v1090 = vld [vmem:[%s1066 + $0x88] sm:$0xf]
        %v1091 = vld [vmem:[%s1066 + $0x90] sm:$0xf]
        %v1092 = vld [vmem:[%s1066 + $0x94] sm:$0xf]
        %v1093 = vld [vmem:[%s1066 + $0x8] sm:$0x1]
        %v1094 = vld [vmem:[%s1066 + $0x14] sm:$0x1]
        %v1095 = vld [vmem:[%s1066 + $0x20] sm:$0x1]
        %v1096 = vld [vmem:[%s1066 + $0x2c] sm:$0x1]
        %v1097 = vld [vmem:[%s1066 + $0x38] sm:$0x1]
        %v1098 = vld [vmem:[%s1066 + $0x44] sm:$0x1]
        %v1099 = vld [vmem:[%s1066 + $0x50] sm:$0x1]
        %v1100 = vld [vmem:[%s1066 + $0x5c] sm:$0x1]
        %v1101 = vld [vmem:[%s1066 + $0x68] sm:$0x1]
        %v1102 = vld [vmem:[%s1066 + $0x74] sm:$0x1]
        %v1103 = vld [vmem:[%s1066 + $0x80] sm:$0x1]
        %v1104 = vld [vmem:[%s1066 + $0x8c] sm:$0x1]
        %v1105 = vld [vmem:[%s1066 + $0x98] sm:$0x1]
        %v1106 = vld [vmem:[%s1066] sm:$0xe]
        %v1107 = vld [vmem:[%s1066 + $0xc] sm:$0xe]
        %v1108 = vld [vmem:[%s1066 + $0x18] sm:$0xe]
        %v1109 = vld [vmem:[%s1066 + $0x24] sm:$0xe]
        %v1110 = vld [vmem:[%s1066 + $0x30] sm:$0xe]
        %v1111 = vld [vmem:[%s1066 + $0x3c] sm:$0xe]
        %v1112 = vld [vmem:[%s1066 + $0x48] sm:$0xe]
        %v1113 = vld [vmem:[%s1066 + $0x54] sm:$0xe]
        %v1114 = vld [vmem:[%s1066 + $0x60] sm:$0xe]
        %v1115 = vld [vmem:[%s1066 + $0x6c] sm:$0xe]
        %v1116 = vld [vmem:[%s1066 + $0x78] sm:$0xe]
        %v1117 = vld [vmem:[%s1066 + $0x84] sm:$0xe]
        %v1118 = vld [vmem:[%s1066 + $0x90] sm:$0xe]
        %v1119 = vld [vmem:[%s1066 + $0x8] sm:$0x3]
        %v1120 = vld [vmem:[%s1066 + $0x14] sm:$0x3]
        %v1121 = vld [vmem:[%s1066 + $0x20] sm:$0x3]
        %v1122 = vld [vmem:[%s1066 + $0x2c] sm:$0x3]
        %v1123 = vld [vmem:[%s1066 + $0x38] sm:$0x3]
        %v1124 = vld [vmem:[%s1066 + $0x44] sm:$0x3]
        %v1125 = vld [vmem:[%s1066 + $0x50] sm:$0x3]
        %v1126 = vld [vmem:[%s1066 + $0x5c] sm:$0x3]
        %v1127 = vld [vmem:[%s1066 + $0x68] sm:$0x3]
        %v1128 = vld [vmem:[%s1066 + $0x74] sm:$0x3]
        %v1129 = vld [vmem:[%s1066 + $0x80] sm:$0x3]
        %v1130 = vld [vmem:[%s1066 + $0x8c] sm:$0x3]
        %v1131 = vld [vmem:[%s1066 + $0x98] sm:$0x3]
        %v1158 = vunpack.c.l.b16 %v1067
        %v1159 = vunpack.c.l.b16 %v1068
        %v1160 = vunpack.c.l.b16 %v1069
        %v1161 = vunpack.c.l.b16 %v1070
        %v1162 = vunpack.c.l.b16 %v1071
        %v1163 = vunpack.c.l.b16 %v1072
        %v1164 = vunpack.c.l.b16 %v1073
        %v1165 = vunpack.c.l.b16 %v1074
        %v1166 = vunpack.c.l.b16 %v1075
        %v1167 = vunpack.c.l.b16 %v1076
        %v1168 = vunpack.c.l.b16 %v1077
        %v1169 = vunpack.c.l.b16 %v1078
        %v1170 = vunpack.c.l.b16 %v1079
        %v1171 = vunpack.c.l.b16 %v1080
        %v1172 = vunpack.c.l.b16 %v1081
        %v1173 = vunpack.c.l.b16 %v1082
        %v1174 = vunpack.c.l.b16 %v1083
        %v1175 = vunpack.c.l.b16 %v1084
        %v1176 = vunpack.c.l.b16 %v1085
        %v1177 = vunpack.c.l.b16 %v1086
        %v1178 = vunpack.c.l.b16 %v1087
        %v1179 = vunpack.c.l.b16 %v1088
        %v1180 = vunpack.c.l.b16 %v1089
        %v1181 = vunpack.c.l.b16 %v1090
        %v1182 = vunpack.c.l.b16 %v1091
        %v1183 = vunpack.c.l.b16 %v1092
        %v1184 = vpack.c.b16 %v1159, %v1158
        %v1185 = vpack.c.b16 %v1161, %v1160
        %v1186 = vpack.c.b16 %v1163, %v1162
        %v1187 = vpack.c.b16 %v1165, %v1164
        %v1188 = vpack.c.b16 %v1167, %v1166
        %v1189 = vpack.c.b16 %v1169, %v1168
        %v1190 = vpack.c.b16 %v1171, %v1170
        %v1191 = vpack.c.b16 %v1173, %v1172
        %v1192 = vpack.c.b16 %v1175, %v1174
        %v1193 = vpack.c.b16 %v1177, %v1176
        %v1194 = vpack.c.b16 %v1179, %v1178
        %v1195 = vpack.c.b16 %v1181, %v1180
        %v1196 = vpack.c.b16 %v1183, %v1182
        %v1210 = vunpack.c.l.b16 %v1093
        %v1211 = vunpack.c.l.b16 %v1094
        %v1212 = vunpack.c.l.b16 %v1095
        %v1213 = vunpack.c.l.b16 %v1096
        %v1214 = vunpack.c.l.b16 %v1097
        %v1215 = vunpack.c.l.b16 %v1098
        %v1216 = vunpack.c.l.b16 %v1099
        %v1217 = vunpack.c.l.b16 %v1100
        %v1218 = vunpack.c.l.b16 %v1101
        %v1219 = vunpack.c.l.b16 %v1102
        %v1220 = vunpack.c.l.b16 %v1103
        %v1221 = vunpack.c.l.b16 %v1104
        %v1222 = vunpack.c.l.b16 %v1105
        %v1223 = vpack.c.b16 %v1210, %v1210
        %v1224 = vpack.c.b16 %v1211, %v1211
        %v1225 = vpack.c.b16 %v1212, %v1212
        %v1226 = vpack.c.b16 %v1213, %v1213
        %v1227 = vpack.c.b16 %v1214, %v1214
        %v1228 = vpack.c.b16 %v1215, %v1215
        %v1229 = vpack.c.b16 %v1216, %v1216
        %v1230 = vpack.c.b16 %v1217, %v1217
        %v1231 = vpack.c.b16 %v1218, %v1218
        %v1232 = vpack.c.b16 %v1219, %v1219
        %v1233 = vpack.c.b16 %v1220, %v1220
        %v1234 = vpack.c.b16 %v1221, %v1221
        %v1235 = vpack.c.b16 %v1222, %v1222
        %v1237 = vshrl.u32 %v1184, 16
        %v1239 = vshll.u32 %v1184, 16
        %v1241 = vrot.slane %v1239, 1
        %v1242 = vor.u32 %v1237, %v1241
        %v1244 = vshll.u32 %v1223, 16
        %v1246 = vrot.slane %v1244, 1
        %v1247 = vsel %vm405, %v1242, %v1246
        %v1249 = vshrl.u32 %v1185, 16
        %v1251 = vshll.u32 %v1185, 16
        %v1253 = vrot.slane %v1251, 1
        %v1254 = vor.u32 %v1249, %v1253
        %v1256 = vshll.u32 %v1224, 16
        %v1258 = vrot.slane %v1256, 1
        %v1259 = vsel %vm405, %v1254, %v1258
        %v1261 = vshrl.u32 %v1186, 16
        %v1263 = vshll.u32 %v1186, 16
        %v1265 = vrot.slane %v1263, 1
        %v1266 = vor.u32 %v1261, %v1265
        %v1268 = vshll.u32 %v1225, 16
        %v1270 = vrot.slane %v1268, 1
        %v1271 = vsel %vm405, %v1266, %v1270
        %v1273 = vshrl.u32 %v1187, 16
        %v1275 = vshll.u32 %v1187, 16
        %v1277 = vrot.slane %v1275, 1
        %v1278 = vor.u32 %v1273, %v1277
        %v1280 = vshll.u32 %v1226, 16
        %v1282 = vrot.slane %v1280, 1
        %v1283 = vsel %vm405, %v1278, %v1282
        %v1285 = vshrl.u32 %v1188, 16
        %v1287 = vshll.u32 %v1188, 16
        %v1289 = vrot.slane %v1287, 1
        %v1290 = vor.u32 %v1285, %v1289
        %v1292 = vshll.u32 %v1227, 16
        %v1294 = vrot.slane %v1292, 1
        %v1295 = vsel %vm405, %v1290, %v1294
        %v1297 = vshrl.u32 %v1189, 16
        %v1299 = vshll.u32 %v1189, 16
        %v1301 = vrot.slane %v1299, 1
        %v1302 = vor.u32 %v1297, %v1301
        %v1304 = vshll.u32 %v1228, 16
        %v1306 = vrot.slane %v1304, 1
        %v1307 = vsel %vm405, %v1302, %v1306
        %v1309 = vshrl.u32 %v1190, 16
        %v1311 = vshll.u32 %v1190, 16
        %v1313 = vrot.slane %v1311, 1
        %v1314 = vor.u32 %v1309, %v1313
        %v1316 = vshll.u32 %v1229, 16
        %v1318 = vrot.slane %v1316, 1
        %v1319 = vsel %vm405, %v1314, %v1318
        %v1321 = vshrl.u32 %v1191, 16
        %v1323 = vshll.u32 %v1191, 16
        %v1325 = vrot.slane %v1323, 1
        %v1326 = vor.u32 %v1321, %v1325
        %v1328 = vshll.u32 %v1230, 16
        %v1330 = vrot.slane %v1328, 1
        %v1331 = vsel %vm405, %v1326, %v1330
        %v1333 = vshrl.u32 %v1192, 16
        %v1335 = vshll.u32 %v1192, 16
        %v1337 = vrot.slane %v1335, 1
        %v1338 = vor.u32 %v1333, %v1337
        %v1340 = vshll.u32 %v1231, 16
        %v1342 = vrot.slane %v1340, 1
        %v1343 = vsel %vm405, %v1338, %v1342
        %v1345 = vshrl.u32 %v1193, 16
        %v1347 = vshll.u32 %v1193, 16
        %v1349 = vrot.slane %v1347, 1
        %v1350 = vor.u32 %v1345, %v1349
        %v1352 = vshll.u32 %v1232, 16
        %v1354 = vrot.slane %v1352, 1
        %v1355 = vsel %vm405, %v1350, %v1354
        %v1357 = vshrl.u32 %v1194, 16
        %v1359 = vshll.u32 %v1194, 16
        %v1361 = vrot.slane %v1359, 1
        %v1362 = vor.u32 %v1357, %v1361
        %v1364 = vshll.u32 %v1233, 16
        %v1366 = vrot.slane %v1364, 1
        %v1367 = vsel %vm405, %v1362, %v1366
        %v1369 = vshrl.u32 %v1195, 16
        %v1371 = vshll.u32 %v1195, 16
        %v1373 = vrot.slane %v1371, 1
        %v1374 = vor.u32 %v1369, %v1373
        %v1376 = vshll.u32 %v1234, 16
        %v1378 = vrot.slane %v1376, 1
        %v1379 = vsel %vm405, %v1374, %v1378
        %v1381 = vshrl.u32 %v1196, 16
        %v1383 = vshll.u32 %v1196, 16
        %v1385 = vrot.slane %v1383, 1
        %v1386 = vor.u32 %v1381, %v1385
        %v1388 = vshll.u32 %v1235, 16
        %v1390 = vrot.slane %v1388, 1
        %v1391 = vsel %vm405, %v1386, %v1390
        %1392 = vrot.lane.b32.xlu0 %v1247, 4
        %v1393 = vpop.permute.xlu0 %1392
        %1394 = vrot.lane.b32.xlu0 %v1259, 4
        %v1395 = vpop.permute.xlu0 %1394
        %1396 = vrot.lane.b32.xlu0 %v1271, 4
        %v1397 = vpop.permute.xlu0 %1396
        %1398 = vrot.lane.b32.xlu0 %v1283, 4
        %v1399 = vpop.permute.xlu0 %1398
        %1400 = vrot.lane.b32.xlu0 %v1295, 4
        %v1401 = vpop.permute.xlu0 %1400
        %1402 = vrot.lane.b32.xlu0 %v1307, 4
        %v1403 = vpop.permute.xlu0 %1402
        %1404 = vrot.lane.b32.xlu0 %v1319, 4
        %v1405 = vpop.permute.xlu0 %1404
        %1406 = vrot.lane.b32.xlu0 %v1331, 4
        %v1407 = vpop.permute.xlu0 %1406
        %1408 = vrot.lane.b32.xlu0 %v1343, 4
        %v1409 = vpop.permute.xlu0 %1408
        %1410 = vrot.lane.b32.xlu0 %v1355, 4
        %v1411 = vpop.permute.xlu0 %1410
        %1412 = vrot.lane.b32.xlu0 %v1367, 4
        %v1413 = vpop.permute.xlu0 %1412
        %1414 = vrot.lane.b32.xlu0 %v1379, 4
        %v1415 = vpop.permute.xlu0 %1414
        %1416 = vrot.lane.b32.xlu0 %v1391, 4
        %v1417 = vpop.permute.xlu0 %1416
        %v1431 = vunpack.c.l.b16 %v1106
        %v1432 = vunpack.c.l.b16 %v1107
        %v1433 = vunpack.c.l.b16 %v1108
        %v1434 = vunpack.c.l.b16 %v1109
        %v1435 = vunpack.c.l.b16 %v1110
        %v1436 = vunpack.c.l.b16 %v1111
        %v1437 = vunpack.c.l.b16 %v1112
        %v1438 = vunpack.c.l.b16 %v1113
        %v1439 = vunpack.c.l.b16 %v1114
        %v1440 = vunpack.c.l.b16 %v1115
        %v1441 = vunpack.c.l.b16 %v1116
        %v1442 = vunpack.c.l.b16 %v1117
        %v1443 = vunpack.c.l.b16 %v1118
        %v1444 = vpack.c.b16 %v1159, %v1431
        %v1445 = vpack.c.b16 %v1161, %v1432
        %v1446 = vpack.c.b16 %v1163, %v1433
        %v1447 = vpack.c.b16 %v1165, %v1434
        %v1448 = vpack.c.b16 %v1167, %v1435
        %v1449 = vpack.c.b16 %v1169, %v1436
        %v1450 = vpack.c.b16 %v1171, %v1437
        %v1451 = vpack.c.b16 %v1173, %v1438
        %v1452 = vpack.c.b16 %v1175, %v1439
        %v1453 = vpack.c.b16 %v1177, %v1440
        %v1454 = vpack.c.b16 %v1179, %v1441
        %v1455 = vpack.c.b16 %v1181, %v1442
        %v1456 = vpack.c.b16 %v1183, %v1443
        %v1457 = vrot.slane %v1444, 1
        %v1458 = vrot.slane %v1223, 1
        %v1459 = vsel %vm627, %v1457, %v1458
        %v1460 = vrot.slane %v1445, 1
        %v1461 = vrot.slane %v1224, 1
        %v1462 = vsel %vm627, %v1460, %v1461
        %v1463 = vrot.slane %v1446, 1
        %v1464 = vrot.slane %v1225, 1
        %v1465 = vsel %vm627, %v1463, %v1464
        %v1466 = vrot.slane %v1447, 1
        %v1467 = vrot.slane %v1226, 1
        %v1468 = vsel %vm627, %v1466, %v1467
        %v1469 = vrot.slane %v1448, 1
        %v1470 = vrot.slane %v1227, 1
        %v1471 = vsel %vm627, %v1469, %v1470
        %v1472 = vrot.slane %v1449, 1
        %v1473 = vrot.slane %v1228, 1
        %v1474 = vsel %vm627, %v1472, %v1473
        %v1475 = vrot.slane %v1450, 1
        %v1476 = vrot.slane %v1229, 1
        %v1477 = vsel %vm627, %v1475, %v1476
        %v1478 = vrot.slane %v1451, 1
        %v1479 = vrot.slane %v1230, 1
        %v1480 = vsel %vm627, %v1478, %v1479
        %v1481 = vrot.slane %v1452, 1
        %v1482 = vrot.slane %v1231, 1
        %v1483 = vsel %vm627, %v1481, %v1482
        %v1484 = vrot.slane %v1453, 1
        %v1485 = vrot.slane %v1232, 1
        %v1486 = vsel %vm627, %v1484, %v1485
        %v1487 = vrot.slane %v1454, 1
        %v1488 = vrot.slane %v1233, 1
        %v1489 = vsel %vm627, %v1487, %v1488
        %v1490 = vrot.slane %v1455, 1
        %v1491 = vrot.slane %v1234, 1
        %v1492 = vsel %vm627, %v1490, %v1491
        %v1493 = vrot.slane %v1456, 1
        %v1494 = vrot.slane %v1235, 1
        %v1495 = vsel %vm627, %v1493, %v1494
        %1496 = vrot.lane.b32.xlu0 %v1459, 8
        %v1497 = vpop.permute.xlu0 %1496
        %1498 = vrot.lane.b32.xlu0 %v1462, 8
        %v1499 = vpop.permute.xlu0 %1498
        %1500 = vrot.lane.b32.xlu0 %v1465, 8
        %v1501 = vpop.permute.xlu0 %1500
        %1502 = vrot.lane.b32.xlu0 %v1468, 8
        %v1503 = vpop.permute.xlu0 %1502
        %1504 = vrot.lane.b32.xlu0 %v1471, 8
        %v1505 = vpop.permute.xlu0 %1504
        %1506 = vrot.lane.b32.xlu0 %v1474, 8
        %v1507 = vpop.permute.xlu0 %1506
        %1508 = vrot.lane.b32.xlu0 %v1477, 8
        %v1509 = vpop.permute.xlu0 %1508
        %1510 = vrot.lane.b32.xlu0 %v1480, 8
        %v1511 = vpop.permute.xlu0 %1510
        %1512 = vrot.lane.b32.xlu0 %v1483, 8
        %v1513 = vpop.permute.xlu0 %1512
        %1514 = vrot.lane.b32.xlu0 %v1486, 8
        %v1515 = vpop.permute.xlu0 %1514
        %1516 = vrot.lane.b32.xlu0 %v1489, 8
        %v1517 = vpop.permute.xlu0 %1516
        %1518 = vrot.lane.b32.xlu0 %v1492, 8
        %v1519 = vpop.permute.xlu0 %1518
        %1520 = vrot.lane.b32.xlu0 %v1495, 8
        %v1521 = vpop.permute.xlu0 %1520
        %v1535 = vunpack.c.l.b16 %v1119
        %v1536 = vunpack.c.l.b16 %v1120
        %v1537 = vunpack.c.l.b16 %v1121
        %v1538 = vunpack.c.l.b16 %v1122
        %v1539 = vunpack.c.l.b16 %v1123
        %v1540 = vunpack.c.l.b16 %v1124
        %v1541 = vunpack.c.l.b16 %v1125
        %v1542 = vunpack.c.l.b16 %v1126
        %v1543 = vunpack.c.l.b16 %v1127
        %v1544 = vunpack.c.l.b16 %v1128
        %v1545 = vunpack.c.l.b16 %v1129
        %v1546 = vunpack.c.l.b16 %v1130
        %v1547 = vunpack.c.l.b16 %v1131
        %v1548 = vpack.c.b16 %v1535, %v1535
        %v1549 = vpack.c.b16 %v1536, %v1536
        %v1550 = vpack.c.b16 %v1537, %v1537
        %v1551 = vpack.c.b16 %v1538, %v1538
        %v1552 = vpack.c.b16 %v1539, %v1539
        %v1553 = vpack.c.b16 %v1540, %v1540
        %v1554 = vpack.c.b16 %v1541, %v1541
        %v1555 = vpack.c.b16 %v1542, %v1542
        %v1556 = vpack.c.b16 %v1543, %v1543
        %v1557 = vpack.c.b16 %v1544, %v1544
        %v1558 = vpack.c.b16 %v1545, %v1545
        %v1559 = vpack.c.b16 %v1546, %v1546
        %v1560 = vpack.c.b16 %v1547, %v1547
        %v1562 = vshrl.u32 %v1444, 16
        %v1564 = vrot.slane %v1562, 1
        %v1565 = vshll.u32 %v1444, 16
        %v1567 = vrot.slane %v1565, 2
        %v1568 = vor.u32 %v1564, %v1567
        %v1570 = vshrl.u32 %v1548, 16
        %v1572 = vrot.slane %v1570, 1
        %v1573 = vshll.u32 %v1548, 16
        %v1575 = vrot.slane %v1573, 2
        %v1576 = vor.u32 %v1572, %v1575
        %v1577 = vsel %vm732, %v1568, %v1576
        %v1579 = vshrl.u32 %v1445, 16
        %v1581 = vrot.slane %v1579, 1
        %v1582 = vshll.u32 %v1445, 16
        %v1584 = vrot.slane %v1582, 2
        %v1585 = vor.u32 %v1581, %v1584
        %v1587 = vshrl.u32 %v1549, 16
        %v1589 = vrot.slane %v1587, 1
        %v1590 = vshll.u32 %v1549, 16
        %v1592 = vrot.slane %v1590, 2
        %v1593 = vor.u32 %v1589, %v1592
        %v1594 = vsel %vm732, %v1585, %v1593
        %v1596 = vshrl.u32 %v1446, 16
        %v1598 = vrot.slane %v1596, 1
        %v1599 = vshll.u32 %v1446, 16
        %v1601 = vrot.slane %v1599, 2
        %v1602 = vor.u32 %v1598, %v1601
        %v1604 = vshrl.u32 %v1550, 16
        %v1606 = vrot.slane %v1604, 1
        %v1607 = vshll.u32 %v1550, 16
        %v1609 = vrot.slane %v1607, 2
        %v1610 = vor.u32 %v1606, %v1609
        %v1611 = vsel %vm732, %v1602, %v1610
        %v1613 = vshrl.u32 %v1447, 16
        %v1615 = vrot.slane %v1613, 1
        %v1616 = vshll.u32 %v1447, 16
        %v1618 = vrot.slane %v1616, 2
        %v1619 = vor.u32 %v1615, %v1618
        %v1621 = vshrl.u32 %v1551, 16
        %v1623 = vrot.slane %v1621, 1
        %v1624 = vshll.u32 %v1551, 16
        %v1626 = vrot.slane %v1624, 2
        %v1627 = vor.u32 %v1623, %v1626
        %v1628 = vsel %vm732, %v1619, %v1627
        %v1630 = vshrl.u32 %v1448, 16
        %v1632 = vrot.slane %v1630, 1
        %v1633 = vshll.u32 %v1448, 16
        %v1635 = vrot.slane %v1633, 2
        %v1636 = vor.u32 %v1632, %v1635
        %v1638 = vshrl.u32 %v1552, 16
        %v1640 = vrot.slane %v1638, 1
        %v1641 = vshll.u32 %v1552, 16
        %v1643 = vrot.slane %v1641, 2
        %v1644 = vor.u32 %v1640, %v1643
        %v1645 = vsel %vm732, %v1636, %v1644
        %v1647 = vshrl.u32 %v1449, 16
        %v1649 = vrot.slane %v1647, 1
        %v1650 = vshll.u32 %v1449, 16
        %v1652 = vrot.slane %v1650, 2
        %v1653 = vor.u32 %v1649, %v1652
        %v1655 = vshrl.u32 %v1553, 16
        %v1657 = vrot.slane %v1655, 1
        %v1658 = vshll.u32 %v1553, 16
        %v1660 = vrot.slane %v1658, 2
        %v1661 = vor.u32 %v1657, %v1660
        %v1662 = vsel %vm732, %v1653, %v1661
        %v1664 = vshrl.u32 %v1450, 16
        %v1666 = vrot.slane %v1664, 1
        %v1667 = vshll.u32 %v1450, 16
        %v1669 = vrot.slane %v1667, 2
        %v1670 = vor.u32 %v1666, %v1669
        %v1672 = vshrl.u32 %v1554, 16
        %v1674 = vrot.slane %v1672, 1
        %v1675 = vshll.u32 %v1554, 16
        %v1677 = vrot.slane %v1675, 2
        %v1678 = vor.u32 %v1674, %v1677
        %v1679 = vsel %vm732, %v1670, %v1678
        %v1681 = vshrl.u32 %v1451, 16
        %v1683 = vrot.slane %v1681, 1
        %v1684 = vshll.u32 %v1451, 16
        %v1686 = vrot.slane %v1684, 2
        %v1687 = vor.u32 %v1683, %v1686
        %v1689 = vshrl.u32 %v1555, 16
        %v1691 = vrot.slane %v1689, 1
        %v1692 = vshll.u32 %v1555, 16
        %v1694 = vrot.slane %v1692, 2
        %v1695 = vor.u32 %v1691, %v1694
        %v1696 = vsel %vm732, %v1687, %v1695
        %v1698 = vshrl.u32 %v1452, 16
        %v1700 = vrot.slane %v1698, 1
        %v1701 = vshll.u32 %v1452, 16
        %v1703 = vrot.slane %v1701, 2
        %v1704 = vor.u32 %v1700, %v1703
        %v1706 = vshrl.u32 %v1556, 16
        %v1708 = vrot.slane %v1706, 1
        %v1709 = vshll.u32 %v1556, 16
        %v1711 = vrot.slane %v1709, 2
        %v1712 = vor.u32 %v1708, %v1711
        %v1713 = vsel %vm732, %v1704, %v1712
        %v1715 = vshrl.u32 %v1453, 16
        %v1717 = vrot.slane %v1715, 1
        %v1718 = vshll.u32 %v1453, 16
        %v1720 = vrot.slane %v1718, 2
        %v1721 = vor.u32 %v1717, %v1720
        %v1723 = vshrl.u32 %v1557, 16
        %v1725 = vrot.slane %v1723, 1
        %v1726 = vshll.u32 %v1557, 16
        %v1728 = vrot.slane %v1726, 2
        %v1729 = vor.u32 %v1725, %v1728
        %v1730 = vsel %vm732, %v1721, %v1729
        %v1732 = vshrl.u32 %v1454, 16
        %v1734 = vrot.slane %v1732, 1
        %v1735 = vshll.u32 %v1454, 16
        %v1737 = vrot.slane %v1735, 2
        %v1738 = vor.u32 %v1734, %v1737
        %v1740 = vshrl.u32 %v1558, 16
        %v1742 = vrot.slane %v1740, 1
        %v1743 = vshll.u32 %v1558, 16
        %v1745 = vrot.slane %v1743, 2
        %v1746 = vor.u32 %v1742, %v1745
        %v1747 = vsel %vm732, %v1738, %v1746
        %v1749 = vshrl.u32 %v1455, 16
        %v1751 = vrot.slane %v1749, 1
        %v1752 = vshll.u32 %v1455, 16
        %v1754 = vrot.slane %v1752, 2
        %v1755 = vor.u32 %v1751, %v1754
        %v1757 = vshrl.u32 %v1559, 16
        %v1759 = vrot.slane %v1757, 1
        %v1760 = vshll.u32 %v1559, 16
        %v1762 = vrot.slane %v1760, 2
        %v1763 = vor.u32 %v1759, %v1762
        %v1764 = vsel %vm732, %v1755, %v1763
        %v1766 = vshrl.u32 %v1456, 16
        %v1768 = vrot.slane %v1766, 1
        %v1769 = vshll.u32 %v1456, 16
        %v1771 = vrot.slane %v1769, 2
        %v1772 = vor.u32 %v1768, %v1771
        %v1774 = vshrl.u32 %v1560, 16
        %v1776 = vrot.slane %v1774, 1
        %v1777 = vshll.u32 %v1560, 16
        %v1779 = vrot.slane %v1777, 2
        %v1780 = vor.u32 %v1776, %v1779
        %v1781 = vsel %vm732, %v1772, %v1780
        %1782 = vrot.lane.b32.xlu0 %v1577, 12
        %v1783 = vpop.permute.xlu0 %1782
        %1784 = vrot.lane.b32.xlu0 %v1594, 12
        %v1785 = vpop.permute.xlu0 %1784
        %1786 = vrot.lane.b32.xlu0 %v1611, 12
        %v1787 = vpop.permute.xlu0 %1786
        %1788 = vrot.lane.b32.xlu0 %v1628, 12
        %v1789 = vpop.permute.xlu0 %1788
        %1790 = vrot.lane.b32.xlu0 %v1645, 12
        %v1791 = vpop.permute.xlu0 %1790
        %1792 = vrot.lane.b32.xlu0 %v1662, 12
        %v1793 = vpop.permute.xlu0 %1792
        %1794 = vrot.lane.b32.xlu0 %v1679, 12
        %v1795 = vpop.permute.xlu0 %1794
        %1796 = vrot.lane.b32.xlu0 %v1696, 12
        %v1797 = vpop.permute.xlu0 %1796
        %1798 = vrot.lane.b32.xlu0 %v1713, 12
        %v1799 = vpop.permute.xlu0 %1798
        %1800 = vrot.lane.b32.xlu0 %v1730, 12
        %v1801 = vpop.permute.xlu0 %1800
        %1802 = vrot.lane.b32.xlu0 %v1747, 12
        %v1803 = vpop.permute.xlu0 %1802
        %1804 = vrot.lane.b32.xlu0 %v1764, 12
        %v1805 = vpop.permute.xlu0 %1804
        %1806 = vrot.lane.b32.xlu0 %v1781, 12
        %v1807 = vpop.permute.xlu0 %1806
        %v1809 = vsel %vm980, %v1184, %v1393
        %v1811 = vsel %vm980, %v1185, %v1395
        %v1813 = vsel %vm980, %v1186, %v1397
        %v1815 = vsel %vm980, %v1187, %v1399
        %v1817 = vsel %vm980, %v1188, %v1401
        %v1819 = vsel %vm980, %v1189, %v1403
        %v1821 = vsel %vm980, %v1190, %v1405
        %v1823 = vsel %vm980, %v1191, %v1407
        %v1825 = vsel %vm980, %v1192, %v1409
        %v1827 = vsel %vm980, %v1193, %v1411
        %v1829 = vsel %vm980, %v1194, %v1413
        %v1831 = vsel %vm980, %v1195, %v1415
        %v1833 = vsel %vm980, %v1196, %v1417
        %v1835 = vsel %vm1007, %v1809, %v1497
        %v1837 = vsel %vm1007, %v1811, %v1499
        %v1839 = vsel %vm1007, %v1813, %v1501
        %v1841 = vsel %vm1007, %v1815, %v1503
        %v1843 = vsel %vm1007, %v1817, %v1505
        %v1845 = vsel %vm1007, %v1819, %v1507
        %v1847 = vsel %vm1007, %v1821, %v1509
        %v1849 = vsel %vm1007, %v1823, %v1511
        %v1851 = vsel %vm1007, %v1825, %v1513
        %v1853 = vsel %vm1007, %v1827, %v1515
        %v1855 = vsel %vm1007, %v1829, %v1517
        %v1857 = vsel %vm1007, %v1831, %v1519
        %v1859 = vsel %vm1007, %v1833, %v1521
        %v1861 = vsel %vm1034, %v1835, %v1783
        %v1863 = vsel %vm1034, %v1837, %v1785
        %v1865 = vsel %vm1034, %v1839, %v1787
        %v1867 = vsel %vm1034, %v1841, %v1789
        %v1869 = vsel %vm1034, %v1843, %v1791
        %v1871 = vsel %vm1034, %v1845, %v1793
        %v1873 = vsel %vm1034, %v1847, %v1795
        %v1875 = vsel %vm1034, %v1849, %v1797
        %v1877 = vsel %vm1034, %v1851, %v1799
        %v1879 = vsel %vm1034, %v1853, %v1801
        %v1881 = vsel %vm1034, %v1855, %v1803
        %v1883 = vsel %vm1034, %v1857, %v1805
        %v1885 = vsel %vm1034, %v1859, %v1807
        %s1886 = scalar_lea.vmem [#allocation5], 8
        %v1887 = vld [vmem:[%s1886] sm:$0xf]
        %v1888 = vld [vmem:[%s1886 + $0x4] sm:$0xf]
        %v1891 = vunpack.c.l.b16 %v1887
        %v1892 = vunpack.c.l.b16 %v1888
        %v1893 = vpack.c.b16 %v1892, %v1891
        %vm1895 = vcmask 130048
        %v1896 = vsel %vm1895, %v1861, 0
        %v1898 = vsel %vm1895, %v1863, 0
        %v1900 = vsel %vm1895, %v1865, 0
        %v1902 = vsel %vm1895, %v1867, 0
        %v1904 = vsel %vm1895, %v1869, 0
        %v1906 = vsel %vm1895, %v1871, 0
        %v1908 = vsel %vm1895, %v1873, 0
        %v1910 = vsel %vm1895, %v1875, 0
        %v1912 = vsel %vm1895, %v1877, 0
        %v1914 = vsel %vm1895, %v1879, 0
        %v1916 = vsel %vm1895, %v1881, 0
        %v1918 = vsel %vm1895, %v1883, 0
        %v1920 = vsel %vm1895, %v1885, 0
        %1922 = vmatprep.subr.bf16.mxu0 0
        %1923 = vmatpush1.bf16.msra.mxu0 %v1893
        %1924 = vmatprep.subr.bf16.mxu0 0
        %1925 = vmatpush1.bf16.msra.mxu0 0
        %1926 = vmatprep.subr.bf16.mxu0 0
        %1927 = vmatpush1.bf16.msra.mxu0 0
        %1928 = vmatprep.subr.bf16.mxu0 0
        %1929 = vmatpush1.bf16.msra.mxu0 0
        %1930 = vmatprep.subr.bf16.mxu0 0
        %1931 = vmatpush1.bf16.msra.mxu0 0
        %1932 = vmatprep.subr.bf16.mxu0 0
        %1933 = vmatpush1.bf16.msra.mxu0 0
        %1934 = vmatprep.subr.bf16.mxu0 0
        %1935 = vmatpush1.bf16.msra.mxu0 0
        %1936 = vmatprep.subr.bf16.mxu0 0
        %1937 = vmatpush1.bf16.msra.mxu0 0
        %1938 = vmatprep.subr.bf16.mxu0 0
        %1939 = vmatpush1.bf16.msra.mxu0 0
        %1940 = vmatprep.subr.bf16.mxu0 0
        %1941 = vmatpush1.bf16.msra.mxu0 0
        %1942 = vmatprep.subr.bf16.mxu0 0
        %1943 = vmatpush1.bf16.msra.mxu0 0
        %1944 = vmatprep.subr.bf16.mxu0 0
        %1945 = vmatpush1.bf16.msra.mxu0 0
        %1946 = vmatprep.subr.bf16.mxu0 0
        %1947 = vmatpush1.bf16.msra.mxu0 0
        %1948 = vmatprep.subr.bf16.mxu0 0
        %1949 = vmatpush1.bf16.msra.mxu0 0
        %1950 = vmatprep.subr.bf16.mxu0 0
        %1951 = vmatpush1.bf16.msra.mxu0 0
        %1952 = vmatprep.subr.bf16.mxu0 0
        %1953 = vmatpush1.bf16.msra.mxu0 0
        %1954 = vmatprep.mubr.bf16.mxu0 0
        %1955 = vmatmul.mubr.bf16.gmra.mrb[0].mxu0 %v1896
        %v1956 = vpop.f32.mrb[0].mxu0
        %v1957 = vadd.f32 0.0, %v1956
        %v1958 = vpop.f32.mrb[0].mxu0
        %v1959 = vpop.f32.mrb[0].mxu0
        %v1960 = vadd.f32 0.0, %v1959
        %v1961 = vpop.f32.mrb[0].mxu0
        %1962 = vmatprep.mubr.bf16.mxu0 0
        %1963 = vmatmul.mubr.bf16.gmra.mrb[0].mxu0 %v1898
        %v1964 = vpop.f32.mrb[0].mxu0
        %v1965 = vadd.f32 0.0, %v1964
        %v1966 = vpop.f32.mrb[0].mxu0
        %v1967 = vpop.f32.mrb[0].mxu0
        %v1968 = vadd.f32 0.0, %v1967
        %v1969 = vpop.f32.mrb[0].mxu0
        %1970 = vmatprep.mubr.bf16.mxu0 0
        %1971 = vmatmul.mubr.bf16.gmra.mrb[0].mxu0 %v1900
        %v1972 = vpop.f32.mrb[0].mxu0
        %v1973 = vadd.f32 0.0, %v1972
        %v1974 = vpop.f32.mrb[0].mxu0
        %v1975 = vpop.f32.mrb[0].mxu0
        %v1976 = vadd.f32 0.0, %v1975
        %v1977 = vpop.f32.mrb[0].mxu0
        %1978 = vmatprep.mubr.bf16.mxu0 0
        %1979 = vmatmul.mubr.bf16.gmra.mrb[0].mxu0 %v1902
        %v1980 = vpop.f32.mrb[0].mxu0
        %v1981 = vadd.f32 0.0, %v1980
        %v1982 = vpop.f32.mrb[0].mxu0
        %v1983 = vpop.f32.mrb[0].mxu0
        %v1984 = vadd.f32 0.0, %v1983
        %v1985 = vpop.f32.mrb[0].mxu0
        %1986 = vmatprep.mubr.bf16.mxu0 0
        %1987 = vmatmul.mubr.bf16.gmra.mrb[0].mxu0 %v1904
        %v1988 = vpop.f32.mrb[0].mxu0
        %v1989 = vadd.f32 0.0, %v1988
        %v1990 = vpop.f32.mrb[0].mxu0
        %v1991 = vpop.f32.mrb[0].mxu0
        %v1992 = vadd.f32 0.0, %v1991
        %v1993 = vpop.f32.mrb[0].mxu0
        %1994 = vmatprep.mubr.bf16.mxu0 0
        %1995 = vmatmul.mubr.bf16.gmra.mrb[0].mxu0 %v1906
        %v1996 = vpop.f32.mrb[0].mxu0
        %v1997 = vadd.f32 0.0, %v1996
        %v1998 = vpop.f32.mrb[0].mxu0
        %v1999 = vpop.f32.mrb[0].mxu0
        %v2000 = vadd.f32 0.0, %v1999
        %v2001 = vpop.f32.mrb[0].mxu0
        %2002 = vmatprep.mubr.bf16.mxu0 0
        %2003 = vmatmul.mubr.bf16.gmra.mrb[0].mxu0 %v1908
        %v2004 = vpop.f32.mrb[0].mxu0
        %v2005 = vadd.f32 0.0, %v2004
        %v2006 = vpop.f32.mrb[0].mxu0
        %v2007 = vpop.f32.mrb[0].mxu0
        %v2008 = vadd.f32 0.0, %v2007
        %v2009 = vpop.f32.mrb[0].mxu0
        %2010 = vmatprep.mubr.bf16.mxu0 0
        %2011 = vmatmul.mubr.bf16.gmra.mrb[0].mxu0 %v1910
        %v2012 = vpop.f32.mrb[0].mxu0
        %v2013 = vadd.f32 0.0, %v2012
        %v2014 = vpop.f32.mrb[0].mxu0
        %v2015 = vpop.f32.mrb[0].mxu0
        %v2016 = vadd.f32 0.0, %v2015
        %v2017 = vpop.f32.mrb[0].mxu0
        %2018 = vmatprep.mubr.bf16.mxu0 0
        %2019 = vmatmul.mubr.bf16.gmra.mrb[0].mxu0 %v1912
        %v2020 = vpop.f32.mrb[0].mxu0
        %v2021 = vadd.f32 0.0, %v2020
        %v2022 = vpop.f32.mrb[0].mxu0
        %v2023 = vpop.f32.mrb[0].mxu0
        %v2024 = vadd.f32 0.0, %v2023
        %v2025 = vpop.f32.mrb[0].mxu0
        %2026 = vmatprep.mubr.bf16.mxu0 0
        %2027 = vmatmul.mubr.bf16.gmra.mrb[0].mxu0 %v1914
        %v2028 = vpop.f32.mrb[0].mxu0
        %v2029 = vadd.f32 0.0, %v2028
        %v2030 = vpop.f32.mrb[0].mxu0
        %v2031 = vpop.f32.mrb[0].mxu0
        %v2032 = vadd.f32 0.0, %v2031
        %v2033 = vpop.f32.mrb[0].mxu0
        %2034 = vmatprep.mubr.bf16.mxu0 0
        %2035 = vmatmul.mubr.bf16.gmra.mrb[0].mxu0 %v1916
        %v2036 = vpop.f32.mrb[0].mxu0
        %v2037 = vadd.f32 0.0, %v2036
        %v2038 = vpop.f32.mrb[0].mxu0
        %v2039 = vpop.f32.mrb[0].mxu0
        %v2040 = vadd.f32 0.0, %v2039
        %v2041 = vpop.f32.mrb[0].mxu0
        %2042 = vmatprep.mubr.bf16.mxu0 0
        %2043 = vmatmul.mubr.bf16.gmra.mrb[0].mxu0 %v1918
        %v2044 = vpop.f32.mrb[0].mxu0
        %v2045 = vadd.f32 0.0, %v2044
        %v2046 = vpop.f32.mrb[0].mxu0
        %v2047 = vpop.f32.mrb[0].mxu0
        %v2048 = vadd.f32 0.0, %v2047
        %v2049 = vpop.f32.mrb[0].mxu0
        %2050 = vmatprep.mubr.bf16.mxu0 0
        %2051 = vmatmul.mubr.bf16.gmra.mrb[0].mxu0 %v1920
        %v2052 = vpop.f32.mrb[0].mxu0
        %v2053 = vadd.f32 0.0, %v2052
        %v2054 = vpop.f32.mrb[0].mxu0
        %v2055 = vpop.f32.mrb[0].mxu0
        %v2056 = vadd.f32 0.0, %v2055
        %v2057 = vpop.f32.mrb[0].mxu0
        %2058 = vdwg.mxu0
        %v2061 = vunpack.c.l.b16 %v1061
        %v2062 = vunpack.c.l.b16 %v1062
        %v2063 = vpack.c.b16 %v2062, %v2061
        %v2065 = vsel %vm1895, %v1036, 0
        %v2067 = vsel %vm1895, %v1038, 0
        %v2069 = vsel %vm1895, %v1040, 0
        %v2071 = vsel %vm1895, %v1042, 0
        %v2073 = vsel %vm1895, %v1044, 0
        %v2075 = vsel %vm1895, %v1046, 0
        %v2077 = vsel %vm1895, %v1048, 0
        %v2079 = vsel %vm1895, %v1050, 0
        %v2081 = vsel %vm1895, %v1052, 0
        %v2083 = vsel %vm1895, %v1054, 0
        %v2085 = vsel %vm1895, %v1056, 0
        %v2087 = vsel %vm1895, %v1058, 0
        %v2089 = vsel %vm1895, %v1060, 0
        %2091 = vmatprep.subr.bf16.mxu0 0
        %2092 = vmatpush1.bf16.msra.mxu0 %v2063
        %2093 = vmatprep.subr.bf16.mxu0 0
        %2094 = vmatpush1.bf16.msra.mxu0 0
        %2095 = vmatprep.subr.bf16.mxu0 0
        %2096 = vmatpush1.bf16.msra.mxu0 0
        %2097 = vmatprep.subr.bf16.mxu0 0
        %2098 = vmatpush1.bf16.msra.mxu0 0
        %2099 = vmatprep.subr.bf16.mxu0 0
        %2100 = vmatpush1.bf16.msra.mxu0 0
        %2101 = vmatprep.subr.bf16.mxu0 0
        %2102 = vmatpush1.bf16.msra.mxu0 0
        %2103 = vmatprep.subr.bf16.mxu0 0
        %2104 = vmatpush1.bf16.msra.mxu0 0
        %2105 = vmatprep.subr.bf16.mxu0 0
        %2106 = vmatpush1.bf16.msra.mxu0 0
        %2107 = vmatprep.subr.bf16.mxu0 0
        %2108 = vmatpush1.bf16.msra.mxu0 0
        %2109 = vmatprep.subr.bf16.mxu0 0
        %2110 = vmatpush1.bf16.msra.mxu0 0
        %2111 = vmatprep.subr.bf16.mxu0 0
        %2112 = vmatpush1.bf16.msra.mxu0 0
        %2113 = vmatprep.subr.bf16.mxu0 0
        %2114 = vmatpush1.bf16.msra.mxu0 0
        %2115 = vmatprep.subr.bf16.mxu0 0
        %2116 = vmatpush1.bf16.msra.mxu0 0
        %2117 = vmatprep.subr.bf16.mxu0 0
        %2118 = vmatpush1.bf16.msra.mxu0 0
        %2119 = vmatprep.subr.bf16.mxu0 0
        %2120 = vmatpush1.bf16.msra.mxu0 0
        %2121 = vmatprep.subr.bf16.mxu0 0
        %2122 = vmatpush1.bf16.msra.mxu0 0
        %2123 = vmatprep.mubr.bf16.mxu0 0
        %2124 = vmatmul.mubr.bf16.gmra.mrb[0].mxu0 %v2065
        %v2125 = vpop.f32.mrb[0].mxu0
        %v2126 = vadd.f32 %v1957, %v2125
        %v2127 = vpop.f32.mrb[0].mxu0
        %v2128 = vpop.f32.mrb[0].mxu0
        %v2129 = vadd.f32 %v1960, %v2128
        %v2130 = vpop.f32.mrb[0].mxu0
        %2131 = vmatprep.mubr.bf16.mxu0 0
        %2132 = vmatmul.mubr.bf16.gmra.mrb[0].mxu0 %v2067
        %v2133 = vpop.f32.mrb[0].mxu0
        %v2134 = vadd.f32 %v1965, %v2133
        %v2135 = vpop.f32.mrb[0].mxu0
        %v2136 = vpop.f32.mrb[0].mxu0
        %v2137 = vadd.f32 %v1968, %v2136
        %v2138 = vpop.f32.mrb[0].mxu0
        %2139 = vmatprep.mubr.bf16.mxu0 0
        %2140 = vmatmul.mubr.bf16.gmra.mrb[0].mxu0 %v2069
        %v2141 = vpop.f32.mrb[0].mxu0
        %v2142 = vadd.f32 %v1973, %v2141
        %v2143 = vpop.f32.mrb[0].mxu0
        %v2144 = vpop.f32.mrb[0].mxu0
        %v2145 = vadd.f32 %v1976, %v2144
        %v2146 = vpop.f32.mrb[0].mxu0
        %2147 = vmatprep.mubr.bf16.mxu0 0
        %2148 = vmatmul.mubr.bf16.gmra.mrb[0].mxu0 %v2071
        %v2149 = vpop.f32.mrb[0].mxu0
        %v2150 = vadd.f32 %v1981, %v2149
        %v2151 = vpop.f32.mrb[0].mxu0
        %v2152 = vpop.f32.mrb[0].mxu0
        %v2153 = vadd.f32 %v1984, %v2152
        %v2154 = vpop.f32.mrb[0].mxu0
        %2155 = vmatprep.mubr.bf16.mxu0 0
        %2156 = vmatmul.mubr.bf16.gmra.mrb[0].mxu0 %v2073
        %v2157 = vpop.f32.mrb[0].mxu0
        %v2158 = vadd.f32 %v1989, %v2157
        %v2159 = vpop.f32.mrb[0].mxu0
        %v2160 = vpop.f32.mrb[0].mxu0
        %v2161 = vadd.f32 %v1992, %v2160
        %v2162 = vpop.f32.mrb[0].mxu0
        %2163 = vmatprep.mubr.bf16.mxu0 0
        %2164 = vmatmul.mubr.bf16.gmra.mrb[0].mxu0 %v2075
        %v2165 = vpop.f32.mrb[0].mxu0
        %v2166 = vadd.f32 %v1997, %v2165
        %v2167 = vpop.f32.mrb[0].mxu0
        %v2168 = vpop.f32.mrb[0].mxu0
        %v2169 = vadd.f32 %v2000, %v2168
        %v2170 = vpop.f32.mrb[0].mxu0
        %2171 = vmatprep.mubr.bf16.mxu0 0
        %2172 = vmatmul.mubr.bf16.gmra.mrb[0].mxu0 %v2077
        %v2173 = vpop.f32.mrb[0].mxu0
        %v2174 = vadd.f32 %v2005, %v2173
        %v2175 = vpop.f32.mrb[0].mxu0
        %v2176 = vpop.f32.mrb[0].mxu0
        %v2177 = vadd.f32 %v2008, %v2176
        %v2178 = vpop.f32.mrb[0].mxu0
        %2179 = vmatprep.mubr.bf16.mxu0 0
        %2180 = vmatmul.mubr.bf16.gmra.mrb[0].mxu0 %v2079
        %v2181 = vpop.f32.mrb[0].mxu0
        %v2182 = vadd.f32 %v2013, %v2181
        %v2183 = vpop.f32.mrb[0].mxu0
        %v2184 = vpop.f32.mrb[0].mxu0
        %v2185 = vadd.f32 %v2016, %v2184
        %v2186 = vpop.f32.mrb[0].mxu0
        %2187 = vmatprep.mubr.bf16.mxu0 0
        %2188 = vmatmul.mubr.bf16.gmra.mrb[0].mxu0 %v2081
        %v2189 = vpop.f32.mrb[0].mxu0
        %v2190 = vadd.f32 %v2021, %v2189
        %v2191 = vpop.f32.mrb[0].mxu0
        %v2192 = vpop.f32.mrb[0].mxu0
        %v2193 = vadd.f32 %v2024, %v2192
        %v2194 = vpop.f32.mrb[0].mxu0
        %2195 = vmatprep.mubr.bf16.mxu0 0
        %2196 = vmatmul.mubr.bf16.gmra.mrb[0].mxu0 %v2083
        %v2197 = vpop.f32.mrb[0].mxu0
        %v2198 = vadd.f32 %v2029, %v2197
        %v2199 = vpop.f32.mrb[0].mxu0
        %v2200 = vpop.f32.mrb[0].mxu0
        %v2201 = vadd.f32 %v2032, %v2200
        %v2202 = vpop.f32.mrb[0].mxu0
        %2203 = vmatprep.mubr.bf16.mxu0 0
        %2204 = vmatmul.mubr.bf16.gmra.mrb[0].mxu0 %v2085
        %v2205 = vpop.f32.mrb[0].mxu0
        %v2206 = vadd.f32 %v2037, %v2205
        %v2207 = vpop.f32.mrb[0].mxu0
        %v2208 = vpop.f32.mrb[0].mxu0
        %v2209 = vadd.f32 %v2040, %v2208
        %v2210 = vpop.f32.mrb[0].mxu0
        %2211 = vmatprep.mubr.bf16.mxu0 0
        %2212 = vmatmul.mubr.bf16.gmra.mrb[0].mxu0 %v2087
        %v2213 = vpop.f32.mrb[0].mxu0
        %v2214 = vadd.f32 %v2045, %v2213
        %v2215 = vpop.f32.mrb[0].mxu0
        %v2216 = vpop.f32.mrb[0].mxu0
        %v2217 = vadd.f32 %v2048, %v2216
        %v2218 = vpop.f32.mrb[0].mxu0
        %2219 = vmatprep.mubr.bf16.mxu0 0
        %2220 = vmatmul.mubr.bf16.gmra.mrb[0].mxu0 %v2089
        %v2221 = vpop.f32.mrb[0].mxu0
        %v2222 = vadd.f32 %v2053, %v2221
        %v2223 = vpop.f32.mrb[0].mxu0
        %v2224 = vpop.f32.mrb[0].mxu0
        %v2225 = vadd.f32 %v2056, %v2224
        %v2226 = vpop.f32.mrb[0].mxu0
        %2227 = vdwg.mxu0
        %s2228 = sadd.s32 %s232, 2
        %s2229 = smul.u32 %s2228, 3
        %s2230 = smul.addr %s2229, 4
        %s2231 = scalar_lea.vmem %s199, %s2230 [#allocation2]
        %v2232 = vld [vmem:[%s2231] sm:$0xf]
        %v2233 = vld [vmem:[%s2231 + $0x4] sm:$0xf]
        %v2234 = vld [vmem:[%s2231 + $0xc] sm:$0xf]
        %v2235 = vld [vmem:[%s2231 + $0x10] sm:$0xf]
        %v2236 = vld [vmem:[%s2231 + $0x18] sm:$0xf]
        %v2237 = vld [vmem:[%s2231 + $0x1c] sm:$0xf]
        %v2238 = vld [vmem:[%s2231 + $0x24] sm:$0xf]
        %v2239 = vld [vmem:[%s2231 + $0x28] sm:$0xf]
        %v2240 = vld [vmem:[%s2231 + $0x30] sm:$0xf]
        %v2241 = vld [vmem:[%s2231 + $0x34] sm:$0xf]
        %v2242 = vld [vmem:[%s2231 + $0x3c] sm:$0xf]
        %v2243 = vld [vmem:[%s2231 + $0x40] sm:$0xf]
        %v2244 = vld [vmem:[%s2231 + $0x48] sm:$0xf]
        %v2245 = vld [vmem:[%s2231 + $0x4c] sm:$0xf]
        %v2246 = vld [vmem:[%s2231 + $0x54] sm:$0xf]
        %v2247 = vld [vmem:[%s2231 + $0x58] sm:$0xf]
        %v2248 = vld [vmem:[%s2231 + $0x60] sm:$0xf]
        %v2249 = vld [vmem:[%s2231 + $0x64] sm:$0xf]
        %v2250 = vld [vmem:[%s2231 + $0x6c] sm:$0xf]
        %v2251 = vld [vmem:[%s2231 + $0x70] sm:$0xf]
        %v2252 = vld [vmem:[%s2231 + $0x78] sm:$0xf]
        %v2253 = vld [vmem:[%s2231 + $0x7c] sm:$0xf]
        %v2254 = vld [vmem:[%s2231 + $0x84] sm:$0xf]
        %v2255 = vld [vmem:[%s2231 + $0x88] sm:$0xf]
        %v2256 = vld [vmem:[%s2231 + $0x90] sm:$0xf]
        %v2257 = vld [vmem:[%s2231 + $0x94] sm:$0xf]
        %v2258 = vld [vmem:[%s2231 + $0x8] sm:$0x1]
        %v2259 = vld [vmem:[%s2231 + $0x14] sm:$0x1]
        %v2260 = vld [vmem:[%s2231 + $0x20] sm:$0x1]
        %v2261 = vld [vmem:[%s2231 + $0x2c] sm:$0x1]
        %v2262 = vld [vmem:[%s2231 + $0x38] sm:$0x1]
        %v2263 = vld [vmem:[%s2231 + $0x44] sm:$0x1]
        %v2264 = vld [vmem:[%s2231 + $0x50] sm:$0x1]
        %v2265 = vld [vmem:[%s2231 + $0x5c] sm:$0x1]
        %v2266 = vld [vmem:[%s2231 + $0x68] sm:$0x1]
        %v2267 = vld [vmem:[%s2231 + $0x74] sm:$0x1]
        %v2268 = vld [vmem:[%s2231 + $0x80] sm:$0x1]
        %v2269 = vld [vmem:[%s2231 + $0x8c] sm:$0x1]
        %v2270 = vld [vmem:[%s2231 + $0x98] sm:$0x1]
        %v2271 = vld [vmem:[%s2231] sm:$0xe]
        %v2272 = vld [vmem:[%s2231 + $0xc] sm:$0xe]
        %v2273 = vld [vmem:[%s2231 + $0x18] sm:$0xe]
        %v2274 = vld [vmem:[%s2231 + $0x24] sm:$0xe]
        %v2275 = vld [vmem:[%s2231 + $0x30] sm:$0xe]
        %v2276 = vld [vmem:[%s2231 + $0x3c] sm:$0xe]
        %v2277 = vld [vmem:[%s2231 + $0x48] sm:$0xe]
        %v2278 = vld [vmem:[%s2231 + $0x54] sm:$0xe]
        %v2279 = vld [vmem:[%s2231 + $0x60] sm:$0xe]
        %v2280 = vld [vmem:[%s2231 + $0x6c] sm:$0xe]
        %v2281 = vld [vmem:[%s2231 + $0x78] sm:$0xe]
        %v2282 = vld [vmem:[%s2231 + $0x84] sm:$0xe]
        %v2283 = vld [vmem:[%s2231 + $0x90] sm:$0xe]
        %v2284 = vld [vmem:[%s2231 + $0x8] sm:$0x3]
        %v2285 = vld [vmem:[%s2231 + $0x14] sm:$0x3]
        %v2286 = vld [vmem:[%s2231 + $0x20] sm:$0x3]
        %v2287 = vld [vmem:[%s2231 + $0x2c] sm:$0x3]
        %v2288 = vld [vmem:[%s2231 + $0x38] sm:$0x3]
        %v2289 = vld [vmem:[%s2231 + $0x44] sm:$0x3]
        %v2290 = vld [vmem:[%s2231 + $0x50] sm:$0x3]
        %v2291 = vld [vmem:[%s2231 + $0x5c] sm:$0x3]
        %v2292 = vld [vmem:[%s2231 + $0x68] sm:$0x3]
        %v2293 = vld [vmem:[%s2231 + $0x74] sm:$0x3]
        %v2294 = vld [vmem:[%s2231 + $0x80] sm:$0x3]
        %v2295 = vld [vmem:[%s2231 + $0x8c] sm:$0x3]
        %v2296 = vld [vmem:[%s2231 + $0x98] sm:$0x3]
        %v2323 = vunpack.c.l.b16 %v2232
        %v2324 = vunpack.c.l.b16 %v2233
        %v2325 = vunpack.c.l.b16 %v2234
        %v2326 = vunpack.c.l.b16 %v2235
        %v2327 = vunpack.c.l.b16 %v2236
        %v2328 = vunpack.c.l.b16 %v2237
        %v2329 = vunpack.c.l.b16 %v2238
        %v2330 = vunpack.c.l.b16 %v2239
        %v2331 = vunpack.c.l.b16 %v2240
        %v2332 = vunpack.c.l.b16 %v2241
        %v2333 = vunpack.c.l.b16 %v2242
        %v2334 = vunpack.c.l.b16 %v2243
        %v2335 = vunpack.c.l.b16 %v2244
        %v2336 = vunpack.c.l.b16 %v2245
        %v2337 = vunpack.c.l.b16 %v2246
        %v2338 = vunpack.c.l.b16 %v2247
        %v2339 = vunpack.c.l.b16 %v2248
        %v2340 = vunpack.c.l.b16 %v2249
        %v2341 = vunpack.c.l.b16 %v2250
        %v2342 = vunpack.c.l.b16 %v2251
        %v2343 = vunpack.c.l.b16 %v2252
        %v2344 = vunpack.c.l.b16 %v2253
        %v2345 = vunpack.c.l.b16 %v2254
        %v2346 = vunpack.c.l.b16 %v2255
        %v2347 = vunpack.c.l.b16 %v2256
        %v2348 = vunpack.c.l.b16 %v2257
        %v2349 = vpack.c.b16 %v2324, %v2323
        %v2350 = vpack.c.b16 %v2326, %v2325
        %v2351 = vpack.c.b16 %v2328, %v2327
        %v2352 = vpack.c.b16 %v2330, %v2329
        %v2353 = vpack.c.b16 %v2332, %v2331
        %v2354 = vpack.c.b16 %v2334, %v2333
        %v2355 = vpack.c.b16 %v2336, %v2335
        %v2356 = vpack.c.b16 %v2338, %v2337
        %v2357 = vpack.c.b16 %v2340, %v2339
        %v2358 = vpack.c.b16 %v2342, %v2341
        %v2359 = vpack.c.b16 %v2344, %v2343
        %v2360 = vpack.c.b16 %v2346, %v2345
        %v2361 = vpack.c.b16 %v2348, %v2347
        %v2375 = vunpack.c.l.b16 %v2258
        %v2376 = vunpack.c.l.b16 %v2259
        %v2377 = vunpack.c.l.b16 %v2260
        %v2378 = vunpack.c.l.b16 %v2261
        %v2379 = vunpack.c.l.b16 %v2262
        %v2380 = vunpack.c.l.b16 %v2263
        %v2381 = vunpack.c.l.b16 %v2264
        %v2382 = vunpack.c.l.b16 %v2265
        %v2383 = vunpack.c.l.b16 %v2266
        %v2384 = vunpack.c.l.b16 %v2267
        %v2385 = vunpack.c.l.b16 %v2268
        %v2386 = vunpack.c.l.b16 %v2269
        %v2387 = vunpack.c.l.b16 %v2270
        %v2388 = vpack.c.b16 %v2375, %v2375
        %v2389 = vpack.c.b16 %v2376, %v2376
        %v2390 = vpack.c.b16 %v2377, %v2377
        %v2391 = vpack.c.b16 %v2378, %v2378
        %v2392 = vpack.c.b16 %v2379, %v2379
        %v2393 = vpack.c.b16 %v2380, %v2380
        %v2394 = vpack.c.b16 %v2381, %v2381
        %v2395 = vpack.c.b16 %v2382, %v2382
        %v2396 = vpack.c.b16 %v2383, %v2383
        %v2397 = vpack.c.b16 %v2384, %v2384
        %v2398 = vpack.c.b16 %v2385, %v2385
        %v2399 = vpack.c.b16 %v2386, %v2386
        %v2400 = vpack.c.b16 %v2387, %v2387
        %v2402 = vshrl.u32 %v2349, 16
        %v2404 = vshll.u32 %v2349, 16
        %v2406 = vrot.slane %v2404, 1
        %v2407 = vor.u32 %v2402, %v2406
        %v2409 = vshll.u32 %v2388, 16
        %v2411 = vrot.slane %v2409, 1
        %v2412 = vsel %vm405, %v2407, %v2411
        %v2414 = vshrl.u32 %v2350, 16
        %v2416 = vshll.u32 %v2350, 16
        %v2418 = vrot.slane %v2416, 1
        %v2419 = vor.u32 %v2414, %v2418
        %v2421 = vshll.u32 %v2389, 16
        %v2423 = vrot.slane %v2421, 1
        %v2424 = vsel %vm405, %v2419, %v2423
        %v2426 = vshrl.u32 %v2351, 16
        %v2428 = vshll.u32 %v2351, 16
        %v2430 = vrot.slane %v2428, 1
        %v2431 = vor.u32 %v2426, %v2430
        %v2433 = vshll.u32 %v2390, 16
        %v2435 = vrot.slane %v2433, 1
        %v2436 = vsel %vm405, %v2431, %v2435
        %v2438 = vshrl.u32 %v2352, 16
        %v2440 = vshll.u32 %v2352, 16
        %v2442 = vrot.slane %v2440, 1
        %v2443 = vor.u32 %v2438, %v2442
        %v2445 = vshll.u32 %v2391, 16
        %v2447 = vrot.slane %v2445, 1
        %v2448 = vsel %vm405, %v2443, %v2447
        %v2450 = vshrl.u32 %v2353, 16
        %v2452 = vshll.u32 %v2353, 16
        %v2454 = vrot.slane %v2452, 1
        %v2455 = vor.u32 %v2450, %v2454
        %v2457 = vshll.u32 %v2392, 16
        %v2459 = vrot.slane %v2457, 1
        %v2460 = vsel %vm405, %v2455, %v2459
        %v2462 = vshrl.u32 %v2354, 16
        %v2464 = vshll.u32 %v2354, 16
        %v2466 = vrot.slane %v2464, 1
        %v2467 = vor.u32 %v2462, %v2466
        %v2469 = vshll.u32 %v2393, 16
        %v2471 = vrot.slane %v2469, 1
        %v2472 = vsel %vm405, %v2467, %v2471
        %v2474 = vshrl.u32 %v2355, 16
        %v2476 = vshll.u32 %v2355, 16
        %v2478 = vrot.slane %v2476, 1
        %v2479 = vor.u32 %v2474, %v2478
        %v2481 = vshll.u32 %v2394, 16
        %v2483 = vrot.slane %v2481, 1
        %v2484 = vsel %vm405, %v2479, %v2483
        %v2486 = vshrl.u32 %v2356, 16
        %v2488 = vshll.u32 %v2356, 16
        %v2490 = vrot.slane %v2488, 1
        %v2491 = vor.u32 %v2486, %v2490
        %v2493 = vshll.u32 %v2395, 16
        %v2495 = vrot.slane %v2493, 1
        %v2496 = vsel %vm405, %v2491, %v2495
        %v2498 = vshrl.u32 %v2357, 16
        %v2500 = vshll.u32 %v2357, 16
        %v2502 = vrot.slane %v2500, 1
        %v2503 = vor.u32 %v2498, %v2502
        %v2505 = vshll.u32 %v2396, 16
        %v2507 = vrot.slane %v2505, 1
        %v2508 = vsel %vm405, %v2503, %v2507
        %v2510 = vshrl.u32 %v2358, 16
        %v2512 = vshll.u32 %v2358, 16
        %v2514 = vrot.slane %v2512, 1
        %v2515 = vor.u32 %v2510, %v2514
        %v2517 = vshll.u32 %v2397, 16
        %v2519 = vrot.slane %v2517, 1
        %v2520 = vsel %vm405, %v2515, %v2519
        %v2522 = vshrl.u32 %v2359, 16
        %v2524 = vshll.u32 %v2359, 16
        %v2526 = vrot.slane %v2524, 1
        %v2527 = vor.u32 %v2522, %v2526
        %v2529 = vshll.u32 %v2398, 16
        %v2531 = vrot.slane %v2529, 1
        %v2532 = vsel %vm405, %v2527, %v2531
        %v2534 = vshrl.u32 %v2360, 16
        %v2536 = vshll.u32 %v2360, 16
        %v2538 = vrot.slane %v2536, 1
        %v2539 = vor.u32 %v2534, %v2538
        %v2541 = vshll.u32 %v2399, 16
        %v2543 = vrot.slane %v2541, 1
        %v2544 = vsel %vm405, %v2539, %v2543
        %v2546 = vshrl.u32 %v2361, 16
        %v2548 = vshll.u32 %v2361, 16
        %v2550 = vrot.slane %v2548, 1
        %v2551 = vor.u32 %v2546, %v2550
        %v2553 = vshll.u32 %v2400, 16
        %v2555 = vrot.slane %v2553, 1
        %v2556 = vsel %vm405, %v2551, %v2555
        %2557 = vrot.lane.b32.xlu0 %v2412, 4
        %v2558 = vpop.permute.xlu0 %2557
        %2559 = vrot.lane.b32.xlu0 %v2424, 4
        %v2560 = vpop.permute.xlu0 %2559
        %2561 = vrot.lane.b32.xlu0 %v2436, 4
        %v2562 = vpop.permute.xlu0 %2561
        %2563 = vrot.lane.b32.xlu0 %v2448, 4
        %v2564 = vpop.permute.xlu0 %2563
        %2565 = vrot.lane.b32.xlu0 %v2460, 4
        %v2566 = vpop.permute.xlu0 %2565
        %2567 = vrot.lane.b32.xlu0 %v2472, 4
        %v2568 = vpop.permute.xlu0 %2567
        %2569 = vrot.lane.b32.xlu0 %v2484, 4
        %v2570 = vpop.permute.xlu0 %2569
        %2571 = vrot.lane.b32.xlu0 %v2496, 4
        %v2572 = vpop.permute.xlu0 %2571
        %2573 = vrot.lane.b32.xlu0 %v2508, 4
        %v2574 = vpop.permute.xlu0 %2573
        %2575 = vrot.lane.b32.xlu0 %v2520, 4
        %v2576 = vpop.permute.xlu0 %2575
        %2577 = vrot.lane.b32.xlu0 %v2532, 4
        %v2578 = vpop.permute.xlu0 %2577
        %2579 = vrot.lane.b32.xlu0 %v2544, 4
        %v2580 = vpop.permute.xlu0 %2579
        %2581 = vrot.lane.b32.xlu0 %v2556, 4
        %v2582 = vpop.permute.xlu0 %2581
        %v2596 = vunpack.c.l.b16 %v2271
        %v2597 = vunpack.c.l.b16 %v2272
        %v2598 = vunpack.c.l.b16 %v2273
        %v2599 = vunpack.c.l.b16 %v2274
        %v2600 = vunpack.c.l.b16 %v2275
        %v2601 = vunpack.c.l.b16 %v2276
        %v2602 = vunpack.c.l.b16 %v2277
        %v2603 = vunpack.c.l.b16 %v2278
        %v2604 = vunpack.c.l.b16 %v2279
        %v2605 = vunpack.c.l.b16 %v2280
        %v2606 = vunpack.c.l.b16 %v2281
        %v2607 = vunpack.c.l.b16 %v2282
        %v2608 = vunpack.c.l.b16 %v2283
        %v2609 = vpack.c.b16 %v2324, %v2596
        %v2610 = vpack.c.b16 %v2326, %v2597
        %v2611 = vpack.c.b16 %v2328, %v2598
        %v2612 = vpack.c.b16 %v2330, %v2599
        %v2613 = vpack.c.b16 %v2332, %v2600
        %v2614 = vpack.c.b16 %v2334, %v2601
        %v2615 = vpack.c.b16 %v2336, %v2602
        %v2616 = vpack.c.b16 %v2338, %v2603
        %v2617 = vpack.c.b16 %v2340, %v2604
        %v2618 = vpack.c.b16 %v2342, %v2605
        %v2619 = vpack.c.b16 %v2344, %v2606
        %v2620 = vpack.c.b16 %v2346, %v2607
        %v2621 = vpack.c.b16 %v2348, %v2608
        %v2622 = vrot.slane %v2609, 1
        %v2623 = vrot.slane %v2388, 1
        %v2624 = vsel %vm627, %v2622, %v2623
        %v2625 = vrot.slane %v2610, 1
        %v2626 = vrot.slane %v2389, 1
        %v2627 = vsel %vm627, %v2625, %v2626
        %v2628 = vrot.slane %v2611, 1
        %v2629 = vrot.slane %v2390, 1
        %v2630 = vsel %vm627, %v2628, %v2629
        %v2631 = vrot.slane %v2612, 1
        %v2632 = vrot.slane %v2391, 1
        %v2633 = vsel %vm627, %v2631, %v2632
        %v2634 = vrot.slane %v2613, 1
        %v2635 = vrot.slane %v2392, 1
        %v2636 = vsel %vm627, %v2634, %v2635
        %v2637 = vrot.slane %v2614, 1
        %v2638 = vrot.slane %v2393, 1
        %v2639 = vsel %vm627, %v2637, %v2638
        %v2640 = vrot.slane %v2615, 1
        %v2641 = vrot.slane %v2394, 1
        %v2642 = vsel %vm627, %v2640, %v2641
        %v2643 = vrot.slane %v2616, 1
        %v2644 = vrot.slane %v2395, 1
        %v2645 = vsel %vm627, %v2643, %v2644
        %v2646 = vrot.slane %v2617, 1
        %v2647 = vrot.slane %v2396, 1
        %v2648 = vsel %vm627, %v2646, %v2647
        %v2649 = vrot.slane %v2618, 1
        %v2650 = vrot.slane %v2397, 1
        %v2651 = vsel %vm627, %v2649, %v2650
        %v2652 = vrot.slane %v2619, 1
        %v2653 = vrot.slane %v2398, 1
        %v2654 = vsel %vm627, %v2652, %v2653
        %v2655 = vrot.slane %v2620, 1
        %v2656 = vrot.slane %v2399, 1
        %v2657 = vsel %vm627, %v2655, %v2656
        %v2658 = vrot.slane %v2621, 1
        %v2659 = vrot.slane %v2400, 1
        %v2660 = vsel %vm627, %v2658, %v2659
        %2661 = vrot.lane.b32.xlu0 %v2624, 8
        %v2662 = vpop.permute.xlu0 %2661
        %2663 = vrot.lane.b32.xlu0 %v2627, 8
        %v2664 = vpop.permute.xlu0 %2663
        %2665 = vrot.lane.b32.xlu0 %v2630, 8
        %v2666 = vpop.permute.xlu0 %2665
        %2667 = vrot.lane.b32.xlu0 %v2633, 8
        %v2668 = vpop.permute.xlu0 %2667
        %2669 = vrot.lane.b32.xlu0 %v2636, 8
        %v2670 = vpop.permute.xlu0 %2669
        %2671 = vrot.lane.b32.xlu0 %v2639, 8
        %v2672 = vpop.permute.xlu0 %2671
        %2673 = vrot.lane.b32.xlu0 %v2642, 8
        %v2674 = vpop.permute.xlu0 %2673
        %2675 = vrot.lane.b32.xlu0 %v2645, 8
        %v2676 = vpop.permute.xlu0 %2675
        %2677 = vrot.lane.b32.xlu0 %v2648, 8
        %v2678 = vpop.permute.xlu0 %2677
        %2679 = vrot.lane.b32.xlu0 %v2651, 8
        %v2680 = vpop.permute.xlu0 %2679
        %2681 = vrot.lane.b32.xlu0 %v2654, 8
        %v2682 = vpop.permute.xlu0 %2681
        %2683 = vrot.lane.b32.xlu0 %v2657, 8
        %v2684 = vpop.permute.xlu0 %2683
        %2685 = vrot.lane.b32.xlu0 %v2660, 8
        %v2686 = vpop.permute.xlu0 %2685
        %v2700 = vunpack.c.l.b16 %v2284
        %v2701 = vunpack.c.l.b16 %v2285
        %v2702 = vunpack.c.l.b16 %v2286
        %v2703 = vunpack.c.l.b16 %v2287
        %v2704 = vunpack.c.l.b16 %v2288
        %v2705 = vunpack.c.l.b16 %v2289
        %v2706 = vunpack.c.l.b16 %v2290
        %v2707 = vunpack.c.l.b16 %v2291
        %v2708 = vunpack.c.l.b16 %v2292
        %v2709 = vunpack.c.l.b16 %v2293
        %v2710 = vunpack.c.l.b16 %v2294
        %v2711 = vunpack.c.l.b16 %v2295
        %v2712 = vunpack.c.l.b16 %v2296
        %v2713 = vpack.c.b16 %v2700, %v2700
        %v2714 = vpack.c.b16 %v2701, %v2701
        %v2715 = vpack.c.b16 %v2702, %v2702
        %v2716 = vpack.c.b16 %v2703, %v2703
        %v2717 = vpack.c.b16 %v2704, %v2704
        %v2718 = vpack.c.b16 %v2705, %v2705
        %v2719 = vpack.c.b16 %v2706, %v2706
        %v2720 = vpack.c.b16 %v2707, %v2707
        %v2721 = vpack.c.b16 %v2708, %v2708
        %v2722 = vpack.c.b16 %v2709, %v2709
        %v2723 = vpack.c.b16 %v2710, %v2710
        %v2724 = vpack.c.b16 %v2711, %v2711
        %v2725 = vpack.c.b16 %v2712, %v2712
        %v2727 = vshrl.u32 %v2609, 16
        %v2729 = vrot.slane %v2727, 1
        %v2730 = vshll.u32 %v2609, 16
        %v2732 = vrot.slane %v2730, 2
        %v2733 = vor.u32 %v2729, %v2732
        %v2735 = vshrl.u32 %v2713, 16
        %v2737 = vrot.slane %v2735, 1
        %v2738 = vshll.u32 %v2713, 16
        %v2740 = vrot.slane %v2738, 2
        %v2741 = vor.u32 %v2737, %v2740
        %v2742 = vsel %vm732, %v2733, %v2741
        %v2744 = vshrl.u32 %v2610, 16
        %v2746 = vrot.slane %v2744, 1
        %v2747 = vshll.u32 %v2610, 16
        %v2749 = vrot.slane %v2747, 2
        %v2750 = vor.u32 %v2746, %v2749
        %v2752 = vshrl.u32 %v2714, 16
        %v2754 = vrot.slane %v2752, 1
        %v2755 = vshll.u32 %v2714, 16
        %v2757 = vrot.slane %v2755, 2
        %v2758 = vor.u32 %v2754, %v2757
        %v2759 = vsel %vm732, %v2750, %v2758
        %v2761 = vshrl.u32 %v2611, 16
        %v2763 = vrot.slane %v2761, 1
        %v2764 = vshll.u32 %v2611, 16
        %v2766 = vrot.slane %v2764, 2
        %v2767 = vor.u32 %v2763, %v2766
        %v2769 = vshrl.u32 %v2715, 16
        %v2771 = vrot.slane %v2769, 1
        %v2772 = vshll.u32 %v2715, 16
        %v2774 = vrot.slane %v2772, 2
        %v2775 = vor.u32 %v2771, %v2774
        %v2776 = vsel %vm732, %v2767, %v2775
        %v2778 = vshrl.u32 %v2612, 16
        %v2780 = vrot.slane %v2778, 1
        %v2781 = vshll.u32 %v2612, 16
        %v2783 = vrot.slane %v2781, 2
        %v2784 = vor.u32 %v2780, %v2783
        %v2786 = vshrl.u32 %v2716, 16
        %v2788 = vrot.slane %v2786, 1
        %v2789 = vshll.u32 %v2716, 16
        %v2791 = vrot.slane %v2789, 2
        %v2792 = vor.u32 %v2788, %v2791
        %v2793 = vsel %vm732, %v2784, %v2792
        %v2795 = vshrl.u32 %v2613, 16
        %v2797 = vrot.slane %v2795, 1
        %v2798 = vshll.u32 %v2613, 16
        %v2800 = vrot.slane %v2798, 2
        %v2801 = vor.u32 %v2797, %v2800
        %v2803 = vshrl.u32 %v2717, 16
        %v2805 = vrot.slane %v2803, 1
        %v2806 = vshll.u32 %v2717, 16
        %v2808 = vrot.slane %v2806, 2
        %v2809 = vor.u32 %v2805, %v2808
        %v2810 = vsel %vm732, %v2801, %v2809
        %v2812 = vshrl.u32 %v2614, 16
        %v2814 = vrot.slane %v2812, 1
        %v2815 = vshll.u32 %v2614, 16
        %v2817 = vrot.slane %v2815, 2
        %v2818 = vor.u32 %v2814, %v2817
        %v2820 = vshrl.u32 %v2718, 16
        %v2822 = vrot.slane %v2820, 1
        %v2823 = vshll.u32 %v2718, 16
        %v2825 = vrot.slane %v2823, 2
        %v2826 = vor.u32 %v2822, %v2825
        %v2827 = vsel %vm732, %v2818, %v2826
        %v2829 = vshrl.u32 %v2615, 16
        %v2831 = vrot.slane %v2829, 1
        %v2832 = vshll.u32 %v2615, 16
        %v2834 = vrot.slane %v2832, 2
        %v2835 = vor.u32 %v2831, %v2834
        %v2837 = vshrl.u32 %v2719, 16
        %v2839 = vrot.slane %v2837, 1
        %v2840 = vshll.u32 %v2719, 16
        %v2842 = vrot.slane %v2840, 2
        %v2843 = vor.u32 %v2839, %v2842
        %v2844 = vsel %vm732, %v2835, %v2843
        %v2846 = vshrl.u32 %v2616, 16
        %v2848 = vrot.slane %v2846, 1
        %v2849 = vshll.u32 %v2616, 16
        %v2851 = vrot.slane %v2849, 2
        %v2852 = vor.u32 %v2848, %v2851
        %v2854 = vshrl.u32 %v2720, 16
        %v2856 = vrot.slane %v2854, 1
        %v2857 = vshll.u32 %v2720, 16
        %v2859 = vrot.slane %v2857, 2
        %v2860 = vor.u32 %v2856, %v2859
        %v2861 = vsel %vm732, %v2852, %v2860
        %v2863 = vshrl.u32 %v2617, 16
        %v2865 = vrot.slane %v2863, 1
        %v2866 = vshll.u32 %v2617, 16
        %v2868 = vrot.slane %v2866, 2
        %v2869 = vor.u32 %v2865, %v2868
        %v2871 = vshrl.u32 %v2721, 16
        %v2873 = vrot.slane %v2871, 1
        %v2874 = vshll.u32 %v2721, 16
        %v2876 = vrot.slane %v2874, 2
        %v2877 = vor.u32 %v2873, %v2876
        %v2878 = vsel %vm732, %v2869, %v2877
        %v2880 = vshrl.u32 %v2618, 16
        %v2882 = vrot.slane %v2880, 1
        %v2883 = vshll.u32 %v2618, 16
        %v2885 = vrot.slane %v2883, 2
        %v2886 = vor.u32 %v2882, %v2885
        %v2888 = vshrl.u32 %v2722, 16
        %v2890 = vrot.slane %v2888, 1
        %v2891 = vshll.u32 %v2722, 16
        %v2893 = vrot.slane %v2891, 2
        %v2894 = vor.u32 %v2890, %v2893
        %v2895 = vsel %vm732, %v2886, %v2894
        %v2897 = vshrl.u32 %v2619, 16
        %v2899 = vrot.slane %v2897, 1
        %v2900 = vshll.u32 %v2619, 16
        %v2902 = vrot.slane %v2900, 2
        %v2903 = vor.u32 %v2899, %v2902
        %v2905 = vshrl.u32 %v2723, 16
        %v2907 = vrot.slane %v2905, 1
        %v2908 = vshll.u32 %v2723, 16
        %v2910 = vrot.slane %v2908, 2
        %v2911 = vor.u32 %v2907, %v2910
        %v2912 = vsel %vm732, %v2903, %v2911
        %v2914 = vshrl.u32 %v2620, 16
        %v2916 = vrot.slane %v2914, 1
        %v2917 = vshll.u32 %v2620, 16
        %v2919 = vrot.slane %v2917, 2
        %v2920 = vor.u32 %v2916, %v2919
        %v2922 = vshrl.u32 %v2724, 16
        %v2924 = vrot.slane %v2922, 1
        %v2925 = vshll.u32 %v2724, 16
        %v2927 = vrot.slane %v2925, 2
        %v2928 = vor.u32 %v2924, %v2927
        %v2929 = vsel %vm732, %v2920, %v2928
        %v2931 = vshrl.u32 %v2621, 16
        %v2933 = vrot.slane %v2931, 1
        %v2934 = vshll.u32 %v2621, 16
        %v2936 = vrot.slane %v2934, 2
        %v2937 = vor.u32 %v2933, %v2936
        %v2939 = vshrl.u32 %v2725, 16
        %v2941 = vrot.slane %v2939, 1
        %v2942 = vshll.u32 %v2725, 16
        %v2944 = vrot.slane %v2942, 2
        %v2945 = vor.u32 %v2941, %v2944
        %v2946 = vsel %vm732, %v2937, %v2945
        %2947 = vrot.lane.b32.xlu0 %v2742, 12
        %v2948 = vpop.permute.xlu0 %2947
        %2949 = vrot.lane.b32.xlu0 %v2759, 12
        %v2950 = vpop.permute.xlu0 %2949
        %2951 = vrot.lane.b32.xlu0 %v2776, 12
        %v2952 = vpop.permute.xlu0 %2951
        %2953 = vrot.lane.b32.xlu0 %v2793, 12
        %v2954 = vpop.permute.xlu0 %2953
        %2955 = vrot.lane.b32.xlu0 %v2810, 12
        %v2956 = vpop.permute.xlu0 %2955
        %2957 = vrot.lane.b32.xlu0 %v2827, 12
        %v2958 = vpop.permute.xlu0 %2957
        %2959 = vrot.lane.b32.xlu0 %v2844, 12
        %v2960 = vpop.permute.xlu0 %2959
        %2961 = vrot.lane.b32.xlu0 %v2861, 12
        %v2962 = vpop.permute.xlu0 %2961
        %2963 = vrot.lane.b32.xlu0 %v2878, 12
        %v2964 = vpop.permute.xlu0 %2963
        %2965 = vrot.lane.b32.xlu0 %v2895, 12
        %v2966 = vpop.permute.xlu0 %2965
        %2967 = vrot.lane.b32.xlu0 %v2912, 12
        %v2968 = vpop.permute.xlu0 %2967
        %2969 = vrot.lane.b32.xlu0 %v2929, 12
        %v2970 = vpop.permute.xlu0 %2969
        %2971 = vrot.lane.b32.xlu0 %v2946, 12
        %v2972 = vpop.permute.xlu0 %2971
        %v2974 = vsel %vm980, %v2349, %v2558
        %v2976 = vsel %vm980, %v2350, %v2560
        %v2978 = vsel %vm980, %v2351, %v2562
        %v2980 = vsel %vm980, %v2352, %v2564
        %v2982 = vsel %vm980, %v2353, %v2566
        %v2984 = vsel %vm980, %v2354, %v2568
        %v2986 = vsel %vm980, %v2355, %v2570
        %v2988 = vsel %vm980, %v2356, %v2572
        %v2990 = vsel %vm980, %v2357, %v2574
        %v2992 = vsel %vm980, %v2358, %v2576
        %v2994 = vsel %vm980, %v2359, %v2578
        %v2996 = vsel %vm980, %v2360, %v2580
        %v2998 = vsel %vm980, %v2361, %v2582
        %v3000 = vsel %vm1007, %v2974, %v2662
        %v3002 = vsel %vm1007, %v2976, %v2664
        %v3004 = vsel %vm1007, %v2978, %v2666
        %v3006 = vsel %vm1007, %v2980, %v2668
        %v3008 = vsel %vm1007, %v2982, %v2670
        %v3010 = vsel %vm1007, %v2984, %v2672
        %v3012 = vsel %vm1007, %v2986, %v2674
        %v3014 = vsel %vm1007, %v2988, %v2676
        %v3016 = vsel %vm1007, %v2990, %v2678
        %v3018 = vsel %vm1007, %v2992, %v2680
        %v3020 = vsel %vm1007, %v2994, %v2682
        %v3022 = vsel %vm1007, %v2996, %v2684
        %v3024 = vsel %vm1007, %v2998, %v2686
        %v3026 = vsel %vm1034, %v3000, %v2948
        %v3028 = vsel %vm1034, %v3002, %v2950
        %v3030 = vsel %vm1034, %v3004, %v2952
        %v3032 = vsel %vm1034, %v3006, %v2954
        %v3034 = vsel %vm1034, %v3008, %v2956
        %v3036 = vsel %vm1034, %v3010, %v2958
        %v3038 = vsel %vm1034, %v3012, %v2960
        %v3040 = vsel %vm1034, %v3014, %v2962
        %v3042 = vsel %vm1034, %v3016, %v2964
        %v3044 = vsel %vm1034, %v3018, %v2966
        %v3046 = vsel %vm1034, %v3020, %v2968
        %v3048 = vsel %vm1034, %v3022, %v2970
        %v3050 = vsel %vm1034, %v3024, %v2972
        %s3051 = scalar_lea.vmem [#allocation5], 16
        %v3052 = vld [vmem:[%s3051] sm:$0xf]
        %v3053 = vld [vmem:[%s3051 + $0x4] sm:$0xf]
        %v3056 = vunpack.c.l.b16 %v3052
        %v3057 = vunpack.c.l.b16 %v3053
        %v3058 = vpack.c.b16 %v3057, %v3056
        %v3060 = vsel %vm1895, %v3026, 0
        %v3062 = vsel %vm1895, %v3028, 0
        %v3064 = vsel %vm1895, %v3030, 0
        %v3066 = vsel %vm1895, %v3032, 0
        %v3068 = vsel %vm1895, %v3034, 0
        %v3070 = vsel %vm1895, %v3036, 0
        %v3072 = vsel %vm1895, %v3038, 0
        %v3074 = vsel %vm1895, %v3040, 0
        %v3076 = vsel %vm1895, %v3042, 0
        %v3078 = vsel %vm1895, %v3044, 0
        %v3080 = vsel %vm1895, %v3046, 0
        %v3082 = vsel %vm1895, %v3048, 0
        %v3084 = vsel %vm1895, %v3050, 0
        %3086 = vmatprep.subr.bf16.mxu0 0
        %3087 = vmatpush1.bf16.msra.mxu0 %v3058
        %3088 = vmatprep.subr.bf16.mxu0 0
        %3089 = vmatpush1.bf16.msra.mxu0 0
        %3090 = vmatprep.subr.bf16.mxu0 0
        %3091 = vmatpush1.bf16.msra.mxu0 0
        %3092 = vmatprep.subr.bf16.mxu0 0
        %3093 = vmatpush1.bf16.msra.mxu0 0
        %3094 = vmatprep.subr.bf16.mxu0 0
        %3095 = vmatpush1.bf16.msra.mxu0 0
        %3096 = vmatprep.subr.bf16.mxu0 0
        %3097 = vmatpush1.bf16.msra.mxu0 0
        %3098 = vmatprep.subr.bf16.mxu0 0
        %3099 = vmatpush1.bf16.msra.mxu0 0
        %3100 = vmatprep.subr.bf16.mxu0 0
        %3101 = vmatpush1.bf16.msra.mxu0 0
        %3102 = vmatprep.subr.bf16.mxu0 0
        %3103 = vmatpush1.bf16.msra.mxu0 0
        %3104 = vmatprep.subr.bf16.mxu0 0
        %3105 = vmatpush1.bf16.msra.mxu0 0
        %3106 = vmatprep.subr.bf16.mxu0 0
        %3107 = vmatpush1.bf16.msra.mxu0 0
        %3108 = vmatprep.subr.bf16.mxu0 0
        %3109 = vmatpush1.bf16.msra.mxu0 0
        %3110 = vmatprep.subr.bf16.mxu0 0
        %3111 = vmatpush1.bf16.msra.mxu0 0
        %3112 = vmatprep.subr.bf16.mxu0 0
        %3113 = vmatpush1.bf16.msra.mxu0 0
        %3114 = vmatprep.subr.bf16.mxu0 0
        %3115 = vmatpush1.bf16.msra.mxu0 0
        %3116 = vmatprep.subr.bf16.mxu0 0
        %3117 = vmatpush1.bf16.msra.mxu0 0
        %3118 = vmatprep.mubr.bf16.mxu0 0
        %3119 = vmatmul.mubr.bf16.gmra.mrb[0].mxu0 %v3060
        %v3120 = vpop.f32.mrb[0].mxu0
        %v3121 = vadd.f32 0.0, %v3120
        %v3122 = vpop.f32.mrb[0].mxu0
        %v3123 = vpop.f32.mrb[0].mxu0
        %v3124 = vadd.f32 0.0, %v3123
        %v3125 = vpop.f32.mrb[0].mxu0
        %3126 = vmatprep.mubr.bf16.mxu0 0
        %3127 = vmatmul.mubr.bf16.gmra.mrb[0].mxu0 %v3062
        %v3128 = vpop.f32.mrb[0].mxu0
        %v3129 = vadd.f32 0.0, %v3128
        %v3130 = vpop.f32.mrb[0].mxu0
        %v3131 = vpop.f32.mrb[0].mxu0
        %v3132 = vadd.f32 0.0, %v3131
        %v3133 = vpop.f32.mrb[0].mxu0
        %3134 = vmatprep.mubr.bf16.mxu0 0
        %3135 = vmatmul.mubr.bf16.gmra.mrb[0].mxu0 %v3064
        %v3136 = vpop.f32.mrb[0].mxu0
        %v3137 = vadd.f32 0.0, %v3136
        %v3138 = vpop.f32.mrb[0].mxu0
        %v3139 = vpop.f32.mrb[0].mxu0
        %v3140 = vadd.f32 0.0, %v3139
        %v3141 = vpop.f32.mrb[0].mxu0
        %3142 = vmatprep.mubr.bf16.mxu0 0
        %3143 = vmatmul.mubr.bf16.gmra.mrb[0].mxu0 %v3066
        %v3144 = vpop.f32.mrb[0].mxu0
        %v3145 = vadd.f32 0.0, %v3144
        %v3146 = vpop.f32.mrb[0].mxu0
        %v3147 = vpop.f32.mrb[0].mxu0
        %v3148 = vadd.f32 0.0, %v3147
        %v3149 = vpop.f32.mrb[0].mxu0
        %3150 = vmatprep.mubr.bf16.mxu0 0
        %3151 = vmatmul.mubr.bf16.gmra.mrb[0].mxu0 %v3068
        %v3152 = vpop.f32.mrb[0].mxu0
        %v3153 = vadd.f32 0.0, %v3152
        %v3154 = vpop.f32.mrb[0].mxu0
        %v3155 = vpop.f32.mrb[0].mxu0
        %v3156 = vadd.f32 0.0, %v3155
        %v3157 = vpop.f32.mrb[0].mxu0
        %3158 = vmatprep.mubr.bf16.mxu0 0
        %3159 = vmatmul.mubr.bf16.gmra.mrb[0].mxu0 %v3070
        %v3160 = vpop.f32.mrb[0].mxu0
        %v3161 = vadd.f32 0.0, %v3160
        %v3162 = vpop.f32.mrb[0].mxu0
        %v3163 = vpop.f32.mrb[0].mxu0
        %v3164 = vadd.f32 0.0, %v3163
        %v3165 = vpop.f32.mrb[0].mxu0
        %3166 = vmatprep.mubr.bf16.mxu0 0
        %3167 = vmatmul.mubr.bf16.gmra.mrb[0].mxu0 %v3072
        %v3168 = vpop.f32.mrb[0].mxu0
        %v3169 = vadd.f32 0.0, %v3168
        %v3170 = vpop.f32.mrb[0].mxu0
        %v3171 = vpop.f32.mrb[0].mxu0
        %v3172 = vadd.f32 0.0, %v3171
        %v3173 = vpop.f32.mrb[0].mxu0
        %3174 = vmatprep.mubr.bf16.mxu0 0
        %3175 = vmatmul.mubr.bf16.gmra.mrb[0].mxu0 %v3074
        %v3176 = vpop.f32.mrb[0].mxu0
        %v3177 = vadd.f32 0.0, %v3176
        %v3178 = vpop.f32.mrb[0].mxu0
        %v3179 = vpop.f32.mrb[0].mxu0
        %v3180 = vadd.f32 0.0, %v3179
        %v3181 = vpop.f32.mrb[0].mxu0
        %3182 = vmatprep.mubr.bf16.mxu0 0
        %3183 = vmatmul.mubr.bf16.gmra.mrb[0].mxu0 %v3076
        %v3184 = vpop.f32.mrb[0].mxu0
        %v3185 = vadd.f32 0.0, %v3184
        %v3186 = vpop.f32.mrb[0].mxu0
        %v3187 = vpop.f32.mrb[0].mxu0
        %v3188 = vadd.f32 0.0, %v3187
        %v3189 = vpop.f32.mrb[0].mxu0
        %3190 = vmatprep.mubr.bf16.mxu0 0
        %3191 = vmatmul.mubr.bf16.gmra.mrb[0].mxu0 %v3078
        %v3192 = vpop.f32.mrb[0].mxu0
        %v3193 = vadd.f32 0.0, %v3192
        %v3194 = vpop.f32.mrb[0].mxu0
        %v3195 = vpop.f32.mrb[0].mxu0
        %v3196 = vadd.f32 0.0, %v3195
        %v3197 = vpop.f32.mrb[0].mxu0
        %3198 = vmatprep.mubr.bf16.mxu0 0
        %3199 = vmatmul.mubr.bf16.gmra.mrb[0].mxu0 %v3080
        %v3200 = vpop.f32.mrb[0].mxu0
        %v3201 = vadd.f32 0.0, %v3200
        %v3202 = vpop.f32.mrb[0].mxu0
        %v3203 = vpop.f32.mrb[0].mxu0
        %v3204 = vadd.f32 0.0, %v3203
        %v3205 = vpop.f32.mrb[0].mxu0
        %3206 = vmatprep.mubr.bf16.mxu0 0
        %3207 = vmatmul.mubr.bf16.gmra.mrb[0].mxu0 %v3082
        %v3208 = vpop.f32.mrb[0].mxu0
        %v3209 = vadd.f32 0.0, %v3208
        %v3210 = vpop.f32.mrb[0].mxu0
        %v3211 = vpop.f32.mrb[0].mxu0
        %v3212 = vadd.f32 0.0, %v3211
        %v3213 = vpop.f32.mrb[0].mxu0
        %3214 = vmatprep.mubr.bf16.mxu0 0
        %3215 = vmatmul.mubr.bf16.gmra.mrb[0].mxu0 %v3084
        %v3216 = vpop.f32.mrb[0].mxu0
        %v3217 = vadd.f32 0.0, %v3216
        %v3218 = vpop.f32.mrb[0].mxu0
        %v3219 = vpop.f32.mrb[0].mxu0
        %v3220 = vadd.f32 0.0, %v3219
        %v3221 = vpop.f32.mrb[0].mxu0
        %3222 = vdwg.mxu0
        %v3223 = vadd.f32 %v2126, %v3121
        %v3224 = vadd.f32 %v2129, %v3124
        %v3225 = vadd.f32 %v2134, %v3129
        %v3226 = vadd.f32 %v2137, %v3132
        %v3227 = vadd.f32 %v2142, %v3137
        %v3228 = vadd.f32 %v2145, %v3140
        %v3229 = vadd.f32 %v2150, %v3145
        %v3230 = vadd.f32 %v2153, %v3148
        %v3231 = vadd.f32 %v2158, %v3153
        %v3232 = vadd.f32 %v2161, %v3156
        %v3233 = vadd.f32 %v2166, %v3161
        %v3234 = vadd.f32 %v2169, %v3164
        %v3235 = vadd.f32 %v2174, %v3169
        %v3236 = vadd.f32 %v2177, %v3172
        %v3237 = vadd.f32 %v2182, %v3177
        %v3238 = vadd.f32 %v2185, %v3180
        %v3239 = vadd.f32 %v2190, %v3185
        %v3240 = vadd.f32 %v2193, %v3188
        %v3241 = vadd.f32 %v2198, %v3193
        %v3242 = vadd.f32 %v2201, %v3196
        %v3243 = vadd.f32 %v2206, %v3201
        %v3244 = vadd.f32 %v2209, %v3204
        %v3245 = vadd.f32 %v2214, %v3209
        %v3246 = vadd.f32 %v2217, %v3212
        %v3247 = vadd.f32 %v2222, %v3217
        %v3248 = vadd.f32 %v2225, %v3220
        %s3249 = sadd.s32 %s232, 3
        %s3250 = smul.u32 %s3249, 3
        %s3251 = smul.addr %s3250, 4
        %s3252 = scalar_lea.vmem %s199, %s3251 [#allocation2]
        %v3253 = vld [vmem:[%s3252] sm:$0xf]
        %v3254 = vld [vmem:[%s3252 + $0x4] sm:$0xf]
        %v3255 = vld [vmem:[%s3252 + $0xc] sm:$0xf]
        %v3256 = vld [vmem:[%s3252 + $0x10] sm:$0xf]
        %v3257 = vld [vmem:[%s3252 + $0x18] sm:$0xf]
        %v3258 = vld [vmem:[%s3252 + $0x1c] sm:$0xf]
        %v3259 = vld [vmem:[%s3252 + $0x24] sm:$0xf]
        %v3260 = vld [vmem:[%s3252 + $0x28] sm:$0xf]
        %v3261 = vld [vmem:[%s3252 + $0x30] sm:$0xf]
        %v3262 = vld [vmem:[%s3252 + $0x34] sm:$0xf]
        %v3263 = vld [vmem:[%s3252 + $0x3c] sm:$0xf]
        %v3264 = vld [vmem:[%s3252 + $0x40] sm:$0xf]
        %v3265 = vld [vmem:[%s3252 + $0x48] sm:$0xf]
        %v3266 = vld [vmem:[%s3252 + $0x4c] sm:$0xf]
        %v3267 = vld [vmem:[%s3252 + $0x54] sm:$0xf]
        %v3268 = vld [vmem:[%s3252 + $0x58] sm:$0xf]
        %v3269 = vld [vmem:[%s3252 + $0x60] sm:$0xf]
        %v3270 = vld [vmem:[%s3252 + $0x64] sm:$0xf]
        %v3271 = vld [vmem:[%s3252 + $0x6c] sm:$0xf]
        %v3272 = vld [vmem:[%s3252 + $0x70] sm:$0xf]
        %v3273 = vld [vmem:[%s3252 + $0x78] sm:$0xf]
        %v3274 = vld [vmem:[%s3252 + $0x7c] sm:$0xf]
        %v3275 = vld [vmem:[%s3252 + $0x84] sm:$0xf]
        %v3276 = vld [vmem:[%s3252 + $0x88] sm:$0xf]
        %v3277 = vld [vmem:[%s3252 + $0x90] sm:$0xf]
        %v3278 = vld [vmem:[%s3252 + $0x94] sm:$0xf]
        %v3279 = vld [vmem:[%s3252 + $0x8] sm:$0x1]
        %v3280 = vld [vmem:[%s3252 + $0x14] sm:$0x1]
        %v3281 = vld [vmem:[%s3252 + $0x20] sm:$0x1]
        %v3282 = vld [vmem:[%s3252 + $0x2c] sm:$0x1]
        %v3283 = vld [vmem:[%s3252 + $0x38] sm:$0x1]
        %v3284 = vld [vmem:[%s3252 + $0x44] sm:$0x1]
        %v3285 = vld [vmem:[%s3252 + $0x50] sm:$0x1]
        %v3286 = vld [vmem:[%s3252 + $0x5c] sm:$0x1]
        %v3287 = vld [vmem:[%s3252 + $0x68] sm:$0x1]
        %v3288 = vld [vmem:[%s3252 + $0x74] sm:$0x1]
        %v3289 = vld [vmem:[%s3252 + $0x80] sm:$0x1]
        %v3290 = vld [vmem:[%s3252 + $0x8c] sm:$0x1]
        %v3291 = vld [vmem:[%s3252 + $0x98] sm:$0x1]
        %v3292 = vld [vmem:[%s3252] sm:$0xe]
        %v3293 = vld [vmem:[%s3252 + $0xc] sm:$0xe]
        %v3294 = vld [vmem:[%s3252 + $0x18] sm:$0xe]
        %v3295 = vld [vmem:[%s3252 + $0x24] sm:$0xe]
        %v3296 = vld [vmem:[%s3252 + $0x30] sm:$0xe]
        %v3297 = vld [vmem:[%s3252 + $0x3c] sm:$0xe]
        %v3298 = vld [vmem:[%s3252 + $0x48] sm:$0xe]
        %v3299 = vld [vmem:[%s3252 + $0x54] sm:$0xe]
        %v3300 = vld [vmem:[%s3252 + $0x60] sm:$0xe]
        %v3301 = vld [vmem:[%s3252 + $0x6c] sm:$0xe]
        %v3302 = vld [vmem:[%s3252 + $0x78] sm:$0xe]
        %v3303 = vld [vmem:[%s3252 + $0x84] sm:$0xe]
        %v3304 = vld [vmem:[%s3252 + $0x90] sm:$0xe]
        %v3305 = vld [vmem:[%s3252 + $0x8] sm:$0x3]
        %v3306 = vld [vmem:[%s3252 + $0x14] sm:$0x3]
        %v3307 = vld [vmem:[%s3252 + $0x20] sm:$0x3]
        %v3308 = vld [vmem:[%s3252 + $0x2c] sm:$0x3]
        %v3309 = vld [vmem:[%s3252 + $0x38] sm:$0x3]
        %v3310 = vld [vmem:[%s3252 + $0x44] sm:$0x3]
        %v3311 = vld [vmem:[%s3252 + $0x50] sm:$0x3]
        %v3312 = vld [vmem:[%s3252 + $0x5c] sm:$0x3]
        %v3313 = vld [vmem:[%s3252 + $0x68] sm:$0x3]
        %v3314 = vld [vmem:[%s3252 + $0x74] sm:$0x3]
        %v3315 = vld [vmem:[%s3252 + $0x80] sm:$0x3]
        %v3316 = vld [vmem:[%s3252 + $0x8c] sm:$0x3]
        %v3317 = vld [vmem:[%s3252 + $0x98] sm:$0x3]
        %v3344 = vunpack.c.l.b16 %v3253
        %v3345 = vunpack.c.l.b16 %v3254
        %v3346 = vunpack.c.l.b16 %v3255
        %v3347 = vunpack.c.l.b16 %v3256
        %v3348 = vunpack.c.l.b16 %v3257
        %v3349 = vunpack.c.l.b16 %v3258
        %v3350 = vunpack.c.l.b16 %v3259
        %v3351 = vunpack.c.l.b16 %v3260
        %v3352 = vunpack.c.l.b16 %v3261
        %v3353 = vunpack.c.l.b16 %v3262
        %v3354 = vunpack.c.l.b16 %v3263
        %v3355 = vunpack.c.l.b16 %v3264
        %v3356 = vunpack.c.l.b16 %v3265
        %v3357 = vunpack.c.l.b16 %v3266
        %v3358 = vunpack.c.l.b16 %v3267
        %v3359 = vunpack.c.l.b16 %v3268
        %v3360 = vunpack.c.l.b16 %v3269
        %v3361 = vunpack.c.l.b16 %v3270
        %v3362 = vunpack.c.l.b16 %v3271
        %v3363 = vunpack.c.l.b16 %v3272
        %v3364 = vunpack.c.l.b16 %v3273
        %v3365 = vunpack.c.l.b16 %v3274
        %v3366 = vunpack.c.l.b16 %v3275
        %v3367 = vunpack.c.l.b16 %v3276
        %v3368 = vunpack.c.l.b16 %v3277
        %v3369 = vunpack.c.l.b16 %v3278
        %v3370 = vpack.c.b16 %v3345, %v3344
        %v3371 = vpack.c.b16 %v3347, %v3346
        %v3372 = vpack.c.b16 %v3349, %v3348
        %v3373 = vpack.c.b16 %v3351, %v3350
        %v3374 = vpack.c.b16 %v3353, %v3352
        %v3375 = vpack.c.b16 %v3355, %v3354
        %v3376 = vpack.c.b16 %v3357, %v3356
        %v3377 = vpack.c.b16 %v3359, %v3358
        %v3378 = vpack.c.b16 %v3361, %v3360
        %v3379 = vpack.c.b16 %v3363, %v3362
        %v3380 = vpack.c.b16 %v3365, %v3364
        %v3381 = vpack.c.b16 %v3367, %v3366
        %v3382 = vpack.c.b16 %v3369, %v3368
        %v3396 = vunpack.c.l.b16 %v3279
        %v3397 = vunpack.c.l.b16 %v3280
        %v3398 = vunpack.c.l.b16 %v3281
        %v3399 = vunpack.c.l.b16 %v3282
        %v3400 = vunpack.c.l.b16 %v3283
        %v3401 = vunpack.c.l.b16 %v3284
        %v3402 = vunpack.c.l.b16 %v3285
        %v3403 = vunpack.c.l.b16 %v3286
        %v3404 = vunpack.c.l.b16 %v3287
        %v3405 = vunpack.c.l.b16 %v3288
        %v3406 = vunpack.c.l.b16 %v3289
        %v3407 = vunpack.c.l.b16 %v3290
        %v3408 = vunpack.c.l.b16 %v3291
        %v3409 = vpack.c.b16 %v3396, %v3396
        %v3410 = vpack.c.b16 %v3397, %v3397
        %v3411 = vpack.c.b16 %v3398, %v3398
        %v3412 = vpack.c.b16 %v3399, %v3399
        %v3413 = vpack.c.b16 %v3400, %v3400
        %v3414 = vpack.c.b16 %v3401, %v3401
        %v3415 = vpack.c.b16 %v3402, %v3402
        %v3416 = vpack.c.b16 %v3403, %v3403
        %v3417 = vpack.c.b16 %v3404, %v3404
        %v3418 = vpack.c.b16 %v3405, %v3405
        %v3419 = vpack.c.b16 %v3406, %v3406
        %v3420 = vpack.c.b16 %v3407, %v3407
        %v3421 = vpack.c.b16 %v3408, %v3408
        %v3423 = vshrl.u32 %v3370, 16
        %v3425 = vshll.u32 %v3370, 16
        %v3427 = vrot.slane %v3425, 1
        %v3428 = vor.u32 %v3423, %v3427
        %v3430 = vshll.u32 %v3409, 16
        %v3432 = vrot.slane %v3430, 1
        %v3433 = vsel %vm405, %v3428, %v3432
        %v3435 = vshrl.u32 %v3371, 16
        %v3437 = vshll.u32 %v3371, 16
        %v3439 = vrot.slane %v3437, 1
        %v3440 = vor.u32 %v3435, %v3439
        %v3442 = vshll.u32 %v3410, 16
        %v3444 = vrot.slane %v3442, 1
        %v3445 = vsel %vm405, %v3440, %v3444
        %v3447 = vshrl.u32 %v3372, 16
        %v3449 = vshll.u32 %v3372, 16
        %v3451 = vrot.slane %v3449, 1
        %v3452 = vor.u32 %v3447, %v3451
        %v3454 = vshll.u32 %v3411, 16
        %v3456 = vrot.slane %v3454, 1
        %v3457 = vsel %vm405, %v3452, %v3456
        %v3459 = vshrl.u32 %v3373, 16
        %v3461 = vshll.u32 %v3373, 16
        %v3463 = vrot.slane %v3461, 1
        %v3464 = vor.u32 %v3459, %v3463
        %v3466 = vshll.u32 %v3412, 16
        %v3468 = vrot.slane %v3466, 1
        %v3469 = vsel %vm405, %v3464, %v3468
        %v3471 = vshrl.u32 %v3374, 16
        %v3473 = vshll.u32 %v3374, 16
        %v3475 = vrot.slane %v3473, 1
        %v3476 = vor.u32 %v3471, %v3475
        %v3478 = vshll.u32 %v3413, 16
        %v3480 = vrot.slane %v3478, 1
        %v3481 = vsel %vm405, %v3476, %v3480
        %v3483 = vshrl.u32 %v3375, 16
        %v3485 = vshll.u32 %v3375, 16
        %v3487 = vrot.slane %v3485, 1
        %v3488 = vor.u32 %v3483, %v3487
        %v3490 = vshll.u32 %v3414, 16
        %v3492 = vrot.slane %v3490, 1
        %v3493 = vsel %vm405, %v3488, %v3492
        %v3495 = vshrl.u32 %v3376, 16
        %v3497 = vshll.u32 %v3376, 16
        %v3499 = vrot.slane %v3497, 1
        %v3500 = vor.u32 %v3495, %v3499
        %v3502 = vshll.u32 %v3415, 16
        %v3504 = vrot.slane %v3502, 1
        %v3505 = vsel %vm405, %v3500, %v3504
        %v3507 = vshrl.u32 %v3377, 16
        %v3509 = vshll.u32 %v3377, 16
        %v3511 = vrot.slane %v3509, 1
        %v3512 = vor.u32 %v3507, %v3511
        %v3514 = vshll.u32 %v3416, 16
        %v3516 = vrot.slane %v3514, 1
        %v3517 = vsel %vm405, %v3512, %v3516
        %v3519 = vshrl.u32 %v3378, 16
        %v3521 = vshll.u32 %v3378, 16
        %v3523 = vrot.slane %v3521, 1
        %v3524 = vor.u32 %v3519, %v3523
        %v3526 = vshll.u32 %v3417, 16
        %v3528 = vrot.slane %v3526, 1
        %v3529 = vsel %vm405, %v3524, %v3528
        %v3531 = vshrl.u32 %v3379, 16
        %v3533 = vshll.u32 %v3379, 16
        %v3535 = vrot.slane %v3533, 1
        %v3536 = vor.u32 %v3531, %v3535
        %v3538 = vshll.u32 %v3418, 16
        %v3540 = vrot.slane %v3538, 1
        %v3541 = vsel %vm405, %v3536, %v3540
        %v3543 = vshrl.u32 %v3380, 16
        %v3545 = vshll.u32 %v3380, 16
        %v3547 = vrot.slane %v3545, 1
        %v3548 = vor.u32 %v3543, %v3547
        %v3550 = vshll.u32 %v3419, 16
        %v3552 = vrot.slane %v3550, 1
        %v3553 = vsel %vm405, %v3548, %v3552
        %v3555 = vshrl.u32 %v3381, 16
        %v3557 = vshll.u32 %v3381, 16
        %v3559 = vrot.slane %v3557, 1
        %v3560 = vor.u32 %v3555, %v3559
        %v3562 = vshll.u32 %v3420, 16
        %v3564 = vrot.slane %v3562, 1
        %v3565 = vsel %vm405, %v3560, %v3564
        %v3567 = vshrl.u32 %v3382, 16
        %v3569 = vshll.u32 %v3382, 16
        %v3571 = vrot.slane %v3569, 1
        %v3572 = vor.u32 %v3567, %v3571
        %v3574 = vshll.u32 %v3421, 16
        %v3576 = vrot.slane %v3574, 1
        %v3577 = vsel %vm405, %v3572, %v3576
        %3578 = vrot.lane.b32.xlu0 %v3433, 4
        %v3579 = vpop.permute.xlu0 %3578
        %3580 = vrot.lane.b32.xlu0 %v3445, 4
        %v3581 = vpop.permute.xlu0 %3580
        %3582 = vrot.lane.b32.xlu0 %v3457, 4
        %v3583 = vpop.permute.xlu0 %3582
        %3584 = vrot.lane.b32.xlu0 %v3469, 4
        %v3585 = vpop.permute.xlu0 %3584
        %3586 = vrot.lane.b32.xlu0 %v3481, 4
        %v3587 = vpop.permute.xlu0 %3586
        %3588 = vrot.lane.b32.xlu0 %v3493, 4
        %v3589 = vpop.permute.xlu0 %3588
        %3590 = vrot.lane.b32.xlu0 %v3505, 4
        %v3591 = vpop.permute.xlu0 %3590
        %3592 = vrot.lane.b32.xlu0 %v3517, 4
        %v3593 = vpop.permute.xlu0 %3592
        %3594 = vrot.lane.b32.xlu0 %v3529, 4
        %v3595 = vpop.permute.xlu0 %3594
        %3596 = vrot.lane.b32.xlu0 %v3541, 4
        %v3597 = vpop.permute.xlu0 %3596
        %3598 = vrot.lane.b32.xlu0 %v3553, 4
        %v3599 = vpop.permute.xlu0 %3598
        %3600 = vrot.lane.b32.xlu0 %v3565, 4
        %v3601 = vpop.permute.xlu0 %3600
        %3602 = vrot.lane.b32.xlu0 %v3577, 4
        %v3603 = vpop.permute.xlu0 %3602
        %v3617 = vunpack.c.l.b16 %v3292
        %v3618 = vunpack.c.l.b16 %v3293
        %v3619 = vunpack.c.l.b16 %v3294
        %v3620 = vunpack.c.l.b16 %v3295
        %v3621 = vunpack.c.l.b16 %v3296
        %v3622 = vunpack.c.l.b16 %v3297
        %v3623 = vunpack.c.l.b16 %v3298
        %v3624 = vunpack.c.l.b16 %v3299
        %v3625 = vunpack.c.l.b16 %v3300
        %v3626 = vunpack.c.l.b16 %v3301
        %v3627 = vunpack.c.l.b16 %v3302
        %v3628 = vunpack.c.l.b16 %v3303
        %v3629 = vunpack.c.l.b16 %v3304
        %v3630 = vpack.c.b16 %v3345, %v3617
        %v3631 = vpack.c.b16 %v3347, %v3618
        %v3632 = vpack.c.b16 %v3349, %v3619
        %v3633 = vpack.c.b16 %v3351, %v3620
        %v3634 = vpack.c.b16 %v3353, %v3621
        %v3635 = vpack.c.b16 %v3355, %v3622
        %v3636 = vpack.c.b16 %v3357, %v3623
        %v3637 = vpack.c.b16 %v3359, %v3624
        %v3638 = vpack.c.b16 %v3361, %v3625
        %v3639 = vpack.c.b16 %v3363, %v3626
        %v3640 = vpack.c.b16 %v3365, %v3627
        %v3641 = vpack.c.b16 %v3367, %v3628
        %v3642 = vpack.c.b16 %v3369, %v3629
        %v3643 = vrot.slane %v3630, 1
        %v3644 = vrot.slane %v3409, 1
        %v3645 = vsel %vm627, %v3643, %v3644
        %v3646 = vrot.slane %v3631, 1
        %v3647 = vrot.slane %v3410, 1
        %v3648 = vsel %vm627, %v3646, %v3647
        %v3649 = vrot.slane %v3632, 1
        %v3650 = vrot.slane %v3411, 1
        %v3651 = vsel %vm627, %v3649, %v3650
        %v3652 = vrot.slane %v3633, 1
        %v3653 = vrot.slane %v3412, 1
        %v3654 = vsel %vm627, %v3652, %v3653
        %v3655 = vrot.slane %v3634, 1
        %v3656 = vrot.slane %v3413, 1
        %v3657 = vsel %vm627, %v3655, %v3656
        %v3658 = vrot.slane %v3635, 1
        %v3659 = vrot.slane %v3414, 1
        %v3660 = vsel %vm627, %v3658, %v3659
        %v3661 = vrot.slane %v3636, 1
        %v3662 = vrot.slane %v3415, 1
        %v3663 = vsel %vm627, %v3661, %v3662
        %v3664 = vrot.slane %v3637, 1
        %v3665 = vrot.slane %v3416, 1
        %v3666 = vsel %vm627, %v3664, %v3665
        %v3667 = vrot.slane %v3638, 1
        %v3668 = vrot.slane %v3417, 1
        %v3669 = vsel %vm627, %v3667, %v3668
        %v3670 = vrot.slane %v3639, 1
        %v3671 = vrot.slane %v3418, 1
        %v3672 = vsel %vm627, %v3670, %v3671
        %v3673 = vrot.slane %v3640, 1
        %v3674 = vrot.slane %v3419, 1
        %v3675 = vsel %vm627, %v3673, %v3674
        %v3676 = vrot.slane %v3641, 1
        %v3677 = vrot.slane %v3420, 1
        %v3678 = vsel %vm627, %v3676, %v3677
        %v3679 = vrot.slane %v3642, 1
        %v3680 = vrot.slane %v3421, 1
        %v3681 = vsel %vm627, %v3679, %v3680
        %3682 = vrot.lane.b32.xlu0 %v3645, 8
        %v3683 = vpop.permute.xlu0 %3682
        %3684 = vrot.lane.b32.xlu0 %v3648, 8
        %v3685 = vpop.permute.xlu0 %3684
        %3686 = vrot.lane.b32.xlu0 %v3651, 8
        %v3687 = vpop.permute.xlu0 %3686
        %3688 = vrot.lane.b32.xlu0 %v3654, 8
        %v3689 = vpop.permute.xlu0 %3688
        %3690 = vrot.lane.b32.xlu0 %v3657, 8
        %v3691 = vpop.permute.xlu0 %3690
        %3692 = vrot.lane.b32.xlu0 %v3660, 8
        %v3693 = vpop.permute.xlu0 %3692
        %3694 = vrot.lane.b32.xlu0 %v3663, 8
        %v3695 = vpop.permute.xlu0 %3694
        %3696 = vrot.lane.b32.xlu0 %v3666, 8
        %v3697 = vpop.permute.xlu0 %3696
        %3698 = vrot.lane.b32.xlu0 %v3669, 8
        %v3699 = vpop.permute.xlu0 %3698
        %3700 = vrot.lane.b32.xlu0 %v3672, 8
        %v3701 = vpop.permute.xlu0 %3700
        %3702 = vrot.lane.b32.xlu0 %v3675, 8
        %v3703 = vpop.permute.xlu0 %3702
        %3704 = vrot.lane.b32.xlu0 %v3678, 8
        %v3705 = vpop.permute.xlu0 %3704
        %3706 = vrot.lane.b32.xlu0 %v3681, 8
        %v3707 = vpop.permute.xlu0 %3706
        %v3721 = vunpack.c.l.b16 %v3305
        %v3722 = vunpack.c.l.b16 %v3306
        %v3723 = vunpack.c.l.b16 %v3307
        %v3724 = vunpack.c.l.b16 %v3308
        %v3725 = vunpack.c.l.b16 %v3309
        %v3726 = vunpack.c.l.b16 %v3310
        %v3727 = vunpack.c.l.b16 %v3311
        %v3728 = vunpack.c.l.b16 %v3312
        %v3729 = vunpack.c.l.b16 %v3313
        %v3730 = vunpack.c.l.b16 %v3314
        %v3731 = vunpack.c.l.b16 %v3315
        %v3732 = vunpack.c.l.b16 %v3316
        %v3733 = vunpack.c.l.b16 %v3317
        %v3734 = vpack.c.b16 %v3721, %v3721
        %v3735 = vpack.c.b16 %v3722, %v3722
        %v3736 = vpack.c.b16 %v3723, %v3723
        %v3737 = vpack.c.b16 %v3724, %v3724
        %v3738 = vpack.c.b16 %v3725, %v3725
        %v3739 = vpack.c.b16 %v3726, %v3726
        %v3740 = vpack.c.b16 %v3727, %v3727
        %v3741 = vpack.c.b16 %v3728, %v3728
        %v3742 = vpack.c.b16 %v3729, %v3729
        %v3743 = vpack.c.b16 %v3730, %v3730
        %v3744 = vpack.c.b16 %v3731, %v3731
        %v3745 = vpack.c.b16 %v3732, %v3732
        %v3746 = vpack.c.b16 %v3733, %v3733
        %v3748 = vshrl.u32 %v3630, 16
        %v3750 = vrot.slane %v3748, 1
        %v3751 = vshll.u32 %v3630, 16
        %v3753 = vrot.slane %v3751, 2
        %v3754 = vor.u32 %v3750, %v3753
        %v3756 = vshrl.u32 %v3734, 16
        %v3758 = vrot.slane %v3756, 1
        %v3759 = vshll.u32 %v3734, 16
        %v3761 = vrot.slane %v3759, 2
        %v3762 = vor.u32 %v3758, %v3761
        %v3763 = vsel %vm732, %v3754, %v3762
        %v3765 = vshrl.u32 %v3631, 16
        %v3767 = vrot.slane %v3765, 1
        %v3768 = vshll.u32 %v3631, 16
        %v3770 = vrot.slane %v3768, 2
        %v3771 = vor.u32 %v3767, %v3770
        %v3773 = vshrl.u32 %v3735, 16
        %v3775 = vrot.slane %v3773, 1
        %v3776 = vshll.u32 %v3735, 16
        %v3778 = vrot.slane %v3776, 2
        %v3779 = vor.u32 %v3775, %v3778
        %v3780 = vsel %vm732, %v3771, %v3779
        %v3782 = vshrl.u32 %v3632, 16
        %v3784 = vrot.slane %v3782, 1
        %v3785 = vshll.u32 %v3632, 16
        %v3787 = vrot.slane %v3785, 2
        %v3788 = vor.u32 %v3784, %v3787
        %v3790 = vshrl.u32 %v3736, 16
        %v3792 = vrot.slane %v3790, 1
        %v3793 = vshll.u32 %v3736, 16
        %v3795 = vrot.slane %v3793, 2
        %v3796 = vor.u32 %v3792, %v3795
        %v3797 = vsel %vm732, %v3788, %v3796
        %v3799 = vshrl.u32 %v3633, 16
        %v3801 = vrot.slane %v3799, 1
        %v3802 = vshll.u32 %v3633, 16
        %v3804 = vrot.slane %v3802, 2
        %v3805 = vor.u32 %v3801, %v3804
        %v3807 = vshrl.u32 %v3737, 16
        %v3809 = vrot.slane %v3807, 1
        %v3810 = vshll.u32 %v3737, 16
        %v3812 = vrot.slane %v3810, 2
        %v3813 = vor.u32 %v3809, %v3812
        %v3814 = vsel %vm732, %v3805, %v3813
        %v3816 = vshrl.u32 %v3634, 16
        %v3818 = vrot.slane %v3816, 1
        %v3819 = vshll.u32 %v3634, 16
        %v3821 = vrot.slane %v3819, 2
        %v3822 = vor.u32 %v3818, %v3821
        %v3824 = vshrl.u32 %v3738, 16
        %v3826 = vrot.slane %v3824, 1
        %v3827 = vshll.u32 %v3738, 16
        %v3829 = vrot.slane %v3827, 2
        %v3830 = vor.u32 %v3826, %v3829
        %v3831 = vsel %vm732, %v3822, %v3830
        %v3833 = vshrl.u32 %v3635, 16
        %v3835 = vrot.slane %v3833, 1
        %v3836 = vshll.u32 %v3635, 16
        %v3838 = vrot.slane %v3836, 2
        %v3839 = vor.u32 %v3835, %v3838
        %v3841 = vshrl.u32 %v3739, 16
        %v3843 = vrot.slane %v3841, 1
        %v3844 = vshll.u32 %v3739, 16
        %v3846 = vrot.slane %v3844, 2
        %v3847 = vor.u32 %v3843, %v3846
        %v3848 = vsel %vm732, %v3839, %v3847
        %v3850 = vshrl.u32 %v3636, 16
        %v3852 = vrot.slane %v3850, 1
        %v3853 = vshll.u32 %v3636, 16
        %v3855 = vrot.slane %v3853, 2
        %v3856 = vor.u32 %v3852, %v3855
        %v3858 = vshrl.u32 %v3740, 16
        %v3860 = vrot.slane %v3858, 1
        %v3861 = vshll.u32 %v3740, 16
        %v3863 = vrot.slane %v3861, 2
        %v3864 = vor.u32 %v3860, %v3863
        %v3865 = vsel %vm732, %v3856, %v3864
        %v3867 = vshrl.u32 %v3637, 16
        %v3869 = vrot.slane %v3867, 1
        %v3870 = vshll.u32 %v3637, 16
        %v3872 = vrot.slane %v3870, 2
        %v3873 = vor.u32 %v3869, %v3872
        %v3875 = vshrl.u32 %v3741, 16
        %v3877 = vrot.slane %v3875, 1
        %v3878 = vshll.u32 %v3741, 16
        %v3880 = vrot.slane %v3878, 2
        %v3881 = vor.u32 %v3877, %v3880
        %v3882 = vsel %vm732, %v3873, %v3881
        %v3884 = vshrl.u32 %v3638, 16
        %v3886 = vrot.slane %v3884, 1
        %v3887 = vshll.u32 %v3638, 16
        %v3889 = vrot.slane %v3887, 2
        %v3890 = vor.u32 %v3886, %v3889
        %v3892 = vshrl.u32 %v3742, 16
        %v3894 = vrot.slane %v3892, 1
        %v3895 = vshll.u32 %v3742, 16
        %v3897 = vrot.slane %v3895, 2
        %v3898 = vor.u32 %v3894, %v3897
        %v3899 = vsel %vm732, %v3890, %v3898
        %v3901 = vshrl.u32 %v3639, 16
        %v3903 = vrot.slane %v3901, 1
        %v3904 = vshll.u32 %v3639, 16
        %v3906 = vrot.slane %v3904, 2
        %v3907 = vor.u32 %v3903, %v3906
        %v3909 = vshrl.u32 %v3743, 16
        %v3911 = vrot.slane %v3909, 1
        %v3912 = vshll.u32 %v3743, 16
        %v3914 = vrot.slane %v3912, 2
        %v3915 = vor.u32 %v3911, %v3914
        %v3916 = vsel %vm732, %v3907, %v3915
        %v3918 = vshrl.u32 %v3640, 16
        %v3920 = vrot.slane %v3918, 1
        %v3921 = vshll.u32 %v3640, 16
        %v3923 = vrot.slane %v3921, 2
        %v3924 = vor.u32 %v3920, %v3923
        %v3926 = vshrl.u32 %v3744, 16
        %v3928 = vrot.slane %v3926, 1
        %v3929 = vshll.u32 %v3744, 16
        %v3931 = vrot.slane %v3929, 2
        %v3932 = vor.u32 %v3928, %v3931
        %v3933 = vsel %vm732, %v3924, %v3932
        %v3935 = vshrl.u32 %v3641, 16
        %v3937 = vrot.slane %v3935, 1
        %v3938 = vshll.u32 %v3641, 16
        %v3940 = vrot.slane %v3938, 2
        %v3941 = vor.u32 %v3937, %v3940
        %v3943 = vshrl.u32 %v3745, 16
        %v3945 = vrot.slane %v3943, 1
        %v3946 = vshll.u32 %v3745, 16
        %v3948 = vrot.slane %v3946, 2
        %v3949 = vor.u32 %v3945, %v3948
        %v3950 = vsel %vm732, %v3941, %v3949
        %v3952 = vshrl.u32 %v3642, 16
        %v3954 = vrot.slane %v3952, 1
        %v3955 = vshll.u32 %v3642, 16
        %v3957 = vrot.slane %v3955, 2
        %v3958 = vor.u32 %v3954, %v3957
        %v3960 = vshrl.u32 %v3746, 16
        %v3962 = vrot.slane %v3960, 1
        %v3963 = vshll.u32 %v3746, 16
        %v3965 = vrot.slane %v3963, 2
        %v3966 = vor.u32 %v3962, %v3965
        %v3967 = vsel %vm732, %v3958, %v3966
        %3968 = vrot.lane.b32.xlu0 %v3763, 12
        %v3969 = vpop.permute.xlu0 %3968
        %3970 = vrot.lane.b32.xlu0 %v3780, 12
        %v3971 = vpop.permute.xlu0 %3970
        %3972 = vrot.lane.b32.xlu0 %v3797, 12
        %v3973 = vpop.permute.xlu0 %3972
        %3974 = vrot.lane.b32.xlu0 %v3814, 12
        %v3975 = vpop.permute.xlu0 %3974
        %3976 = vrot.lane.b32.xlu0 %v3831, 12
        %v3977 = vpop.permute.xlu0 %3976
        %3978 = vrot.lane.b32.xlu0 %v3848, 12
        %v3979 = vpop.permute.xlu0 %3978
        %3980 = vrot.lane.b32.xlu0 %v3865, 12
        %v3981 = vpop.permute.xlu0 %3980
        %3982 = vrot.lane.b32.xlu0 %v3882, 12
        %v3983 = vpop.permute.xlu0 %3982
        %3984 = vrot.lane.b32.xlu0 %v3899, 12
        %v3985 = vpop.permute.xlu0 %3984
        %3986 = vrot.lane.b32.xlu0 %v3916, 12
        %v3987 = vpop.permute.xlu0 %3986
        %3988 = vrot.lane.b32.xlu0 %v3933, 12
        %v3989 = vpop.permute.xlu0 %3988
        %3990 = vrot.lane.b32.xlu0 %v3950, 12
        %v3991 = vpop.permute.xlu0 %3990
        %3992 = vrot.lane.b32.xlu0 %v3967, 12
        %v3993 = vpop.permute.xlu0 %3992
        %v3995 = vsel %vm980, %v3370, %v3579
        %v3997 = vsel %vm980, %v3371, %v3581
        %v3999 = vsel %vm980, %v3372, %v3583
        %v4001 = vsel %vm980, %v3373, %v3585
        %v4003 = vsel %vm980, %v3374, %v3587
        %v4005 = vsel %vm980, %v3375, %v3589
        %v4007 = vsel %vm980, %v3376, %v3591
        %v4009 = vsel %vm980, %v3377, %v3593
        %v4011 = vsel %vm980, %v3378, %v3595
        %v4013 = vsel %vm980, %v3379, %v3597
        %v4015 = vsel %vm980, %v3380, %v3599
        %v4017 = vsel %vm980, %v3381, %v3601
        %v4019 = vsel %vm980, %v3382, %v3603
        %v4021 = vsel %vm1007, %v3995, %v3683
        %v4023 = vsel %vm1007, %v3997, %v3685
        %v4025 = vsel %vm1007, %v3999, %v3687
        %v4027 = vsel %vm1007, %v4001, %v3689
        %v4029 = vsel %vm1007, %v4003, %v3691
        %v4031 = vsel %vm1007, %v4005, %v3693
        %v4033 = vsel %vm1007, %v4007, %v3695
        %v4035 = vsel %vm1007, %v4009, %v3697
        %v4037 = vsel %vm1007, %v4011, %v3699
        %v4039 = vsel %vm1007, %v4013, %v3701
        %v4041 = vsel %vm1007, %v4015, %v3703
        %v4043 = vsel %vm1007, %v4017, %v3705
        %v4045 = vsel %vm1007, %v4019, %v3707
        %v4047 = vsel %vm1034, %v4021, %v3969
        %v4049 = vsel %vm1034, %v4023, %v3971
        %v4051 = vsel %vm1034, %v4025, %v3973
        %v4053 = vsel %vm1034, %v4027, %v3975
        %v4055 = vsel %vm1034, %v4029, %v3977
        %v4057 = vsel %vm1034, %v4031, %v3979
        %v4059 = vsel %vm1034, %v4033, %v3981
        %v4061 = vsel %vm1034, %v4035, %v3983
        %v4063 = vsel %vm1034, %v4037, %v3985
        %v4065 = vsel %vm1034, %v4039, %v3987
        %v4067 = vsel %vm1034, %v4041, %v3989
        %v4069 = vsel %vm1034, %v4043, %v3991
        %v4071 = vsel %vm1034, %v4045, %v3993
        %s4072 = scalar_lea.vmem [#allocation5], 24
        %v4073 = vld [vmem:[%s4072] sm:$0xf]
        %v4074 = vld [vmem:[%s4072 + $0x4] sm:$0xf]
        %v4077 = vunpack.c.l.b16 %v4073
        %v4078 = vunpack.c.l.b16 %v4074
        %v4079 = vpack.c.b16 %v4078, %v4077
        %v4081 = vsel %vm1895, %v4047, 0
        %v4083 = vsel %vm1895, %v4049, 0
        %v4085 = vsel %vm1895, %v4051, 0
        %v4087 = vsel %vm1895, %v4053, 0
        %v4089 = vsel %vm1895, %v4055, 0
        %v4091 = vsel %vm1895, %v4057, 0
        %v4093 = vsel %vm1895, %v4059, 0
        %v4095 = vsel %vm1895, %v4061, 0
        %v4097 = vsel %vm1895, %v4063, 0
        %v4099 = vsel %vm1895, %v4065, 0
        %v4101 = vsel %vm1895, %v4067, 0
        %v4103 = vsel %vm1895, %v4069, 0
        %v4105 = vsel %vm1895, %v4071, 0
        %4107 = vmatprep.subr.bf16.mxu0 0
        %4108 = vmatpush1.bf16.msra.mxu0 %v4079
        %4109 = vmatprep.subr.bf16.mxu0 0
        %4110 = vmatpush1.bf16.msra.mxu0 0
        %4111 = vmatprep.subr.bf16.mxu0 0
        %4112 = vmatpush1.bf16.msra.mxu0 0
        %4113 = vmatprep.subr.bf16.mxu0 0
        %4114 = vmatpush1.bf16.msra.mxu0 0
        %4115 = vmatprep.subr.bf16.mxu0 0
        %4116 = vmatpush1.bf16.msra.mxu0 0
        %4117 = vmatprep.subr.bf16.mxu0 0
        %4118 = vmatpush1.bf16.msra.mxu0 0
        %4119 = vmatprep.subr.bf16.mxu0 0
        %4120 = vmatpush1.bf16.msra.mxu0 0
        %4121 = vmatprep.subr.bf16.mxu0 0
        %4122 = vmatpush1.bf16.msra.mxu0 0
        %4123 = vmatprep.subr.bf16.mxu0 0
        %4124 = vmatpush1.bf16.msra.mxu0 0
        %4125 = vmatprep.subr.bf16.mxu0 0
        %4126 = vmatpush1.bf16.msra.mxu0 0
        %4127 = vmatprep.subr.bf16.mxu0 0
        %4128 = vmatpush1.bf16.msra.mxu0 0
        %4129 = vmatprep.subr.bf16.mxu0 0
        %4130 = vmatpush1.bf16.msra.mxu0 0
        %4131 = vmatprep.subr.bf16.mxu0 0
        %4132 = vmatpush1.bf16.msra.mxu0 0
        %4133 = vmatprep.subr.bf16.mxu0 0
        %4134 = vmatpush1.bf16.msra.mxu0 0
        %4135 = vmatprep.subr.bf16.mxu0 0
        %4136 = vmatpush1.bf16.msra.mxu0 0
        %4137 = vmatprep.subr.bf16.mxu0 0
        %4138 = vmatpush1.bf16.msra.mxu0 0
        %4139 = vmatprep.mubr.bf16.mxu0 0
        %4140 = vmatmul.mubr.bf16.gmra.mrb[0].mxu0 %v4081
        %v4141 = vpop.f32.mrb[0].mxu0
        %v4142 = vadd.f32 0.0, %v4141
        %v4143 = vpop.f32.mrb[0].mxu0
        %v4144 = vpop.f32.mrb[0].mxu0
        %v4145 = vadd.f32 0.0, %v4144
        %v4146 = vpop.f32.mrb[0].mxu0
        %4147 = vmatprep.mubr.bf16.mxu0 0
        %4148 = vmatmul.mubr.bf16.gmra.mrb[0].mxu0 %v4083
        %v4149 = vpop.f32.mrb[0].mxu0
        %v4150 = vadd.f32 0.0, %v4149
        %v4151 = vpop.f32.mrb[0].mxu0
        %v4152 = vpop.f32.mrb[0].mxu0
        %v4153 = vadd.f32 0.0, %v4152
        %v4154 = vpop.f32.mrb[0].mxu0
        %4155 = vmatprep.mubr.bf16.mxu0 0
        %4156 = vmatmul.mubr.bf16.gmra.mrb[0].mxu0 %v4085
        %v4157 = vpop.f32.mrb[0].mxu0
        %v4158 = vadd.f32 0.0, %v4157
        %v4159 = vpop.f32.mrb[0].mxu0
        %v4160 = vpop.f32.mrb[0].mxu0
        %v4161 = vadd.f32 0.0, %v4160
        %v4162 = vpop.f32.mrb[0].mxu0
        %4163 = vmatprep.mubr.bf16.mxu0 0
        %4164 = vmatmul.mubr.bf16.gmra.mrb[0].mxu0 %v4087
        %v4165 = vpop.f32.mrb[0].mxu0
        %v4166 = vadd.f32 0.0, %v4165
        %v4167 = vpop.f32.mrb[0].mxu0
        %v4168 = vpop.f32.mrb[0].mxu0
        %v4169 = vadd.f32 0.0, %v4168
        %v4170 = vpop.f32.mrb[0].mxu0
        %4171 = vmatprep.mubr.bf16.mxu0 0
        %4172 = vmatmul.mubr.bf16.gmra.mrb[0].mxu0 %v4089
        %v4173 = vpop.f32.mrb[0].mxu0
        %v4174 = vadd.f32 0.0, %v4173
        %v4175 = vpop.f32.mrb[0].mxu0
        %v4176 = vpop.f32.mrb[0].mxu0
        %v4177 = vadd.f32 0.0, %v4176
        %v4178 = vpop.f32.mrb[0].mxu0
        %4179 = vmatprep.mubr.bf16.mxu0 0
        %4180 = vmatmul.mubr.bf16.gmra.mrb[0].mxu0 %v4091
        %v4181 = vpop.f32.mrb[0].mxu0
        %v4182 = vadd.f32 0.0, %v4181
        %v4183 = vpop.f32.mrb[0].mxu0
        %v4184 = vpop.f32.mrb[0].mxu0
        %v4185 = vadd.f32 0.0, %v4184
        %v4186 = vpop.f32.mrb[0].mxu0
        %4187 = vmatprep.mubr.bf16.mxu0 0
        %4188 = vmatmul.mubr.bf16.gmra.mrb[0].mxu0 %v4093
        %v4189 = vpop.f32.mrb[0].mxu0
        %v4190 = vadd.f32 0.0, %v4189
        %v4191 = vpop.f32.mrb[0].mxu0
        %v4192 = vpop.f32.mrb[0].mxu0
        %v4193 = vadd.f32 0.0, %v4192
        %v4194 = vpop.f32.mrb[0].mxu0
        %4195 = vmatprep.mubr.bf16.mxu0 0
        %4196 = vmatmul.mubr.bf16.gmra.mrb[0].mxu0 %v4095
        %v4197 = vpop.f32.mrb[0].mxu0
        %v4198 = vadd.f32 0.0, %v4197
        %v4199 = vpop.f32.mrb[0].mxu0
        %v4200 = vpop.f32.mrb[0].mxu0
        %v4201 = vadd.f32 0.0, %v4200
        %v4202 = vpop.f32.mrb[0].mxu0
        %4203 = vmatprep.mubr.bf16.mxu0 0
        %4204 = vmatmul.mubr.bf16.gmra.mrb[0].mxu0 %v4097
        %v4205 = vpop.f32.mrb[0].mxu0
        %v4206 = vadd.f32 0.0, %v4205
        %v4207 = vpop.f32.mrb[0].mxu0
        %v4208 = vpop.f32.mrb[0].mxu0
        %v4209 = vadd.f32 0.0, %v4208
        %v4210 = vpop.f32.mrb[0].mxu0
        %4211 = vmatprep.mubr.bf16.mxu0 0
        %4212 = vmatmul.mubr.bf16.gmra.mrb[0].mxu0 %v4099
        %v4213 = vpop.f32.mrb[0].mxu0
        %v4214 = vadd.f32 0.0, %v4213
        %v4215 = vpop.f32.mrb[0].mxu0
        %v4216 = vpop.f32.mrb[0].mxu0
        %v4217 = vadd.f32 0.0, %v4216
        %v4218 = vpop.f32.mrb[0].mxu0
        %4219 = vmatprep.mubr.bf16.mxu0 0
        %4220 = vmatmul.mubr.bf16.gmra.mrb[0].mxu0 %v4101
        %v4221 = vpop.f32.mrb[0].mxu0
        %v4222 = vadd.f32 0.0, %v4221
        %v4223 = vpop.f32.mrb[0].mxu0
        %v4224 = vpop.f32.mrb[0].mxu0
        %v4225 = vadd.f32 0.0, %v4224
        %v4226 = vpop.f32.mrb[0].mxu0
        %4227 = vmatprep.mubr.bf16.mxu0 0
        %4228 = vmatmul.mubr.bf16.gmra.mrb[0].mxu0 %v4103
        %v4229 = vpop.f32.mrb[0].mxu0
        %v4230 = vadd.f32 0.0, %v4229
        %v4231 = vpop.f32.mrb[0].mxu0
        %v4232 = vpop.f32.mrb[0].mxu0
        %v4233 = vadd.f32 0.0, %v4232
        %v4234 = vpop.f32.mrb[0].mxu0
        %4235 = vmatprep.mubr.bf16.mxu0 0
        %4236 = vmatmul.mubr.bf16.gmra.mrb[0].mxu0 %v4105
        %v4237 = vpop.f32.mrb[0].mxu0
        %v4238 = vadd.f32 0.0, %v4237
        %v4239 = vpop.f32.mrb[0].mxu0
        %v4240 = vpop.f32.mrb[0].mxu0
        %v4241 = vadd.f32 0.0, %v4240
        %v4242 = vpop.f32.mrb[0].mxu0
        %4243 = vdwg.mxu0
        %v4244 = vadd.f32 %v3223, %v4142
        %v4245 = vadd.f32 %v3224, %v4145
        %v4246 = vadd.f32 %v3225, %v4150
        %v4247 = vadd.f32 %v3226, %v4153
        %v4248 = vadd.f32 %v3227, %v4158
        %v4249 = vadd.f32 %v3228, %v4161
        %v4250 = vadd.f32 %v3229, %v4166
        %v4251 = vadd.f32 %v3230, %v4169
        %v4252 = vadd.f32 %v3231, %v4174
        %v4253 = vadd.f32 %v3232, %v4177
        %v4254 = vadd.f32 %v3233, %v4182
        %v4255 = vadd.f32 %v3234, %v4185
        %v4256 = vadd.f32 %v3235, %v4190
        %v4257 = vadd.f32 %v3236, %v4193
        %v4258 = vadd.f32 %v3237, %v4198
        %v4259 = vadd.f32 %v3238, %v4201
        %v4260 = vadd.f32 %v3239, %v4206
        %v4261 = vadd.f32 %v3240, %v4209
        %v4262 = vadd.f32 %v3241, %v4214
        %v4263 = vadd.f32 %v3242, %v4217
        %v4264 = vadd.f32 %v3243, %v4222
        %v4265 = vadd.f32 %v3244, %v4225
        %v4266 = vadd.f32 %v3245, %v4230
        %v4267 = vadd.f32 %v3246, %v4233
        %v4268 = vadd.f32 %v3247, %v4238
        %v4269 = vadd.f32 %v3248, %v4241
        %v4270 = vld [vmem:[#allocation7] sm:$0x1]
        %v4272 = vlaneseq
        %v4273 = vshrl.u32 %v4272, 7
        %v4274 = vsub.s32 0, %v4273
        %v4275 = vrot.slane %v4270, %v4274
        %v4277 = vadd.f32 %v4244, %v4275
        %v4278 = vadd.f32 %v4245, %v4275
        %v4279 = vadd.f32 %v4246, %v4275
        %v4280 = vadd.f32 %v4247, %v4275
        %v4281 = vadd.f32 %v4248, %v4275
        %v4282 = vadd.f32 %v4249, %v4275
        %v4283 = vadd.f32 %v4250, %v4275
        %v4284 = vadd.f32 %v4251, %v4275
        %v4285 = vadd.f32 %v4252, %v4275
        %v4286 = vadd.f32 %v4253, %v4275
        %v4287 = vadd.f32 %v4254, %v4275
        %v4288 = vadd.f32 %v4255, %v4275
        %v4289 = vadd.f32 %v4256, %v4275
        %v4290 = vadd.f32 %v4257, %v4275
        %v4291 = vadd.f32 %v4258, %v4275
        %v4292 = vadd.f32 %v4259, %v4275
        %v4293 = vadd.f32 %v4260, %v4275
        %v4294 = vadd.f32 %v4261, %v4275
        %v4295 = vadd.f32 %v4262, %v4275
        %v4296 = vadd.f32 %v4263, %v4275
        %v4297 = vadd.f32 %v4264, %v4275
        %v4298 = vadd.f32 %v4265, %v4275
        %v4299 = vadd.f32 %v4266, %v4275
        %v4300 = vadd.f32 %v4267, %v4275
        %v4301 = vadd.f32 %v4268, %v4275
        %v4302 = vadd.f32 %v4269, %v4275
        %vm4303 = vcmp.ge.f32.partialorder %v4277, 0.0
        %vm4304 = vcmp.ge.f32.partialorder %v4278, 0.0
        %vm4305 = vcmp.ge.f32.partialorder %v4279, 0.0
        %vm4306 = vcmp.ge.f32.partialorder %v4280, 0.0
        %vm4307 = vcmp.ge.f32.partialorder %v4281, 0.0
        %vm4308 = vcmp.ge.f32.partialorder %v4282, 0.0
        %vm4309 = vcmp.ge.f32.partialorder %v4283, 0.0
        %vm4310 = vcmp.ge.f32.partialorder %v4284, 0.0
        %vm4311 = vcmp.ge.f32.partialorder %v4285, 0.0
        %vm4312 = vcmp.ge.f32.partialorder %v4286, 0.0
        %vm4313 = vcmp.ge.f32.partialorder %v4287, 0.0
        %vm4314 = vcmp.ge.f32.partialorder %v4288, 0.0
        %vm4315 = vcmp.ge.f32.partialorder %v4289, 0.0
        %vm4316 = vcmp.ge.f32.partialorder %v4290, 0.0
        %vm4317 = vcmp.ge.f32.partialorder %v4291, 0.0
        %vm4318 = vcmp.ge.f32.partialorder %v4292, 0.0
        %vm4319 = vcmp.ge.f32.partialorder %v4293, 0.0
        %vm4320 = vcmp.ge.f32.partialorder %v4294, 0.0
        %vm4321 = vcmp.ge.f32.partialorder %v4295, 0.0
        %vm4322 = vcmp.ge.f32.partialorder %v4296, 0.0
        %vm4323 = vcmp.ge.f32.partialorder %v4297, 0.0
        %vm4324 = vcmp.ge.f32.partialorder %v4298, 0.0
        %vm4325 = vcmp.ge.f32.partialorder %v4299, 0.0
        %vm4326 = vcmp.ge.f32.partialorder %v4300, 0.0
        %vm4327 = vcmp.ge.f32.partialorder %v4301, 0.0
        %vm4328 = vcmp.ge.f32.partialorder %v4302, 0.0
        %v4329 = vmul.f32 %v4277, 0.2
        %v4330 = vmul.f32 %v4278, 0.2
        %v4331 = vmul.f32 %v4279, 0.2
        %v4332 = vmul.f32 %v4280, 0.2
        %v4333 = vmul.f32 %v4281, 0.2
        %v4334 = vmul.f32 %v4282, 0.2
        %v4335 = vmul.f32 %v4283, 0.2
        %v4336 = vmul.f32 %v4284, 0.2
        %v4337 = vmul.f32 %v4285, 0.2
        %v4338 = vmul.f32 %v4286, 0.2
        %v4339 = vmul.f32 %v4287, 0.2
        %v4340 = vmul.f32 %v4288, 0.2
        %v4341 = vmul.f32 %v4289, 0.2
        %v4342 = vmul.f32 %v4290, 0.2
        %v4343 = vmul.f32 %v4291, 0.2
        %v4344 = vmul.f32 %v4292, 0.2
        %v4345 = vmul.f32 %v4293, 0.2
        %v4346 = vmul.f32 %v4294, 0.2
        %v4347 = vmul.f32 %v4295, 0.2
        %v4348 = vmul.f32 %v4296, 0.2
        %v4349 = vmul.f32 %v4297, 0.2
        %v4350 = vmul.f32 %v4298, 0.2
        %v4351 = vmul.f32 %v4299, 0.2
        %v4352 = vmul.f32 %v4300, 0.2
        %v4353 = vmul.f32 %v4301, 0.2
        %v4354 = vmul.f32 %v4302, 0.2
        %v4355 = vsel %vm4303, %v4277, %v4329
        %v4356 = vsel %vm4304, %v4278, %v4330
        %v4357 = vsel %vm4305, %v4279, %v4331
        %v4358 = vsel %vm4306, %v4280, %v4332
        %v4359 = vsel %vm4307, %v4281, %v4333
        %v4360 = vsel %vm4308, %v4282, %v4334
        %v4361 = vsel %vm4309, %v4283, %v4335
        %v4362 = vsel %vm4310, %v4284, %v4336
        %v4363 = vsel %vm4311, %v4285, %v4337
        %v4364 = vsel %vm4312, %v4286, %v4338
        %v4365 = vsel %vm4313, %v4287, %v4339
        %v4366 = vsel %vm4314, %v4288, %v4340
        %v4367 = vsel %vm4315, %v4289, %v4341
        %v4368 = vsel %vm4316, %v4290, %v4342
        %v4369 = vsel %vm4317, %v4291, %v4343
        %v4370 = vsel %vm4318, %v4292, %v4344
        %v4371 = vsel %vm4319, %v4293, %v4345
        %v4372 = vsel %vm4320, %v4294, %v4346
        %v4373 = vsel %vm4321, %v4295, %v4347
        %v4374 = vsel %vm4322, %v4296, %v4348
        %v4375 = vsel %vm4323, %v4297, %v4349
        %v4376 = vsel %vm4324, %v4298, %v4350
        %v4377 = vsel %vm4325, %v4299, %v4351
        %v4378 = vsel %vm4326, %v4300, %v4352
        %v4379 = vsel %vm4327, %v4301, %v4353
        %v4380 = vsel %vm4328, %v4302, %v4354
        %4381 = vst.msk [vmem:[%s229] sm:$0xff] %vm1007, %v4355
        %4382 = vst.msk [vmem:[%s229 + $0x8] sm:$0xff] %vm1007, %v4356
        %4383 = vst.msk [vmem:[%s229 + $0x10] sm:$0xff] %vm1007, %v4357
        %4384 = vst.msk [vmem:[%s229 + $0x18] sm:$0xff] %vm1007, %v4358
        %4385 = vst.msk [vmem:[%s229 + $0x20] sm:$0xff] %vm1007, %v4359
        %4386 = vst.msk [vmem:[%s229 + $0x28] sm:$0xff] %vm1007, %v4360
        %4387 = vst.msk [vmem:[%s229 + $0x30] sm:$0xff] %vm1007, %v4361
        %4388 = vst.msk [vmem:[%s229 + $0x38] sm:$0xff] %vm1007, %v4362
        %4389 = vst.msk [vmem:[%s229 + $0x40] sm:$0xff] %vm1007, %v4363
        %4390 = vst.msk [vmem:[%s229 + $0x48] sm:$0xff] %vm1007, %v4364
        %4391 = vst.msk [vmem:[%s229 + $0x50] sm:$0xff] %vm1007, %v4365
        %4392 = vst.msk [vmem:[%s229 + $0x58] sm:$0xff] %vm1007, %v4366
        %4393 = vst.msk [vmem:[%s229 + $0x60] sm:$0xff] %vm1007, %v4367
        %4394 = vst.msk [vmem:[%s229 + $0x68] sm:$0xff] %vm1007, %v4368
        %4395 = vst.msk [vmem:[%s229 + $0x70] sm:$0xff] %vm1007, %v4369
        %4396 = vst.msk [vmem:[%s229 + $0x78] sm:$0xff] %vm1007, %v4370
        %4397 = vst.msk [vmem:[%s229 + $0x80] sm:$0xff] %vm1007, %v4371
        %4398 = vst.msk [vmem:[%s229 + $0x88] sm:$0xff] %vm1007, %v4372
        %4399 = vst.msk [vmem:[%s229 + $0x90] sm:$0xff] %vm1007, %v4373
        %4400 = vst.msk [vmem:[%s229 + $0x98] sm:$0xff] %vm1007, %v4374
        %4401 = vst.msk [vmem:[%s229 + $0xa0] sm:$0xff] %vm1007, %v4375
        %4402 = vst.msk [vmem:[%s229 + $0xa8] sm:$0xff] %vm1007, %v4376
        %4403 = vst.msk [vmem:[%s229 + $0xb0] sm:$0xff] %vm1007, %v4377
        %4404 = vst.msk [vmem:[%s229 + $0xb8] sm:$0xff] %vm1007, %v4378
        %4405 = vst.msk [vmem:[%s229 + $0xc0] sm:$0xff] %vm1007, %v4379
        %4406 = vst.msk [vmem:[%s229 + $0xc8] sm:$0xff] %vm1007, %v4380
        %s4407 = sand.u32 %s111, 1
        %s4408 = scalar_lea.sflag [#allocation4], %s4407
        %s4409 = sand.u32 %s111, 1
        %s4410 = smul.addr %s4409, 208
        %s4411 = scalar_lea.vmem [#allocation8], %s4410
        // Predicated region
        $region45: #{tpu_custom_call.1} parent=31 // pred_check
          %p4412 = pneg %p121
        $region46: #{tpu_custom_call.1} parent=31 // pred_check_branch
          %4414 = sbr.rel (%p4412) target = $region48
        $region47: #{tpu_custom_call.1} parent=31 // pred_region
          %s4415 = smul.u32 13, %s26
          %s4417 = ssub.s32 3328, 3328
          %4418 = vsyncadd %s4408, %s4417
          %s4419 = smul.addr %s4415, 2
          %s4420 = smul.addr %s25, 26
          %s4421 = sadd.s32 %s4419, %s4420
          %s4422 = smul.addr %s4421, 128
          %s4423 = scalar_lea.hbm %s3, %s4422
          %s4424 = sshll.u32 %s4411, 4
          %s4425 = int_to_ptr.vmem [resolvable:$true] %s4424
          %4430 = dma.vmem_to_hbm [thread:$0]  %s4425, 3328, %s4423, %s4408, 128, 128, 8
        $region48: #{tpu_custom_call.1} parent=31 // pred_fallthru
          _
      $region32: #{tpu_custom_call.1} parent=5 // pred_fallthru
        _
      %p4431 = scmp.le.s32.totalorder 2, %s16
      // Predicated region
      $region49: #{tpu_custom_call.1} parent=5 // pred_check
        %p4432 = pneg %p4431
      $region50: #{tpu_custom_call.1} parent=5 // pred_check_branch
        %4434 = sbr.rel (%p4432) target = $region52
      $region51: #{tpu_custom_call.1} parent=5 // pred_region
        %s4435 = ssub.s32 %s16, 2
        // Predicated region
        $region53: #{tpu_custom_call.1} parent=51 // pred_check
          %p4436 = pneg %p127
        $region54: #{tpu_custom_call.1} parent=51 // pred_check_branch
          %4438 = sbr.rel (%p4436) target = $region56
        $region55: #{tpu_custom_call.1} parent=51 // pred_region
          %s4439 = sand.u32 %s112, 1
          %s4440 = scalar_lea.sflag [#allocation4], %s4439
          %s4441 = sand.u32 %s112, 1
          %s4442 = smul.addr %s4441, 208
          %s4443 = scalar_lea.vmem [#allocation8], %s4442
          %4444 = dma.done %s4440, 3328
        $region56: #{tpu_custom_call.1} parent=51 // pred_fallthru
          _
      $region52: #{tpu_custom_call.1} parent=5 // pred_fallthru
        _
    $region6: #{tpu_custom_call.1} parent=1 // loop_footer
      %s20 = sadd.s32 1, %s16
    $region7: #{tpu_custom_call.1} parent=1 // loop_footer_branch
      %15 = sbr.rel target = $region3
    $region8: #{tpu_custom_call.1} parent=1 // loop_exit
      _
    %4445 = vsyncpa [#allocation3], 1
    %s4446 = scalar_lea.sflag [#allocation3], 1
    %4447 = vsyncpa %s4446, 1
    %4448 = vsyncpa [#allocation6], 1
    %4449 = vsyncpa [#allocation4], 1
    %s4450 = scalar_lea.sflag [#allocation4], 1
    %4451 = vsyncpa %s4450, 1

</llo_original>
